<compile_context>
chip_gen: v6e
topology: v6e:2x2x1
jax: 0.10.0
libtpu: 0.0.40
codegen_flags: <defaults>
</compile_context>

<pallas_src>
import jax
import jax.numpy as jnp
from jax.experimental import pallas as pl
from jax.experimental.pallas import tpu as pltpu

NUM_CLASSES = 5
_PARAM_ORDER = ("w0", "b0", "w1", "b1", "w2a", "w2b", "b2",
                "wf0", "bf0", "wf1", "bf1")


def _full_spec(shape):
    # single whole-array block (grid=(1,)); tiny model => everything in VMEM
    return pl.BlockSpec(shape, lambda i, _n=len(shape): (0,) * _n)


# ---------------------------------------------------------------------------
# Single fused kernel: conv0 -> conv1 -> (maxpool skip) -> conv2 -> fc0 -> fc1
# -> log_softmax, all resident in VMEM.
# ---------------------------------------------------------------------------
def _cnn_fused_kernel(x_ref, w0_ref, b0_ref, w1_ref, b1_ref,
                      w2a_ref, w2b_ref, b2_ref,
                      wf0_ref, bf0_ref, wf1_ref, bf1_ref,
                      out_ref, pad_scr):
    K = 3                       # conv kernel size (all blocks)
    N = x_ref.shape[0]          # batch (tiny; unrolled at trace time)

    def pad1(a):
        """Zero-pad (C, L) -> (C, L+2) along the lane axis via VMEM scratch."""
        C, L = a.shape
        pad_scr[...] = jnp.zeros_like(pad_scr)
        pad_scr[0:C, 1:1 + L] = a
        return pad_scr[0:C, 0:L + 2]

    def conv_taps(xp, w_ref, l_out, acc):
        # acc starts as the (C_out, 1) bias (broadcasts) or a running accum.
        for t in range(K):
            acc = acc + jnp.dot(w_ref[t], xp[:, t:t + l_out],
                                preferred_element_type=jnp.float32)
        return acc

    for n in range(N):
        x_n = x_ref[n]                                        # (4, 16)

        # block 0: Conv1d(4->8, k=3, pad=1) + ReLU            -> (8, 16)
        y0 = jnp.maximum(conv_taps(pad1(x_n), w0_ref, 16, b0_ref[...]), 0.0)

        # block 1: Conv1d(8->8, k=3, pad=0) + ReLU             -> (8, 14)
        y1 = jnp.maximum(conv_taps(y0, w1_ref, 14, b1_ref[...]), 0.0)

        # skip from block 0: MaxPool1d(kernel=3, stride=1)     -> (8, 14)
        y0p = jnp.maximum(jnp.maximum(y0[:, 0:14], y0[:, 1:15]), y0[:, 2:16])

        # block 2: Conv1d(16->8, k=3, pad=1) + ReLU on concat([y1, y0p], ch=1),
        # with the concat folded into channel-split weight halves (no movement).
        acc2 = conv_taps(pad1(y1), w2a_ref, 14, b2_ref[...])
        acc2 = conv_taps(pad1(y0p), w2b_ref, 14, acc2)
        y2 = jnp.maximum(acc2, 0.0)                           # (8, 14)

        # classifier fc0: Linear(112,32)+ReLU without materializing the flatten
        # (per-channel (1,14)@(14,32) partial matmuls accumulated in f32).
        h = bf0_ref[...]                                      # (1, 32)
        for c in range(8):
            h = h + jnp.dot(y2[c:c + 1, :], wf0_ref[c],
                            preferred_element_type=jnp.float32)
        h = jnp.maximum(h, 0.0)

        # classifier fc1: Linear(32, 5)
        logits = jnp.dot(h, wf1_ref[...],
                         preferred_element_type=jnp.float32) + bf1_ref[...]

        # log_softmax(dim=1) — lane reduce (XLU) + exp/log (EUP), free filler
        m = jnp.max(logits, axis=-1, keepdims=True)
        s = logits - m
        lse = jnp.log(jnp.sum(jnp.exp(s), axis=-1, keepdims=True))
        out_ref[pl.ds(n, 1), :] = s - lse


@jax.jit
def cnn_forward(packed, x):
    """Single-dispatch fused forward pass. x: (N, 4, 16) float32."""
    N = x.shape[0]
    ins = (x,) + tuple(packed[k] for k in _PARAM_ORDER)
    # NOTE: at realistic batch sizes, switch to grid=(N//bm,) over the batch
    # axis with dimension_semantics=("parallel",) to occupy both v7x cores;
    # at N=2 a single grid step is optimal (dispatch-count bound).
    return pl.pallas_call(
        _cnn_fused_kernel,
        out_shape=jax.ShapeDtypeStruct((N, NUM_CLASSES), jnp.float32),
        grid=(1,),
        in_specs=[_full_spec(a.shape) for a in ins],
        out_specs=_full_spec((N, NUM_CLASSES)),
        scratch_shapes=[pltpu.VMEM((8, 18), jnp.float32)],   # padding scratch
    )(*ins)


# ---------------------------------------------------------------------------
# Parameters: torch-layout init (deterministic), then a ONE-TIME repack into
# kernel-friendly layouts (tap-major conv weights, channel-split conv2,
# pre-transposed fc weights, 2D biases).
# ---------------------------------------------------------------------------
def init_params(key):
    ks = jax.random.split(key, 10)

    def conv_p(k1, k2, cout, cin, ksz):
        bound = 1.0 / (cin * ksz) ** 0.5
        w = jax.random.uniform(k1, (cout, cin, ksz), minval=-bound, maxval=bound)
        b = jax.random.uniform(k2, (cout,), minval=-bound, maxval=bound)
        return w.astype(jnp.float32), b.astype(jnp.float32)

    def lin_p(k1, k2, out, inp):
        bound = 1.0 / inp ** 0.5
        w = jax.random.uniform(k1, (out, inp), minval=-bound, maxval=bound)
        b = jax.random.uniform(k2, (out,), minval=-bound, maxval=bound)
        return w.astype(jnp.float32), b.astype(jnp.float32)

    return {
        "conv0": conv_p(ks[0], ks[1], 8, 4, 3),    # features block 0
        "conv1": conv_p(ks[2], ks[3], 8, 8, 3),    # features block 1
        "conv2": conv_p(ks[4], ks[5], 8, 16, 3),   # features block 2 (post-concat)
        "fc0": lin_p(ks[6], ks[7], 32, 112),       # classifier Linear(112,32)
        "fc1": lin_p(ks[8], ks[9], 5, 32),         # classifier Linear(32,5)
    }


def pack_params(params):
    """One-time layout transform: torch layouts -> kernel layouts."""
    f32 = lambda a: jnp.asarray(a, jnp.float32)
    (w0, b0), (w1, b1), (w2, b2) = (params["conv0"], params["conv1"],
                                    params["conv2"])
    wf0, bf0 = params["fc0"]
    wf1, bf1 = params["fc1"]
    return {
        "w0": f32(jnp.transpose(w0, (2, 0, 1))),              # (k, C_out, C_in)
        "b0": f32(b0).reshape(8, 1),
        "w1": f32(jnp.transpose(w1, (2, 0, 1))),
        "b1": f32(b1).reshape(8, 1),
        "w2a": f32(jnp.transpose(w2[:, 0:8, :], (2, 0, 1))),  # main-path half
        "w2b": f32(jnp.transpose(w2[:, 8:16, :], (2, 0, 1))), # skip half
        "b2": f32(b2).reshape(8, 1),
        "wf0": f32(wf0.reshape(32, 8, 14).transpose(1, 2, 0)),  # (C, L, 32)
        "bf0": f32(bf0).reshape(1, 32),
        "wf1": f32(wf1.T),                                      # (32, 5)
        "bf1": f32(bf1).reshape(1, 5),
    }


# ---------------------------------------------------------------------------
# Pure-JAX reference (independent path: XLA conv) for correctness checking.
# ---------------------------------------------------------------------------
def reference_forward(params, x):
    def conv_relu(x, w, b, pad):
        y = jax.lax.conv_general_dilated(
            x, w, window_strides=(1,), padding=[(pad, pad)],
            dimension_numbers=("NCH", "OIH", "NCH"))
        return jax.nn.relu(y + b[None, :, None])

    w0, b0 = params["conv0"]
    w1, b1 = params["conv1"]
    w2, b2 = params["conv2"]
    y0 = conv_relu(x, w0, b0, 1)                                   # (N, 8, 16)
    y1 = conv_relu(y0, w1, b1, 0)                                  # (N, 8, 14)
    y0p = jnp.max(jnp.stack([y0[:, :, i:i + 14] for i in range(3)], 0), axis=0)
    y2 = conv_relu(jnp.concatenate([y1, y0p], axis=1), w2, b2, 1)  # (N, 8, 14)
    flat = y2.reshape(y2.shape[0], -1)
    wf0, bf0 = params["fc0"]
    wf1, bf1 = params["fc1"]
    h = jax.nn.relu(flat @ wf0.T + bf0)
    logits = h @ wf1.T + bf1
    return jax.nn.log_softmax(logits, axis=1)


if __name__ == "__main__":
    key = jax.random.PRNGKey(0)
    pkey, xkey = jax.random.split(key)
    params = init_params(pkey)
    packed = pack_params(params)   # one-time repack; no per-call glue remains
    # input implied by the Conv1d/MaxPool1d forward: (batch=2, channels=4, length=16)
    x = jax.random.normal(xkey, (2, 4, 16), dtype=jnp.float32)

    out = jax.block_until_ready(cnn_forward(packed, x))

    assert out.shape == (2, 5)
    # rows of log_softmax must exp-sum to 1
    assert bool(jnp.allclose(jnp.exp(out).sum(axis=1), 1.0, atol=1e-4))
    # match the independent XLA reference
    ref = reference_forward(params, x)
    assert bool(jnp.allclose(out, ref, atol=2e-2, rtol=2e-2))
    print("KERNEL_OK")
</pallas_src>

<mosaic_0001>
module attributes {stable_mosaic.version = 11 : i64} {
  func.func @_cnn_fused_kernel(%arg0: i32, %arg1: memref<2x4x16xf32, #tpu.memory_space<vmem>>, %arg2: memref<3x8x4xf32, #tpu.memory_space<vmem>>, %arg3: memref<8x1xf32, #tpu.memory_space<vmem>>, %arg4: memref<3x8x8xf32, #tpu.memory_space<vmem>>, %arg5: memref<8x1xf32, #tpu.memory_space<vmem>>, %arg6: memref<3x8x8xf32, #tpu.memory_space<vmem>>, %arg7: memref<3x8x8xf32, #tpu.memory_space<vmem>>, %arg8: memref<8x1xf32, #tpu.memory_space<vmem>>, %arg9: memref<8x14x32xf32, #tpu.memory_space<vmem>>, %arg10: memref<1x32xf32, #tpu.memory_space<vmem>>, %arg11: memref<32x5xf32, #tpu.memory_space<vmem>>, %arg12: memref<1x5xf32, #tpu.memory_space<vmem>>, %arg13: memref<2x5xf32, #tpu.memory_space<vmem>>, %arg14: memref<8x18xf32, #tpu.memory_space<vmem>>) attributes {dimension_semantics = [#tpu.dimension_semantics<arbitrary>], iteration_bounds = array<i64: 1>, scalar_prefetch = 0 : i64, scratch_operands = 1 : i64, tpu.core_type = #tpu.core_type<tc>, window_params = [{pipeline_mode = #tpu.pipeline_mode<synchronous>, transform_indices = @transform_0, window_bounds = array<i64: 2, 4, 16>}, {pipeline_mode = #tpu.pipeline_mode<synchronous>, transform_indices = @transform_1, window_bounds = array<i64: 3, 8, 4>}, {pipeline_mode = #tpu.pipeline_mode<synchronous>, transform_indices = @transform_2, window_bounds = array<i64: 8, 1>}, {pipeline_mode = #tpu.pipeline_mode<synchronous>, transform_indices = @transform_3, window_bounds = array<i64: 3, 8, 8>}, {pipeline_mode = #tpu.pipeline_mode<synchronous>, transform_indices = @transform_4, window_bounds = array<i64: 8, 1>}, {pipeline_mode = #tpu.pipeline_mode<synchronous>, transform_indices = @transform_5, window_bounds = array<i64: 3, 8, 8>}, {pipeline_mode = #tpu.pipeline_mode<synchronous>, transform_indices = @transform_6, window_bounds = array<i64: 3, 8, 8>}, {pipeline_mode = #tpu.pipeline_mode<synchronous>, transform_indices = @transform_7, window_bounds = array<i64: 8, 1>}, {pipeline_mode = #tpu.pipeline_mode<synchronous>, transform_indices = @transform_8, window_bounds = array<i64: 8, 14, 32>}, {pipeline_mode = #tpu.pipeline_mode<synchronous>, transform_indices = @transform_9, window_bounds = array<i64: 1, 32>}, {pipeline_mode = #tpu.pipeline_mode<synchronous>, transform_indices = @transform_10, window_bounds = array<i64: 32, 5>}, {pipeline_mode = #tpu.pipeline_mode<synchronous>, transform_indices = @transform_11, window_bounds = array<i64: 1, 5>}, {pipeline_mode = #tpu.pipeline_mode<synchronous>, transform_indices = @transform_12, window_bounds = array<i64: 2, 5>}]} {
    %c0 = arith.constant 0 : index
    %c0_0 = arith.constant 0 : index
    %c0_1 = arith.constant 0 : index
    %0 = vector.load %arg1[%c0, %c0_0, %c0_1] : memref<2x4x16xf32, #tpu.memory_space<vmem>>, vector<1x4x16xf32>
    %1 = vector.shape_cast %0 : vector<1x4x16xf32> to vector<4x16xf32>
    %cst = arith.constant 0.000000e+00 : f32
    %2 = vector.broadcast %cst : f32 to vector<8x18xf32>
    %c0_2 = arith.constant 0 : index
    %c0_3 = arith.constant 0 : index
    %3 = vector.load %arg14[%c0_2, %c0_3] : memref<8x18xf32, #tpu.memory_space<vmem>>, vector<8x18xf32>
    tpu.vector_store %arg14[%c0_2, %c0_3], %2 {strides = array<i32>} : memref<8x18xf32, #tpu.memory_space<vmem>>, vector<8x18xf32>,
    %c0_4 = arith.constant 0 : index
    %c1 = arith.constant 1 : index
    %4 = vector.load %arg14[%c0_4, %c1] : memref<8x18xf32, #tpu.memory_space<vmem>>, vector<4x16xf32>
    tpu.vector_store %arg14[%c0_4, %c1], %1 {strides = array<i32>} : memref<8x18xf32, #tpu.memory_space<vmem>>, vector<4x16xf32>,
    %c0_5 = arith.constant 0 : index
    %c0_6 = arith.constant 0 : index
    %5 = vector.load %arg14[%c0_5, %c0_6] : memref<8x18xf32, #tpu.memory_space<vmem>>, vector<4x18xf32>
    %c0_7 = arith.constant 0 : index
    %c0_8 = arith.constant 0 : index
    %6 = vector.load %arg3[%c0_7, %c0_8] : memref<8x1xf32, #tpu.memory_space<vmem>>, vector<8x1xf32>
    %c0_9 = arith.constant 0 : index
    %c0_10 = arith.constant 0 : index
    %c0_11 = arith.constant 0 : index
    %7 = vector.load %arg2[%c0_9, %c0_10, %c0_11] : memref<3x8x4xf32, #tpu.memory_space<vmem>>, vector<1x8x4xf32>
    %8 = vector.shape_cast %7 : vector<1x8x4xf32> to vector<8x4xf32>
    %9 = vector.extract_strided_slice %5 {offsets = [0, 0], sizes = [4, 16], strides = [1, 1]} : vector<4x18xf32> to vector<4x16xf32>
    %cst_12 = arith.constant dense<0.000000e+00> : vector<8x16xf32>
    %10 = tpu.matmul %8, %9, %cst_12 {dimension_numbers = #tpu.dot_dimension_numbers<[1], [0], [0], [1], [0, 0, 1, 1], [], []>} : vector<8x4xf32>, vector<4x16xf32>, vector<8x16xf32> -> vector<8x16xf32>
    %11 = vector.broadcast %6 : vector<8x1xf32> to vector<8x16xf32>
    %12 = arith.addf %11, %10 : vector<8x16xf32>
    %c1_13 = arith.constant 1 : index
    %c0_14 = arith.constant 0 : index
    %c0_15 = arith.constant 0 : index
    %13 = vector.load %arg2[%c1_13, %c0_14, %c0_15] : memref<3x8x4xf32, #tpu.memory_space<vmem>>, vector<1x8x4xf32>
    %14 = vector.shape_cast %13 : vector<1x8x4xf32> to vector<8x4xf32>
    %15 = vector.extract_strided_slice %5 {offsets = [0, 1], sizes = [4, 16], strides = [1, 1]} : vector<4x18xf32> to vector<4x16xf32>
    %cst_16 = arith.constant dense<0.000000e+00> : vector<8x16xf32>
    %16 = tpu.matmul %14, %15, %cst_16 {dimension_numbers = #tpu.dot_dimension_numbers<[1], [0], [0], [1], [0, 0, 1, 1], [], []>} : vector<8x4xf32>, vector<4x16xf32>, vector<8x16xf32> -> vector<8x16xf32>
    %17 = arith.addf %12, %16 : vector<8x16xf32>
    %c2 = arith.constant 2 : index
    %c0_17 = arith.constant 0 : index
    %c0_18 = arith.constant 0 : index
    %18 = vector.load %arg2[%c2, %c0_17, %c0_18] : memref<3x8x4xf32, #tpu.memory_space<vmem>>, vector<1x8x4xf32>
    %19 = vector.shape_cast %18 : vector<1x8x4xf32> to vector<8x4xf32>
    %20 = vector.extract_strided_slice %5 {offsets = [0, 2], sizes = [4, 16], strides = [1, 1]} : vector<4x18xf32> to vector<4x16xf32>
    %cst_19 = arith.constant dense<0.000000e+00> : vector<8x16xf32>
    %21 = tpu.matmul %19, %20, %cst_19 {dimension_numbers = #tpu.dot_dimension_numbers<[1], [0], [0], [1], [0, 0, 1, 1], [], []>} : vector<8x4xf32>, vector<4x16xf32>, vector<8x16xf32> -> vector<8x16xf32>
    %22 = arith.addf %17, %21 : vector<8x16xf32>
    %cst_20 = arith.constant 0.000000e+00 : f32
    %23 = vector.broadcast %cst_20 : f32 to vector<8x16xf32>
    %24 = arith.maximumf %22, %23 : vector<8x16xf32>
    %c0_21 = arith.constant 0 : index
    %c0_22 = arith.constant 0 : index
    %25 = vector.load %arg5[%c0_21, %c0_22] : memref<8x1xf32, #tpu.memory_space<vmem>>, vector<8x1xf32>
    %c0_23 = arith.constant 0 : index
    %c0_24 = arith.constant 0 : index
    %c0_25 = arith.constant 0 : index
    %26 = vector.load %arg4[%c0_23, %c0_24, %c0_25] : memref<3x8x8xf32, #tpu.memory_space<vmem>>, vector<1x8x8xf32>
    %27 = vector.shape_cast %26 : vector<1x8x8xf32> to vector<8x8xf32>
    %28 = vector.extract_strided_slice %24 {offsets = [0, 0], sizes = [8, 14], strides = [1, 1]} : vector<8x16xf32> to vector<8x14xf32>
    %cst_26 = arith.constant dense<0.000000e+00> : vector<8x14xf32>
    %29 = tpu.matmul %27, %28, %cst_26 {dimension_numbers = #tpu.dot_dimension_numbers<[1], [0], [0], [1], [0, 0, 1, 1], [], []>} : vector<8x8xf32>, vector<8x14xf32>, vector<8x14xf32> -> vector<8x14xf32>
    %30 = vector.broadcast %25 : vector<8x1xf32> to vector<8x14xf32>
    %31 = arith.addf %30, %29 : vector<8x14xf32>
    %c1_27 = arith.constant 1 : index
    %c0_28 = arith.constant 0 : index
    %c0_29 = arith.constant 0 : index
    %32 = vector.load %arg4[%c1_27, %c0_28, %c0_29] : memref<3x8x8xf32, #tpu.memory_space<vmem>>, vector<1x8x8xf32>
    %33 = vector.shape_cast %32 : vector<1x8x8xf32> to vector<8x8xf32>
    %34 = vector.extract_strided_slice %24 {offsets = [0, 1], sizes = [8, 14], strides = [1, 1]} : vector<8x16xf32> to vector<8x14xf32>
    %cst_30 = arith.constant dense<0.000000e+00> : vector<8x14xf32>
    %35 = tpu.matmul %33, %34, %cst_30 {dimension_numbers = #tpu.dot_dimension_numbers<[1], [0], [0], [1], [0, 0, 1, 1], [], []>} : vector<8x8xf32>, vector<8x14xf32>, vector<8x14xf32> -> vector<8x14xf32>
    %36 = arith.addf %31, %35 : vector<8x14xf32>
    %c2_31 = arith.constant 2 : index
    %c0_32 = arith.constant 0 : index
    %c0_33 = arith.constant 0 : index
    %37 = vector.load %arg4[%c2_31, %c0_32, %c0_33] : memref<3x8x8xf32, #tpu.memory_space<vmem>>, vector<1x8x8xf32>
    %38 = vector.shape_cast %37 : vector<1x8x8xf32> to vector<8x8xf32>
    %39 = vector.extract_strided_slice %24 {offsets = [0, 2], sizes = [8, 14], strides = [1, 1]} : vector<8x16xf32> to vector<8x14xf32>
    %cst_34 = arith.constant dense<0.000000e+00> : vector<8x14xf32>
    %40 = tpu.matmul %38, %39, %cst_34 {dimension_numbers = #tpu.dot_dimension_numbers<[1], [0], [0], [1], [0, 0, 1, 1], [], []>} : vector<8x8xf32>, vector<8x14xf32>, vector<8x14xf32> -> vector<8x14xf32>
    %41 = arith.addf %36, %40 : vector<8x14xf32>
    %cst_35 = arith.constant 0.000000e+00 : f32
    %42 = vector.broadcast %cst_35 : f32 to vector<8x14xf32>
    %43 = arith.maximumf %41, %42 : vector<8x14xf32>
    %44 = vector.extract_strided_slice %24 {offsets = [0, 0], sizes = [8, 14], strides = [1, 1]} : vector<8x16xf32> to vector<8x14xf32>
    %45 = vector.extract_strided_slice %24 {offsets = [0, 1], sizes = [8, 14], strides = [1, 1]} : vector<8x16xf32> to vector<8x14xf32>
    %46 = arith.maximumf %44, %45 : vector<8x14xf32>
    %47 = vector.extract_strided_slice %24 {offsets = [0, 2], sizes = [8, 14], strides = [1, 1]} : vector<8x16xf32> to vector<8x14xf32>
    %48 = arith.maximumf %46, %47 : vector<8x14xf32>
    %cst_36 = arith.constant 0.000000e+00 : f32
    %49 = vector.broadcast %cst_36 : f32 to vector<8x18xf32>
    %c0_37 = arith.constant 0 : index
    %c0_38 = arith.constant 0 : index
    %50 = vector.load %arg14[%c0_37, %c0_38] : memref<8x18xf32, #tpu.memory_space<vmem>>, vector<8x18xf32>
    tpu.vector_store %arg14[%c0_37, %c0_38], %49 {strides = array<i32>} : memref<8x18xf32, #tpu.memory_space<vmem>>, vector<8x18xf32>,
    %c0_39 = arith.constant 0 : index
    %c1_40 = arith.constant 1 : index
    %51 = vector.load %arg14[%c0_39, %c1_40] : memref<8x18xf32, #tpu.memory_space<vmem>>, vector<8x14xf32>
    tpu.vector_store %arg14[%c0_39, %c1_40], %43 {strides = array<i32>} : memref<8x18xf32, #tpu.memory_space<vmem>>, vector<8x14xf32>,
    %c0_41 = arith.constant 0 : index
    %c0_42 = arith.constant 0 : index
    %52 = vector.load %arg14[%c0_41, %c0_42] : memref<8x18xf32, #tpu.memory_space<vmem>>, vector<8x16xf32>
    %c0_43 = arith.constant 0 : index
    %c0_44 = arith.constant 0 : index
    %53 = vector.load %arg8[%c0_43, %c0_44] : memref<8x1xf32, #tpu.memory_space<vmem>>, vector<8x1xf32>
    %c0_45 = arith.constant 0 : index
    %c0_46 = arith.constant 0 : index
    %c0_47 = arith.constant 0 : index
    %54 = vector.load %arg6[%c0_45, %c0_46, %c0_47] : memref<3x8x8xf32, #tpu.memory_space<vmem>>, vector<1x8x8xf32>
    %55 = vector.shape_cast %54 : vector<1x8x8xf32> to vector<8x8xf32>
    %56 = vector.extract_strided_slice %52 {offsets = [0, 0], sizes = [8, 14], strides = [1, 1]} : vector<8x16xf32> to vector<8x14xf32>
    %cst_48 = arith.constant dense<0.000000e+00> : vector<8x14xf32>
    %57 = tpu.matmul %55, %56, %cst_48 {dimension_numbers = #tpu.dot_dimension_numbers<[1], [0], [0], [1], [0, 0, 1, 1], [], []>} : vector<8x8xf32>, vector<8x14xf32>, vector<8x14xf32> -> vector<8x14xf32>
    %58 = vector.broadcast %53 : vector<8x1xf32> to vector<8x14xf32>
    %59 = arith.addf %58, %57 : vector<8x14xf32>
    %c1_49 = arith.constant 1 : index
    %c0_50 = arith.constant 0 : index
    %c0_51 = arith.constant 0 : index
    %60 = vector.load %arg6[%c1_49, %c0_50, %c0_51] : memref<3x8x8xf32, #tpu.memory_space<vmem>>, vector<1x8x8xf32>
    %61 = vector.shape_cast %60 : vector<1x8x8xf32> to vector<8x8xf32>
    %62 = vector.extract_strided_slice %52 {offsets = [0, 1], sizes = [8, 14], strides = [1, 1]} : vector<8x16xf32> to vector<8x14xf32>
    %cst_52 = arith.constant dense<0.000000e+00> : vector<8x14xf32>
    %63 = tpu.matmul %61, %62, %cst_52 {dimension_numbers = #tpu.dot_dimension_numbers<[1], [0], [0], [1], [0, 0, 1, 1], [], []>} : vector<8x8xf32>, vector<8x14xf32>, vector<8x14xf32> -> vector<8x14xf32>
    %64 = arith.addf %59, %63 : vector<8x14xf32>
    %c2_53 = arith.constant 2 : index
    %c0_54 = arith.constant 0 : index
    %c0_55 = arith.constant 0 : index
    %65 = vector.load %arg6[%c2_53, %c0_54, %c0_55] : memref<3x8x8xf32, #tpu.memory_space<vmem>>, vector<1x8x8xf32>
    %66 = vector.shape_cast %65 : vector<1x8x8xf32> to vector<8x8xf32>
    %67 = vector.extract_strided_slice %52 {offsets = [0, 2], sizes = [8, 14], strides = [1, 1]} : vector<8x16xf32> to vector<8x14xf32>
    %cst_56 = arith.constant dense<0.000000e+00> : vector<8x14xf32>
    %68 = tpu.matmul %66, %67, %cst_56 {dimension_numbers = #tpu.dot_dimension_numbers<[1], [0], [0], [1], [0, 0, 1, 1], [], []>} : vector<8x8xf32>, vector<8x14xf32>, vector<8x14xf32> -> vector<8x14xf32>
    %69 = arith.addf %64, %68 : vector<8x14xf32>
    %cst_57 = arith.constant 0.000000e+00 : f32
    %70 = vector.broadcast %cst_57 : f32 to vector<8x18xf32>
    %c0_58 = arith.constant 0 : index
    %c0_59 = arith.constant 0 : index
    %71 = vector.load %arg14[%c0_58, %c0_59] : memref<8x18xf32, #tpu.memory_space<vmem>>, vector<8x18xf32>
    tpu.vector_store %arg14[%c0_58, %c0_59], %70 {strides = array<i32>} : memref<8x18xf32, #tpu.memory_space<vmem>>, vector<8x18xf32>,
    %c0_60 = arith.constant 0 : index
    %c1_61 = arith.constant 1 : index
    %72 = vector.load %arg14[%c0_60, %c1_61] : memref<8x18xf32, #tpu.memory_space<vmem>>, vector<8x14xf32>
    tpu.vector_store %arg14[%c0_60, %c1_61], %48 {strides = array<i32>} : memref<8x18xf32, #tpu.memory_space<vmem>>, vector<8x14xf32>,
    %c0_62 = arith.constant 0 : index
    %c0_63 = arith.constant 0 : index
    %73 = vector.load %arg14[%c0_62, %c0_63] : memref<8x18xf32, #tpu.memory_space<vmem>>, vector<8x16xf32>
    %c0_64 = arith.constant 0 : index
    %c0_65 = arith.constant 0 : index
    %c0_66 = arith.constant 0 : index
    %74 = vector.load %arg7[%c0_64, %c0_65, %c0_66] : memref<3x8x8xf32, #tpu.memory_space<vmem>>, vector<1x8x8xf32>
    %75 = vector.shape_cast %74 : vector<1x8x8xf32> to vector<8x8xf32>
    %76 = vector.extract_strided_slice %73 {offsets = [0, 0], sizes = [8, 14], strides = [1, 1]} : vector<8x16xf32> to vector<8x14xf32>
    %cst_67 = arith.constant dense<0.000000e+00> : vector<8x14xf32>
    %77 = tpu.matmul %75, %76, %cst_67 {dimension_numbers = #tpu.dot_dimension_numbers<[1], [0], [0], [1], [0, 0, 1, 1], [], []>} : vector<8x8xf32>, vector<8x14xf32>, vector<8x14xf32> -> vector<8x14xf32>
    %78 = arith.addf %69, %77 : vector<8x14xf32>
    %c1_68 = arith.constant 1 : index
    %c0_69 = arith.constant 0 : index
    %c0_70 = arith.constant 0 : index
    %79 = vector.load %arg7[%c1_68, %c0_69, %c0_70] : memref<3x8x8xf32, #tpu.memory_space<vmem>>, vector<1x8x8xf32>
    %80 = vector.shape_cast %79 : vector<1x8x8xf32> to vector<8x8xf32>
    %81 = vector.extract_strided_slice %73 {offsets = [0, 1], sizes = [8, 14], strides = [1, 1]} : vector<8x16xf32> to vector<8x14xf32>
    %cst_71 = arith.constant dense<0.000000e+00> : vector<8x14xf32>
    %82 = tpu.matmul %80, %81, %cst_71 {dimension_numbers = #tpu.dot_dimension_numbers<[1], [0], [0], [1], [0, 0, 1, 1], [], []>} : vector<8x8xf32>, vector<8x14xf32>, vector<8x14xf32> -> vector<8x14xf32>
    %83 = arith.addf %78, %82 : vector<8x14xf32>
    %c2_72 = arith.constant 2 : index
    %c0_73 = arith.constant 0 : index
    %c0_74 = arith.constant 0 : index
    %84 = vector.load %arg7[%c2_72, %c0_73, %c0_74] : memref<3x8x8xf32, #tpu.memory_space<vmem>>, vector<1x8x8xf32>
    %85 = vector.shape_cast %84 : vector<1x8x8xf32> to vector<8x8xf32>
    %86 = vector.extract_strided_slice %73 {offsets = [0, 2], sizes = [8, 14], strides = [1, 1]} : vector<8x16xf32> to vector<8x14xf32>
    %cst_75 = arith.constant dense<0.000000e+00> : vector<8x14xf32>
    %87 = tpu.matmul %85, %86, %cst_75 {dimension_numbers = #tpu.dot_dimension_numbers<[1], [0], [0], [1], [0, 0, 1, 1], [], []>} : vector<8x8xf32>, vector<8x14xf32>, vector<8x14xf32> -> vector<8x14xf32>
    %88 = arith.addf %83, %87 : vector<8x14xf32>
    %cst_76 = arith.constant 0.000000e+00 : f32
    %89 = vector.broadcast %cst_76 : f32 to vector<8x14xf32>
    %90 = arith.maximumf %88, %89 : vector<8x14xf32>
    %c0_77 = arith.constant 0 : index
    %c0_78 = arith.constant 0 : index
    %91 = vector.load %arg10[%c0_77, %c0_78] : memref<1x32xf32, #tpu.memory_space<vmem>>, vector<1x32xf32>
    %92 = vector.extract_strided_slice %90 {offsets = [0, 0], sizes = [1, 14], strides = [1, 1]} : vector<8x14xf32> to vector<1x14xf32>
    %c0_79 = arith.constant 0 : index
    %c0_80 = arith.constant 0 : index
    %c0_81 = arith.constant 0 : index
    %93 = vector.load %arg9[%c0_79, %c0_80, %c0_81] : memref<8x14x32xf32, #tpu.memory_space<vmem>>, vector<1x14x32xf32>
    %94 = vector.shape_cast %93 : vector<1x14x32xf32> to vector<14x32xf32>
    %cst_82 = arith.constant dense<0.000000e+00> : vector<1x32xf32>
    %95 = tpu.matmul %92, %94, %cst_82 {dimension_numbers = #tpu.dot_dimension_numbers<[1], [0], [0], [1], [0, 0, 1, 1], [], []>} : vector<1x14xf32>, vector<14x32xf32>, vector<1x32xf32> -> vector<1x32xf32>
    %96 = arith.addf %91, %95 : vector<1x32xf32>
    %97 = vector.extract_strided_slice %90 {offsets = [1, 0], sizes = [1, 14], strides = [1, 1]} : vector<8x14xf32> to vector<1x14xf32>
    %c1_83 = arith.constant 1 : index
    %c0_84 = arith.constant 0 : index
    %c0_85 = arith.constant 0 : index
    %98 = vector.load %arg9[%c1_83, %c0_84, %c0_85] : memref<8x14x32xf32, #tpu.memory_space<vmem>>, vector<1x14x32xf32>
    %99 = vector.shape_cast %98 : vector<1x14x32xf32> to vector<14x32xf32>
    %cst_86 = arith.constant dense<0.000000e+00> : vector<1x32xf32>
    %100 = tpu.matmul %97, %99, %cst_86 {dimension_numbers = #tpu.dot_dimension_numbers<[1], [0], [0], [1], [0, 0, 1, 1], [], []>} : vector<1x14xf32>, vector<14x32xf32>, vector<1x32xf32> -> vector<1x32xf32>
    %101 = arith.addf %96, %100 : vector<1x32xf32>
    %102 = vector.extract_strided_slice %90 {offsets = [2, 0], sizes = [1, 14], strides = [1, 1]} : vector<8x14xf32> to vector<1x14xf32>
    %c2_87 = arith.constant 2 : index
    %c0_88 = arith.constant 0 : index
    %c0_89 = arith.constant 0 : index
    %103 = vector.load %arg9[%c2_87, %c0_88, %c0_89] : memref<8x14x32xf32, #tpu.memory_space<vmem>>, vector<1x14x32xf32>
    %104 = vector.shape_cast %103 : vector<1x14x32xf32> to vector<14x32xf32>
    %cst_90 = arith.constant dense<0.000000e+00> : vector<1x32xf32>
    %105 = tpu.matmul %102, %104, %cst_90 {dimension_numbers = #tpu.dot_dimension_numbers<[1], [0], [0], [1], [0, 0, 1, 1], [], []>} : vector<1x14xf32>, vector<14x32xf32>, vector<1x32xf32> -> vector<1x32xf32>
    %106 = arith.addf %101, %105 : vector<1x32xf32>
    %107 = vector.extract_strided_slice %90 {offsets = [3, 0], sizes = [1, 14], strides = [1, 1]} : vector<8x14xf32> to vector<1x14xf32>
    %c3 = arith.constant 3 : index
    %c0_91 = arith.constant 0 : index
    %c0_92 = arith.constant 0 : index
    %108 = vector.load %arg9[%c3, %c0_91, %c0_92] : memref<8x14x32xf32, #tpu.memory_space<vmem>>, vector<1x14x32xf32>
    %109 = vector.shape_cast %108 : vector<1x14x32xf32> to vector<14x32xf32>
    %cst_93 = arith.constant dense<0.000000e+00> : vector<1x32xf32>
    %110 = tpu.matmul %107, %109, %cst_93 {dimension_numbers = #tpu.dot_dimension_numbers<[1], [0], [0], [1], [0, 0, 1, 1], [], []>} : vector<1x14xf32>, vector<14x32xf32>, vector<1x32xf32> -> vector<1x32xf32>
    %111 = arith.addf %106, %110 : vector<1x32xf32>
    %112 = vector.extract_strided_slice %90 {offsets = [4, 0], sizes = [1, 14], strides = [1, 1]} : vector<8x14xf32> to vector<1x14xf32>
    %c4 = arith.constant 4 : index
    %c0_94 = arith.constant 0 : index
    %c0_95 = arith.constant 0 : index
    %113 = vector.load %arg9[%c4, %c0_94, %c0_95] : memref<8x14x32xf32, #tpu.memory_space<vmem>>, vector<1x14x32xf32>
    %114 = vector.shape_cast %113 : vector<1x14x32xf32> to vector<14x32xf32>
    %cst_96 = arith.constant dense<0.000000e+00> : vector<1x32xf32>
    %115 = tpu.matmul %112, %114, %cst_96 {dimension_numbers = #tpu.dot_dimension_numbers<[1], [0], [0], [1], [0, 0, 1, 1], [], []>} : vector<1x14xf32>, vector<14x32xf32>, vector<1x32xf32> -> vector<1x32xf32>
    %116 = arith.addf %111, %115 : vector<1x32xf32>
    %117 = vector.extract_strided_slice %90 {offsets = [5, 0], sizes = [1, 14], strides = [1, 1]} : vector<8x14xf32> to vector<1x14xf32>
    %c5 = arith.constant 5 : index
    %c0_97 = arith.constant 0 : index
    %c0_98 = arith.constant 0 : index
    %118 = vector.load %arg9[%c5, %c0_97, %c0_98] : memref<8x14x32xf32, #tpu.memory_space<vmem>>, vector<1x14x32xf32>
    %119 = vector.shape_cast %118 : vector<1x14x32xf32> to vector<14x32xf32>
    %cst_99 = arith.constant dense<0.000000e+00> : vector<1x32xf32>
    %120 = tpu.matmul %117, %119, %cst_99 {dimension_numbers = #tpu.dot_dimension_numbers<[1], [0], [0], [1], [0, 0, 1, 1], [], []>} : vector<1x14xf32>, vector<14x32xf32>, vector<1x32xf32> -> vector<1x32xf32>
    %121 = arith.addf %116, %120 : vector<1x32xf32>
    %122 = vector.extract_strided_slice %90 {offsets = [6, 0], sizes = [1, 14], strides = [1, 1]} : vector<8x14xf32> to vector<1x14xf32>
    %c6 = arith.constant 6 : index
    %c0_100 = arith.constant 0 : index
    %c0_101 = arith.constant 0 : index
    %123 = vector.load %arg9[%c6, %c0_100, %c0_101] : memref<8x14x32xf32, #tpu.memory_space<vmem>>, vector<1x14x32xf32>
    %124 = vector.shape_cast %123 : vector<1x14x32xf32> to vector<14x32xf32>
    %cst_102 = arith.constant dense<0.000000e+00> : vector<1x32xf32>
    %125 = tpu.matmul %122, %124, %cst_102 {dimension_numbers = #tpu.dot_dimension_numbers<[1], [0], [0], [1], [0, 0, 1, 1], [], []>} : vector<1x14xf32>, vector<14x32xf32>, vector<1x32xf32> -> vector<1x32xf32>
    %126 = arith.addf %121, %125 : vector<1x32xf32>
    %127 = vector.extract_strided_slice %90 {offsets = [7, 0], sizes = [1, 14], strides = [1, 1]} : vector<8x14xf32> to vector<1x14xf32>
    %c7 = arith.constant 7 : index
    %c0_103 = arith.constant 0 : index
    %c0_104 = arith.constant 0 : index
    %128 = vector.load %arg9[%c7, %c0_103, %c0_104] : memref<8x14x32xf32, #tpu.memory_space<vmem>>, vector<1x14x32xf32>
    %129 = vector.shape_cast %128 : vector<1x14x32xf32> to vector<14x32xf32>
    %cst_105 = arith.constant dense<0.000000e+00> : vector<1x32xf32>
    %130 = tpu.matmul %127, %129, %cst_105 {dimension_numbers = #tpu.dot_dimension_numbers<[1], [0], [0], [1], [0, 0, 1, 1], [], []>} : vector<1x14xf32>, vector<14x32xf32>, vector<1x32xf32> -> vector<1x32xf32>
    %131 = arith.addf %126, %130 : vector<1x32xf32>
    %cst_106 = arith.constant 0.000000e+00 : f32
    %132 = vector.broadcast %cst_106 : f32 to vector<1x32xf32>
    %133 = arith.maximumf %131, %132 : vector<1x32xf32>
    %c0_107 = arith.constant 0 : index
    %c0_108 = arith.constant 0 : index
    %134 = vector.load %arg11[%c0_107, %c0_108] : memref<32x5xf32, #tpu.memory_space<vmem>>, vector<32x5xf32>
    %cst_109 = arith.constant dense<0.000000e+00> : vector<1x5xf32>
    %135 = tpu.matmul %133, %134, %cst_109 {dimension_numbers = #tpu.dot_dimension_numbers<[1], [0], [0], [1], [0, 0, 1, 1], [], []>} : vector<1x32xf32>, vector<32x5xf32>, vector<1x5xf32> -> vector<1x5xf32>
    %c0_110 = arith.constant 0 : index
    %c0_111 = arith.constant 0 : index
    %136 = vector.load %arg12[%c0_110, %c0_111] : memref<1x5xf32, #tpu.memory_space<vmem>>, vector<1x5xf32>
    %137 = arith.addf %135, %136 : vector<1x5xf32>
    %cst_112 = arith.constant dense<0xFF800000> : vector<1xf32>
    %138 = vector.multi_reduction <maximumf>, %137, %cst_112 [1] : vector<1x5xf32> to vector<1xf32>
    %139 = vector.shape_cast %138 : vector<1xf32> to vector<1x1xf32>
    %140 = vector.broadcast %139 : vector<1x1xf32> to vector<1x5xf32>
    %141 = arith.subf %137, %140 : vector<1x5xf32>
    %142 = math.exp %141 : vector<1x5xf32>
    %cst_113 = arith.constant dense<0.000000e+00> : vector<1xf32>
    %143 = vector.multi_reduction <add>, %142, %cst_113 [1] : vector<1x5xf32> to vector<1xf32>
    %144 = vector.shape_cast %143 : vector<1xf32> to vector<1x1xf32>
    %145 = math.log %144 : vector<1x1xf32>
    %146 = vector.broadcast %145 : vector<1x1xf32> to vector<1x5xf32>
    %147 = arith.subf %141, %146 : vector<1x5xf32>
    %c0_114 = arith.constant 0 : index
    %c0_115 = arith.constant 0 : index
    %148 = vector.load %arg13[%c0_114, %c0_115] : memref<2x5xf32, #tpu.memory_space<vmem>>, vector<1x5xf32>
    tpu.vector_store %arg13[%c0_114, %c0_115], %147 {strides = array<i32>} : memref<2x5xf32, #tpu.memory_space<vmem>>, vector<1x5xf32>,
    %c1_116 = arith.constant 1 : index
    %c0_117 = arith.constant 0 : index
    %c0_118 = arith.constant 0 : index
    %149 = vector.load %arg1[%c1_116, %c0_117, %c0_118] : memref<2x4x16xf32, #tpu.memory_space<vmem>>, vector<1x4x16xf32>
    %150 = vector.shape_cast %149 : vector<1x4x16xf32> to vector<4x16xf32>
    %cst_119 = arith.constant 0.000000e+00 : f32
    %151 = vector.broadcast %cst_119 : f32 to vector<8x18xf32>
    %c0_120 = arith.constant 0 : index
    %c0_121 = arith.constant 0 : index
    %152 = vector.load %arg14[%c0_120, %c0_121] : memref<8x18xf32, #tpu.memory_space<vmem>>, vector<8x18xf32>
    tpu.vector_store %arg14[%c0_120, %c0_121], %151 {strides = array<i32>} : memref<8x18xf32, #tpu.memory_space<vmem>>, vector<8x18xf32>,
    %c0_122 = arith.constant 0 : index
    %c1_123 = arith.constant 1 : index
    %153 = vector.load %arg14[%c0_122, %c1_123] : memref<8x18xf32, #tpu.memory_space<vmem>>, vector<4x16xf32>
    tpu.vector_store %arg14[%c0_122, %c1_123], %150 {strides = array<i32>} : memref<8x18xf32, #tpu.memory_space<vmem>>, vector<4x16xf32>,
    %c0_124 = arith.constant 0 : index
    %c0_125 = arith.constant 0 : index
    %154 = vector.load %arg14[%c0_124, %c0_125] : memref<8x18xf32, #tpu.memory_space<vmem>>, vector<4x18xf32>
    %c0_126 = arith.constant 0 : index
    %c0_127 = arith.constant 0 : index
    %155 = vector.load %arg3[%c0_126, %c0_127] : memref<8x1xf32, #tpu.memory_space<vmem>>, vector<8x1xf32>
    %c0_128 = arith.constant 0 : index
    %c0_129 = arith.constant 0 : index
    %c0_130 = arith.constant 0 : index
    %156 = vector.load %arg2[%c0_128, %c0_129, %c0_130] : memref<3x8x4xf32, #tpu.memory_space<vmem>>, vector<1x8x4xf32>
    %157 = vector.shape_cast %156 : vector<1x8x4xf32> to vector<8x4xf32>
    %158 = vector.extract_strided_slice %154 {offsets = [0, 0], sizes = [4, 16], strides = [1, 1]} : vector<4x18xf32> to vector<4x16xf32>
    %cst_131 = arith.constant dense<0.000000e+00> : vector<8x16xf32>
    %159 = tpu.matmul %157, %158, %cst_131 {dimension_numbers = #tpu.dot_dimension_numbers<[1], [0], [0], [1], [0, 0, 1, 1], [], []>} : vector<8x4xf32>, vector<4x16xf32>, vector<8x16xf32> -> vector<8x16xf32>
    %160 = vector.broadcast %155 : vector<8x1xf32> to vector<8x16xf32>
    %161 = arith.addf %160, %159 : vector<8x16xf32>
    %c1_132 = arith.constant 1 : index
    %c0_133 = arith.constant 0 : index
    %c0_134 = arith.constant 0 : index
    %162 = vector.load %arg2[%c1_132, %c0_133, %c0_134] : memref<3x8x4xf32, #tpu.memory_space<vmem>>, vector<1x8x4xf32>
    %163 = vector.shape_cast %162 : vector<1x8x4xf32> to vector<8x4xf32>
    %164 = vector.extract_strided_slice %154 {offsets = [0, 1], sizes = [4, 16], strides = [1, 1]} : vector<4x18xf32> to vector<4x16xf32>
    %cst_135 = arith.constant dense<0.000000e+00> : vector<8x16xf32>
    %165 = tpu.matmul %163, %164, %cst_135 {dimension_numbers = #tpu.dot_dimension_numbers<[1], [0], [0], [1], [0, 0, 1, 1], [], []>} : vector<8x4xf32>, vector<4x16xf32>, vector<8x16xf32> -> vector<8x16xf32>
    %166 = arith.addf %161, %165 : vector<8x16xf32>
    %c2_136 = arith.constant 2 : index
    %c0_137 = arith.constant 0 : index
    %c0_138 = arith.constant 0 : index
    %167 = vector.load %arg2[%c2_136, %c0_137, %c0_138] : memref<3x8x4xf32, #tpu.memory_space<vmem>>, vector<1x8x4xf32>
    %168 = vector.shape_cast %167 : vector<1x8x4xf32> to vector<8x4xf32>
    %169 = vector.extract_strided_slice %154 {offsets = [0, 2], sizes = [4, 16], strides = [1, 1]} : vector<4x18xf32> to vector<4x16xf32>
    %cst_139 = arith.constant dense<0.000000e+00> : vector<8x16xf32>
    %170 = tpu.matmul %168, %169, %cst_139 {dimension_numbers = #tpu.dot_dimension_numbers<[1], [0], [0], [1], [0, 0, 1, 1], [], []>} : vector<8x4xf32>, vector<4x16xf32>, vector<8x16xf32> -> vector<8x16xf32>
    %171 = arith.addf %166, %170 : vector<8x16xf32>
    %cst_140 = arith.constant 0.000000e+00 : f32
    %172 = vector.broadcast %cst_140 : f32 to vector<8x16xf32>
    %173 = arith.maximumf %171, %172 : vector<8x16xf32>
    %c0_141 = arith.constant 0 : index
    %c0_142 = arith.constant 0 : index
    %174 = vector.load %arg5[%c0_141, %c0_142] : memref<8x1xf32, #tpu.memory_space<vmem>>, vector<8x1xf32>
    %c0_143 = arith.constant 0 : index
    %c0_144 = arith.constant 0 : index
    %c0_145 = arith.constant 0 : index
    %175 = vector.load %arg4[%c0_143, %c0_144, %c0_145] : memref<3x8x8xf32, #tpu.memory_space<vmem>>, vector<1x8x8xf32>
    %176 = vector.shape_cast %175 : vector<1x8x8xf32> to vector<8x8xf32>
    %177 = vector.extract_strided_slice %173 {offsets = [0, 0], sizes = [8, 14], strides = [1, 1]} : vector<8x16xf32> to vector<8x14xf32>
    %cst_146 = arith.constant dense<0.000000e+00> : vector<8x14xf32>
    %178 = tpu.matmul %176, %177, %cst_146 {dimension_numbers = #tpu.dot_dimension_numbers<[1], [0], [0], [1], [0, 0, 1, 1], [], []>} : vector<8x8xf32>, vector<8x14xf32>, vector<8x14xf32> -> vector<8x14xf32>
    %179 = vector.broadcast %174 : vector<8x1xf32> to vector<8x14xf32>
    %180 = arith.addf %179, %178 : vector<8x14xf32>
    %c1_147 = arith.constant 1 : index
    %c0_148 = arith.constant 0 : index
    %c0_149 = arith.constant 0 : index
    %181 = vector.load %arg4[%c1_147, %c0_148, %c0_149] : memref<3x8x8xf32, #tpu.memory_space<vmem>>, vector<1x8x8xf32>
    %182 = vector.shape_cast %181 : vector<1x8x8xf32> to vector<8x8xf32>
    %183 = vector.extract_strided_slice %173 {offsets = [0, 1], sizes = [8, 14], strides = [1, 1]} : vector<8x16xf32> to vector<8x14xf32>
    %cst_150 = arith.constant dense<0.000000e+00> : vector<8x14xf32>
    %184 = tpu.matmul %182, %183, %cst_150 {dimension_numbers = #tpu.dot_dimension_numbers<[1], [0], [0], [1], [0, 0, 1, 1], [], []>} : vector<8x8xf32>, vector<8x14xf32>, vector<8x14xf32> -> vector<8x14xf32>
    %185 = arith.addf %180, %184 : vector<8x14xf32>
    %c2_151 = arith.constant 2 : index
    %c0_152 = arith.constant 0 : index
    %c0_153 = arith.constant 0 : index
    %186 = vector.load %arg4[%c2_151, %c0_152, %c0_153] : memref<3x8x8xf32, #tpu.memory_space<vmem>>, vector<1x8x8xf32>
    %187 = vector.shape_cast %186 : vector<1x8x8xf32> to vector<8x8xf32>
    %188 = vector.extract_strided_slice %173 {offsets = [0, 2], sizes = [8, 14], strides = [1, 1]} : vector<8x16xf32> to vector<8x14xf32>
    %cst_154 = arith.constant dense<0.000000e+00> : vector<8x14xf32>
    %189 = tpu.matmul %187, %188, %cst_154 {dimension_numbers = #tpu.dot_dimension_numbers<[1], [0], [0], [1], [0, 0, 1, 1], [], []>} : vector<8x8xf32>, vector<8x14xf32>, vector<8x14xf32> -> vector<8x14xf32>
    %190 = arith.addf %185, %189 : vector<8x14xf32>
    %cst_155 = arith.constant 0.000000e+00 : f32
    %191 = vector.broadcast %cst_155 : f32 to vector<8x14xf32>
    %192 = arith.maximumf %190, %191 : vector<8x14xf32>
    %193 = vector.extract_strided_slice %173 {offsets = [0, 0], sizes = [8, 14], strides = [1, 1]} : vector<8x16xf32> to vector<8x14xf32>
    %194 = vector.extract_strided_slice %173 {offsets = [0, 1], sizes = [8, 14], strides = [1, 1]} : vector<8x16xf32> to vector<8x14xf32>
    %195 = arith.maximumf %193, %194 : vector<8x14xf32>
    %196 = vector.extract_strided_slice %173 {offsets = [0, 2], sizes = [8, 14], strides = [1, 1]} : vector<8x16xf32> to vector<8x14xf32>
    %197 = arith.maximumf %195, %196 : vector<8x14xf32>
    %cst_156 = arith.constant 0.000000e+00 : f32
    %198 = vector.broadcast %cst_156 : f32 to vector<8x18xf32>
    %c0_157 = arith.constant 0 : index
    %c0_158 = arith.constant 0 : index
    %199 = vector.load %arg14[%c0_157, %c0_158] : memref<8x18xf32, #tpu.memory_space<vmem>>, vector<8x18xf32>
    tpu.vector_store %arg14[%c0_157, %c0_158], %198 {strides = array<i32>} : memref<8x18xf32, #tpu.memory_space<vmem>>, vector<8x18xf32>,
    %c0_159 = arith.constant 0 : index
    %c1_160 = arith.constant 1 : index
    %200 = vector.load %arg14[%c0_159, %c1_160] : memref<8x18xf32, #tpu.memory_space<vmem>>, vector<8x14xf32>
    tpu.vector_store %arg14[%c0_159, %c1_160], %192 {strides = array<i32>} : memref<8x18xf32, #tpu.memory_space<vmem>>, vector<8x14xf32>,
    %c0_161 = arith.constant 0 : index
    %c0_162 = arith.constant 0 : index
    %201 = vector.load %arg14[%c0_161, %c0_162] : memref<8x18xf32, #tpu.memory_space<vmem>>, vector<8x16xf32>
    %c0_163 = arith.constant 0 : index
    %c0_164 = arith.constant 0 : index
    %202 = vector.load %arg8[%c0_163, %c0_164] : memref<8x1xf32, #tpu.memory_space<vmem>>, vector<8x1xf32>
    %c0_165 = arith.constant 0 : index
    %c0_166 = arith.constant 0 : index
    %c0_167 = arith.constant 0 : index
    %203 = vector.load %arg6[%c0_165, %c0_166, %c0_167] : memref<3x8x8xf32, #tpu.memory_space<vmem>>, vector<1x8x8xf32>
    %204 = vector.shape_cast %203 : vector<1x8x8xf32> to vector<8x8xf32>
    %205 = vector.extract_strided_slice %201 {offsets = [0, 0], sizes = [8, 14], strides = [1, 1]} : vector<8x16xf32> to vector<8x14xf32>
    %cst_168 = arith.constant dense<0.000000e+00> : vector<8x14xf32>
    %206 = tpu.matmul %204, %205, %cst_168 {dimension_numbers = #tpu.dot_dimension_numbers<[1], [0], [0], [1], [0, 0, 1, 1], [], []>} : vector<8x8xf32>, vector<8x14xf32>, vector<8x14xf32> -> vector<8x14xf32>
    %207 = vector.broadcast %202 : vector<8x1xf32> to vector<8x14xf32>
    %208 = arith.addf %207, %206 : vector<8x14xf32>
    %c1_169 = arith.constant 1 : index
    %c0_170 = arith.constant 0 : index
    %c0_171 = arith.constant 0 : index
    %209 = vector.load %arg6[%c1_169, %c0_170, %c0_171] : memref<3x8x8xf32, #tpu.memory_space<vmem>>, vector<1x8x8xf32>
    %210 = vector.shape_cast %209 : vector<1x8x8xf32> to vector<8x8xf32>
    %211 = vector.extract_strided_slice %201 {offsets = [0, 1], sizes = [8, 14], strides = [1, 1]} : vector<8x16xf32> to vector<8x14xf32>
    %cst_172 = arith.constant dense<0.000000e+00> : vector<8x14xf32>
    %212 = tpu.matmul %210, %211, %cst_172 {dimension_numbers = #tpu.dot_dimension_numbers<[1], [0], [0], [1], [0, 0, 1, 1], [], []>} : vector<8x8xf32>, vector<8x14xf32>, vector<8x14xf32> -> vector<8x14xf32>
    %213 = arith.addf %208, %212 : vector<8x14xf32>
    %c2_173 = arith.constant 2 : index
    %c0_174 = arith.constant 0 : index
    %c0_175 = arith.constant 0 : index
    %214 = vector.load %arg6[%c2_173, %c0_174, %c0_175] : memref<3x8x8xf32, #tpu.memory_space<vmem>>, vector<1x8x8xf32>
    %215 = vector.shape_cast %214 : vector<1x8x8xf32> to vector<8x8xf32>
    %216 = vector.extract_strided_slice %201 {offsets = [0, 2], sizes = [8, 14], strides = [1, 1]} : vector<8x16xf32> to vector<8x14xf32>
    %cst_176 = arith.constant dense<0.000000e+00> : vector<8x14xf32>
    %217 = tpu.matmul %215, %216, %cst_176 {dimension_numbers = #tpu.dot_dimension_numbers<[1], [0], [0], [1], [0, 0, 1, 1], [], []>} : vector<8x8xf32>, vector<8x14xf32>, vector<8x14xf32> -> vector<8x14xf32>
    %218 = arith.addf %213, %217 : vector<8x14xf32>
    %cst_177 = arith.constant 0.000000e+00 : f32
    %219 = vector.broadcast %cst_177 : f32 to vector<8x18xf32>
    %c0_178 = arith.constant 0 : index
    %c0_179 = arith.constant 0 : index
    %220 = vector.load %arg14[%c0_178, %c0_179] : memref<8x18xf32, #tpu.memory_space<vmem>>, vector<8x18xf32>
    tpu.vector_store %arg14[%c0_178, %c0_179], %219 {strides = array<i32>} : memref<8x18xf32, #tpu.memory_space<vmem>>, vector<8x18xf32>,
    %c0_180 = arith.constant 0 : index
    %c1_181 = arith.constant 1 : index
    %221 = vector.load %arg14[%c0_180, %c1_181] : memref<8x18xf32, #tpu.memory_space<vmem>>, vector<8x14xf32>
    tpu.vector_store %arg14[%c0_180, %c1_181], %197 {strides = array<i32>} : memref<8x18xf32, #tpu.memory_space<vmem>>, vector<8x14xf32>,
    %c0_182 = arith.constant 0 : index
    %c0_183 = arith.constant 0 : index
    %222 = vector.load %arg14[%c0_182, %c0_183] : memref<8x18xf32, #tpu.memory_space<vmem>>, vector<8x16xf32>
    %c0_184 = arith.constant 0 : index
    %c0_185 = arith.constant 0 : index
    %c0_186 = arith.constant 0 : index
    %223 = vector.load %arg7[%c0_184, %c0_185, %c0_186] : memref<3x8x8xf32, #tpu.memory_space<vmem>>, vector<1x8x8xf32>
    %224 = vector.shape_cast %223 : vector<1x8x8xf32> to vector<8x8xf32>
    %225 = vector.extract_strided_slice %222 {offsets = [0, 0], sizes = [8, 14], strides = [1, 1]} : vector<8x16xf32> to vector<8x14xf32>
    %cst_187 = arith.constant dense<0.000000e+00> : vector<8x14xf32>
    %226 = tpu.matmul %224, %225, %cst_187 {dimension_numbers = #tpu.dot_dimension_numbers<[1], [0], [0], [1], [0, 0, 1, 1], [], []>} : vector<8x8xf32>, vector<8x14xf32>, vector<8x14xf32> -> vector<8x14xf32>
    %227 = arith.addf %218, %226 : vector<8x14xf32>
    %c1_188 = arith.constant 1 : index
    %c0_189 = arith.constant 0 : index
    %c0_190 = arith.constant 0 : index
    %228 = vector.load %arg7[%c1_188, %c0_189, %c0_190] : memref<3x8x8xf32, #tpu.memory_space<vmem>>, vector<1x8x8xf32>
    %229 = vector.shape_cast %228 : vector<1x8x8xf32> to vector<8x8xf32>
    %230 = vector.extract_strided_slice %222 {offsets = [0, 1], sizes = [8, 14], strides = [1, 1]} : vector<8x16xf32> to vector<8x14xf32>
    %cst_191 = arith.constant dense<0.000000e+00> : vector<8x14xf32>
    %231 = tpu.matmul %229, %230, %cst_191 {dimension_numbers = #tpu.dot_dimension_numbers<[1], [0], [0], [1], [0, 0, 1, 1], [], []>} : vector<8x8xf32>, vector<8x14xf32>, vector<8x14xf32> -> vector<8x14xf32>
    %232 = arith.addf %227, %231 : vector<8x14xf32>
    %c2_192 = arith.constant 2 : index
    %c0_193 = arith.constant 0 : index
    %c0_194 = arith.constant 0 : index
    %233 = vector.load %arg7[%c2_192, %c0_193, %c0_194] : memref<3x8x8xf32, #tpu.memory_space<vmem>>, vector<1x8x8xf32>
    %234 = vector.shape_cast %233 : vector<1x8x8xf32> to vector<8x8xf32>
    %235 = vector.extract_strided_slice %222 {offsets = [0, 2], sizes = [8, 14], strides = [1, 1]} : vector<8x16xf32> to vector<8x14xf32>
    %cst_195 = arith.constant dense<0.000000e+00> : vector<8x14xf32>
    %236 = tpu.matmul %234, %235, %cst_195 {dimension_numbers = #tpu.dot_dimension_numbers<[1], [0], [0], [1], [0, 0, 1, 1], [], []>} : vector<8x8xf32>, vector<8x14xf32>, vector<8x14xf32> -> vector<8x14xf32>
    %237 = arith.addf %232, %236 : vector<8x14xf32>
    %cst_196 = arith.constant 0.000000e+00 : f32
    %238 = vector.broadcast %cst_196 : f32 to vector<8x14xf32>
    %239 = arith.maximumf %237, %238 : vector<8x14xf32>
    %c0_197 = arith.constant 0 : index
    %c0_198 = arith.constant 0 : index
    %240 = vector.load %arg10[%c0_197, %c0_198] : memref<1x32xf32, #tpu.memory_space<vmem>>, vector<1x32xf32>
    %241 = vector.extract_strided_slice %239 {offsets = [0, 0], sizes = [1, 14], strides = [1, 1]} : vector<8x14xf32> to vector<1x14xf32>
    %c0_199 = arith.constant 0 : index
    %c0_200 = arith.constant 0 : index
    %c0_201 = arith.constant 0 : index
    %242 = vector.load %arg9[%c0_199, %c0_200, %c0_201] : memref<8x14x32xf32, #tpu.memory_space<vmem>>, vector<1x14x32xf32>
    %243 = vector.shape_cast %242 : vector<1x14x32xf32> to vector<14x32xf32>
    %cst_202 = arith.constant dense<0.000000e+00> : vector<1x32xf32>
    %244 = tpu.matmul %241, %243, %cst_202 {dimension_numbers = #tpu.dot_dimension_numbers<[1], [0], [0], [1], [0, 0, 1, 1], [], []>} : vector<1x14xf32>, vector<14x32xf32>, vector<1x32xf32> -> vector<1x32xf32>
    %245 = arith.addf %240, %244 : vector<1x32xf32>
    %246 = vector.extract_strided_slice %239 {offsets = [1, 0], sizes = [1, 14], strides = [1, 1]} : vector<8x14xf32> to vector<1x14xf32>
    %c1_203 = arith.constant 1 : index
    %c0_204 = arith.constant 0 : index
    %c0_205 = arith.constant 0 : index
    %247 = vector.load %arg9[%c1_203, %c0_204, %c0_205] : memref<8x14x32xf32, #tpu.memory_space<vmem>>, vector<1x14x32xf32>
    %248 = vector.shape_cast %247 : vector<1x14x32xf32> to vector<14x32xf32>
    %cst_206 = arith.constant dense<0.000000e+00> : vector<1x32xf32>
    %249 = tpu.matmul %246, %248, %cst_206 {dimension_numbers = #tpu.dot_dimension_numbers<[1], [0], [0], [1], [0, 0, 1, 1], [], []>} : vector<1x14xf32>, vector<14x32xf32>, vector<1x32xf32> -> vector<1x32xf32>
    %250 = arith.addf %245, %249 : vector<1x32xf32>
    %251 = vector.extract_strided_slice %239 {offsets = [2, 0], sizes = [1, 14], strides = [1, 1]} : vector<8x14xf32> to vector<1x14xf32>
    %c2_207 = arith.constant 2 : index
    %c0_208 = arith.constant 0 : index
    %c0_209 = arith.constant 0 : index
    %252 = vector.load %arg9[%c2_207, %c0_208, %c0_209] : memref<8x14x32xf32, #tpu.memory_space<vmem>>, vector<1x14x32xf32>
    %253 = vector.shape_cast %252 : vector<1x14x32xf32> to vector<14x32xf32>
    %cst_210 = arith.constant dense<0.000000e+00> : vector<1x32xf32>
    %254 = tpu.matmul %251, %253, %cst_210 {dimension_numbers = #tpu.dot_dimension_numbers<[1], [0], [0], [1], [0, 0, 1, 1], [], []>} : vector<1x14xf32>, vector<14x32xf32>, vector<1x32xf32> -> vector<1x32xf32>
    %255 = arith.addf %250, %254 : vector<1x32xf32>
    %256 = vector.extract_strided_slice %239 {offsets = [3, 0], sizes = [1, 14], strides = [1, 1]} : vector<8x14xf32> to vector<1x14xf32>
    %c3_211 = arith.constant 3 : index
    %c0_212 = arith.constant 0 : index
    %c0_213 = arith.constant 0 : index
    %257 = vector.load %arg9[%c3_211, %c0_212, %c0_213] : memref<8x14x32xf32, #tpu.memory_space<vmem>>, vector<1x14x32xf32>
    %258 = vector.shape_cast %257 : vector<1x14x32xf32> to vector<14x32xf32>
    %cst_214 = arith.constant dense<0.000000e+00> : vector<1x32xf32>
    %259 = tpu.matmul %256, %258, %cst_214 {dimension_numbers = #tpu.dot_dimension_numbers<[1], [0], [0], [1], [0, 0, 1, 1], [], []>} : vector<1x14xf32>, vector<14x32xf32>, vector<1x32xf32> -> vector<1x32xf32>
    %260 = arith.addf %255, %259 : vector<1x32xf32>
    %261 = vector.extract_strided_slice %239 {offsets = [4, 0], sizes = [1, 14], strides = [1, 1]} : vector<8x14xf32> to vector<1x14xf32>
    %c4_215 = arith.constant 4 : index
    %c0_216 = arith.constant 0 : index
    %c0_217 = arith.constant 0 : index
    %262 = vector.load %arg9[%c4_215, %c0_216, %c0_217] : memref<8x14x32xf32, #tpu.memory_space<vmem>>, vector<1x14x32xf32>
    %263 = vector.shape_cast %262 : vector<1x14x32xf32> to vector<14x32xf32>
    %cst_218 = arith.constant dense<0.000000e+00> : vector<1x32xf32>
    %264 = tpu.matmul %261, %263, %cst_218 {dimension_numbers = #tpu.dot_dimension_numbers<[1], [0], [0], [1], [0, 0, 1, 1], [], []>} : vector<1x14xf32>, vector<14x32xf32>, vector<1x32xf32> -> vector<1x32xf32>
    %265 = arith.addf %260, %264 : vector<1x32xf32>
    %266 = vector.extract_strided_slice %239 {offsets = [5, 0], sizes = [1, 14], strides = [1, 1]} : vector<8x14xf32> to vector<1x14xf32>
    %c5_219 = arith.constant 5 : index
    %c0_220 = arith.constant 0 : index
    %c0_221 = arith.constant 0 : index
    %267 = vector.load %arg9[%c5_219, %c0_220, %c0_221] : memref<8x14x32xf32, #tpu.memory_space<vmem>>, vector<1x14x32xf32>
    %268 = vector.shape_cast %267 : vector<1x14x32xf32> to vector<14x32xf32>
    %cst_222 = arith.constant dense<0.000000e+00> : vector<1x32xf32>
    %269 = tpu.matmul %266, %268, %cst_222 {dimension_numbers = #tpu.dot_dimension_numbers<[1], [0], [0], [1], [0, 0, 1, 1], [], []>} : vector<1x14xf32>, vector<14x32xf32>, vector<1x32xf32> -> vector<1x32xf32>
    %270 = arith.addf %265, %269 : vector<1x32xf32>
    %271 = vector.extract_strided_slice %239 {offsets = [6, 0], sizes = [1, 14], strides = [1, 1]} : vector<8x14xf32> to vector<1x14xf32>
    %c6_223 = arith.constant 6 : index
    %c0_224 = arith.constant 0 : index
    %c0_225 = arith.constant 0 : index
    %272 = vector.load %arg9[%c6_223, %c0_224, %c0_225] : memref<8x14x32xf32, #tpu.memory_space<vmem>>, vector<1x14x32xf32>
    %273 = vector.shape_cast %272 : vector<1x14x32xf32> to vector<14x32xf32>
    %cst_226 = arith.constant dense<0.000000e+00> : vector<1x32xf32>
    %274 = tpu.matmul %271, %273, %cst_226 {dimension_numbers = #tpu.dot_dimension_numbers<[1], [0], [0], [1], [0, 0, 1, 1], [], []>} : vector<1x14xf32>, vector<14x32xf32>, vector<1x32xf32> -> vector<1x32xf32>
    %275 = arith.addf %270, %274 : vector<1x32xf32>
    %276 = vector.extract_strided_slice %239 {offsets = [7, 0], sizes = [1, 14], strides = [1, 1]} : vector<8x14xf32> to vector<1x14xf32>
    %c7_227 = arith.constant 7 : index
    %c0_228 = arith.constant 0 : index
    %c0_229 = arith.constant 0 : index
    %277 = vector.load %arg9[%c7_227, %c0_228, %c0_229] : memref<8x14x32xf32, #tpu.memory_space<vmem>>, vector<1x14x32xf32>
    %278 = vector.shape_cast %277 : vector<1x14x32xf32> to vector<14x32xf32>
    %cst_230 = arith.constant dense<0.000000e+00> : vector<1x32xf32>
    %279 = tpu.matmul %276, %278, %cst_230 {dimension_numbers = #tpu.dot_dimension_numbers<[1], [0], [0], [1], [0, 0, 1, 1], [], []>} : vector<1x14xf32>, vector<14x32xf32>, vector<1x32xf32> -> vector<1x32xf32>
    %280 = arith.addf %275, %279 : vector<1x32xf32>
    %cst_231 = arith.constant 0.000000e+00 : f32
    %281 = vector.broadcast %cst_231 : f32 to vector<1x32xf32>
    %282 = arith.maximumf %280, %281 : vector<1x32xf32>
    %c0_232 = arith.constant 0 : index
    %c0_233 = arith.constant 0 : index
    %283 = vector.load %arg11[%c0_232, %c0_233] : memref<32x5xf32, #tpu.memory_space<vmem>>, vector<32x5xf32>
    %cst_234 = arith.constant dense<0.000000e+00> : vector<1x5xf32>
    %284 = tpu.matmul %282, %283, %cst_234 {dimension_numbers = #tpu.dot_dimension_numbers<[1], [0], [0], [1], [0, 0, 1, 1], [], []>} : vector<1x32xf32>, vector<32x5xf32>, vector<1x5xf32> -> vector<1x5xf32>
    %c0_235 = arith.constant 0 : index
    %c0_236 = arith.constant 0 : index
    %285 = vector.load %arg12[%c0_235, %c0_236] : memref<1x5xf32, #tpu.memory_space<vmem>>, vector<1x5xf32>
    %286 = arith.addf %284, %285 : vector<1x5xf32>
    %cst_237 = arith.constant dense<0xFF800000> : vector<1xf32>
    %287 = vector.multi_reduction <maximumf>, %286, %cst_237 [1] : vector<1x5xf32> to vector<1xf32>
    %288 = vector.shape_cast %287 : vector<1xf32> to vector<1x1xf32>
    %289 = vector.broadcast %288 : vector<1x1xf32> to vector<1x5xf32>
    %290 = arith.subf %286, %289 : vector<1x5xf32>
    %291 = math.exp %290 : vector<1x5xf32>
    %cst_238 = arith.constant dense<0.000000e+00> : vector<1xf32>
    %292 = vector.multi_reduction <add>, %291, %cst_238 [1] : vector<1x5xf32> to vector<1xf32>
    %293 = vector.shape_cast %292 : vector<1xf32> to vector<1x1xf32>
    %294 = math.log %293 : vector<1x1xf32>
    %295 = vector.broadcast %294 : vector<1x1xf32> to vector<1x5xf32>
    %296 = arith.subf %290, %295 : vector<1x5xf32>
    %c1_239 = arith.constant 1 : index
    %c0_240 = arith.constant 0 : index
    %297 = vector.load %arg13[%c1_239, %c0_240] : memref<2x5xf32, #tpu.memory_space<vmem>>, vector<1x5xf32>
    tpu.vector_store %arg13[%c1_239, %c0_240], %296 {strides = array<i32>} : memref<2x5xf32, #tpu.memory_space<vmem>>, vector<1x5xf32>,
    return
  }
  func.func @transform_0(%arg0: i32) -> (i32, i32, i32) {
    %c0_i32 = arith.constant 0 : i32
    %c0_i32_0 = arith.constant 0 : i32
    %c0_i32_1 = arith.constant 0 : i32
    %c0_i32_2 = arith.constant 0 : i32
    return %c0_i32, %c0_i32_0, %c0_i32_1 : i32, i32, i32
  }
  func.func @transform_1(%arg0: i32) -> (i32, i32, i32) {
    %c0_i32 = arith.constant 0 : i32
    %c0_i32_0 = arith.constant 0 : i32
    %c0_i32_1 = arith.constant 0 : i32
    %c0_i32_2 = arith.constant 0 : i32
    return %c0_i32, %c0_i32_0, %c0_i32_1 : i32, i32, i32
  }
  func.func @transform_2(%arg0: i32) -> (i32, i32) {
    %c0_i32 = arith.constant 0 : i32
    %c0_i32_0 = arith.constant 0 : i32
    %c0_i32_1 = arith.constant 0 : i32
    return %c0_i32, %c0_i32_0 : i32, i32
  }
  func.func @transform_3(%arg0: i32) -> (i32, i32, i32) {
    %c0_i32 = arith.constant 0 : i32
    %c0_i32_0 = arith.constant 0 : i32
    %c0_i32_1 = arith.constant 0 : i32
    %c0_i32_2 = arith.constant 0 : i32
    return %c0_i32, %c0_i32_0, %c0_i32_1 : i32, i32, i32
  }
  func.func @transform_4(%arg0: i32) -> (i32, i32) {
    %c0_i32 = arith.constant 0 : i32
    %c0_i32_0 = arith.constant 0 : i32
    %c0_i32_1 = arith.constant 0 : i32
    return %c0_i32, %c0_i32_0 : i32, i32
  }
  func.func @transform_5(%arg0: i32) -> (i32, i32, i32) {
    %c0_i32 = arith.constant 0 : i32
    %c0_i32_0 = arith.constant 0 : i32
    %c0_i32_1 = arith.constant 0 : i32
    %c0_i32_2 = arith.constant 0 : i32
    return %c0_i32, %c0_i32_0, %c0_i32_1 : i32, i32, i32
  }
  func.func @transform_6(%arg0: i32) -> (i32, i32, i32) {
    %c0_i32 = arith.constant 0 : i32
    %c0_i32_0 = arith.constant 0 : i32
    %c0_i32_1 = arith.constant 0 : i32
    %c0_i32_2 = arith.constant 0 : i32
    return %c0_i32, %c0_i32_0, %c0_i32_1 : i32, i32, i32
  }
  func.func @transform_7(%arg0: i32) -> (i32, i32) {
    %c0_i32 = arith.constant 0 : i32
    %c0_i32_0 = arith.constant 0 : i32
    %c0_i32_1 = arith.constant 0 : i32
    return %c0_i32, %c0_i32_0 : i32, i32
  }
  func.func @transform_8(%arg0: i32) -> (i32, i32, i32) {
    %c0_i32 = arith.constant 0 : i32
    %c0_i32_0 = arith.constant 0 : i32
    %c0_i32_1 = arith.constant 0 : i32
    %c0_i32_2 = arith.constant 0 : i32
    return %c0_i32, %c0_i32_0, %c0_i32_1 : i32, i32, i32
  }
  func.func @transform_9(%arg0: i32) -> (i32, i32) {
    %c0_i32 = arith.constant 0 : i32
    %c0_i32_0 = arith.constant 0 : i32
    %c0_i32_1 = arith.constant 0 : i32
    return %c0_i32, %c0_i32_0 : i32, i32
  }
  func.func @transform_10(%arg0: i32) -> (i32, i32) {
    %c0_i32 = arith.constant 0 : i32
    %c0_i32_0 = arith.constant 0 : i32
    %c0_i32_1 = arith.constant 0 : i32
    return %c0_i32, %c0_i32_0 : i32, i32
  }
  func.func @transform_11(%arg0: i32) -> (i32, i32) {
    %c0_i32 = arith.constant 0 : i32
    %c0_i32_0 = arith.constant 0 : i32
    %c0_i32_1 = arith.constant 0 : i32
    return %c0_i32, %c0_i32_0 : i32, i32
  }
  func.func @transform_12(%arg0: i32) -> (i32, i32) {
    %c0_i32 = arith.constant 0 : i32
    %c0_i32_0 = arith.constant 0 : i32
    %c0_i32_1 = arith.constant 0 : i32
    return %c0_i32, %c0_i32_0 : i32, i32
  }
}

</mosaic_0001>

<llo_original>
// kernel: cnn_forward.1
$region0: #{cnn_forward.1}
  #allocation0 [shape = 'u32[]', space=smem, size = 0x4, offset = 0x4, fixed_abs, tag = 'smem constant byte address 0x4 - core index']
  #allocation1 [shape = 'u32[144,128]{1,0:T(1,128)}', space=vmem, size = 0x12000, scoped, tag = 'internal scratch']
  #allocation2 [shape = 'f32[8,18]{1,0:T(8,128)}', space=vmem, size = 0x1000, scoped, tag = 'scratch operand']
  %s0 = inlined_call_operand.vmem [shape: f32[2,4,16], index: 0, kind: input, shape index: {}]
  %s1 = inlined_call_operand.vmem [shape: f32[3,8,4], index: 1, kind: input, shape index: {}]
  %s2 = inlined_call_operand.vmem [shape: f32[8,1], index: 2, kind: input, shape index: {}]
  %s3 = inlined_call_operand.vmem [shape: f32[3,8,8], index: 3, kind: input, shape index: {}]
  %s4 = inlined_call_operand.vmem [shape: f32[8,1], index: 4, kind: input, shape index: {}]
  %s5 = inlined_call_operand.vmem [shape: f32[3,8,8], index: 5, kind: input, shape index: {}]
  %s6 = inlined_call_operand.vmem [shape: f32[3,8,8], index: 6, kind: input, shape index: {}]
  %s7 = inlined_call_operand.vmem [shape: f32[8,1], index: 7, kind: input, shape index: {}]
  %s8 = inlined_call_operand.vmem [shape: f32[8,14,32], index: 8, kind: input, shape index: {}]
  %s9 = inlined_call_operand.vmem [shape: f32[1,32], index: 9, kind: input, shape index: {}]
  %s10 = inlined_call_operand.vmem [shape: f32[32,5], index: 10, kind: input, shape index: {}]
  %s11 = inlined_call_operand.vmem [shape: f32[1,5], index: 11, kind: input, shape index: {}]
  %s12 = inlined_call_operand.hbm [shape: f32[2,5], index: 12, kind: output, shape index: {}]
  %s13 = sld [smem:[#allocation0]]
  $region58: #{cnn_forward.1} parent=0
    _
  %s15 = ssub.s32 1, %s13
  %s16 = scalar_select 0, %s15, %s13
  $region1: #{cnn_forward.1} parent=0
    #allocation3 [shape = 'u8[1024]{0}', space=vmem, size = 0x400, scoped, tag = 'output window, operand 0, single buffered']
    #allocation4 [shape = 's32[1]{0}', space=sflag, size = 0x4, scoped, tag = 'scoped memory for cnn_forward.1']
    %17 = vsyncpa [#allocation4], 0
    // Predicated region
    $region2: #{cnn_forward.1} parent=1 // pred_check
      _
    $region3: #{cnn_forward.1} parent=1 // pred_check_branch
      %19 = sbr.rel (0) target = $region5
    $region4: #{cnn_forward.1} parent=1 // pred_region
      _
    $region5: #{cnn_forward.1} parent=1 // pred_fallthru
      _
    // Predicated region
    $region6: #{cnn_forward.1} parent=1 // pred_check
      _
    $region7: #{cnn_forward.1} parent=1 // pred_check_branch
      %21 = sbr.rel (0) target = $region9
    $region8: #{cnn_forward.1} parent=1 // pred_region
      _
    $region9: #{cnn_forward.1} parent=1 // pred_fallthru
      _
    // Predicated region
    $region10: #{cnn_forward.1} parent=1 // pred_check
      _
    $region11: #{cnn_forward.1} parent=1 // pred_check_branch
      %23 = sbr.rel (0) target = $region13
    $region12: #{cnn_forward.1} parent=1 // pred_region
      _
    $region13: #{cnn_forward.1} parent=1 // pred_fallthru
      _
    // Predicated region
    $region14: #{cnn_forward.1} parent=1 // pred_check
      _
    $region15: #{cnn_forward.1} parent=1 // pred_check_branch
      %25 = sbr.rel (0) target = $region17
    $region16: #{cnn_forward.1} parent=1 // pred_region
      _
    $region17: #{cnn_forward.1} parent=1 // pred_fallthru
      _
    // Predicated region
    $region18: #{cnn_forward.1} parent=1 // pred_check
      _
    $region19: #{cnn_forward.1} parent=1 // pred_check_branch
      %27 = sbr.rel (0) target = $region21
    $region20: #{cnn_forward.1} parent=1 // pred_region
      _
    $region21: #{cnn_forward.1} parent=1 // pred_fallthru
      _
    // Predicated region
    $region22: #{cnn_forward.1} parent=1 // pred_check
      _
    $region23: #{cnn_forward.1} parent=1 // pred_check_branch
      %29 = sbr.rel (0) target = $region25
    $region24: #{cnn_forward.1} parent=1 // pred_region
      _
    $region25: #{cnn_forward.1} parent=1 // pred_fallthru
      _
    // Predicated region
    $region26: #{cnn_forward.1} parent=1 // pred_check
      _
    $region27: #{cnn_forward.1} parent=1 // pred_check_branch
      %31 = sbr.rel (0) target = $region29
    $region28: #{cnn_forward.1} parent=1 // pred_region
      _
    $region29: #{cnn_forward.1} parent=1 // pred_fallthru
      _
    // Predicated region
    $region30: #{cnn_forward.1} parent=1 // pred_check
      _
    $region31: #{cnn_forward.1} parent=1 // pred_check_branch
      %33 = sbr.rel (0) target = $region33
    $region32: #{cnn_forward.1} parent=1 // pred_region
      _
    $region33: #{cnn_forward.1} parent=1 // pred_fallthru
      _
    // Predicated region
    $region34: #{cnn_forward.1} parent=1 // pred_check
      _
    $region35: #{cnn_forward.1} parent=1 // pred_check_branch
      %35 = sbr.rel (0) target = $region37
    $region36: #{cnn_forward.1} parent=1 // pred_region
      _
    $region37: #{cnn_forward.1} parent=1 // pred_fallthru
      _
    // Predicated region
    $region38: #{cnn_forward.1} parent=1 // pred_check
      _
    $region39: #{cnn_forward.1} parent=1 // pred_check_branch
      %37 = sbr.rel (0) target = $region41
    $region40: #{cnn_forward.1} parent=1 // pred_region
      _
    $region41: #{cnn_forward.1} parent=1 // pred_fallthru
      _
    // Predicated region
    $region42: #{cnn_forward.1} parent=1 // pred_check
      _
    $region43: #{cnn_forward.1} parent=1 // pred_check_branch
      %39 = sbr.rel (0) target = $region45
    $region44: #{cnn_forward.1} parent=1 // pred_region
      _
    $region45: #{cnn_forward.1} parent=1 // pred_fallthru
      _
    // Predicated region
    $region46: #{cnn_forward.1} parent=1 // pred_check
      _
    $region47: #{cnn_forward.1} parent=1 // pred_check_branch
      %41 = sbr.rel (0) target = $region49
    $region48: #{cnn_forward.1} parent=1 // pred_region
      _
    $region49: #{cnn_forward.1} parent=1 // pred_fallthru
      _
    %v42 = vld [vmem:[%s0] sm:$0xf]
    %vm43 = vcmask 146432
    %44 = vst.msk [vmem:[#allocation2] sm:$0xff] %vm43, 0.0
    %46 = vrot.lane.b32.xlu0 %v42, 1
    %v47 = vpop.permute.xlu0 %46
    %vm49 = vcmask 134152
    %50 = vst.msk [vmem:[#allocation2] sm:$0xf] %vm49, %v47
    %v51 = vld [vmem:[#allocation2] sm:$0xf]
    %v52 = vld [vmem:[%s2] sm:$0xff]
    %v53 = vld [vmem:[%s1] sm:$0xff]
    %vm54 = vcmask 31744
    %v56 = vsel %vm54, %v53, 0
    %vm58 = vcmask 1043456
    %v60 = vsel %vm58, %v51, 0
    %62 = vmatprep.subr.mxu0 0.0
    %63 = vmatpush1.msra.mxu0 0.0
    %64 = vmatprep.subr.mxu0 0.0
    %65 = vmatpush1.msra.mxu0 0.0
    %66 = vmatprep.subr.mxu0 0.0
    %67 = vmatpush1.msra.mxu0 0.0
    %68 = vmatprep.subr.mxu0 0.0
    %69 = vmatpush1.msra.mxu0 0.0
    %70 = vmatprep.subr.mxu0 0.0
    %71 = vmatpush1.msra.mxu0 0.0
    %72 = vmatprep.subr.mxu0 0.0
    %73 = vmatpush1.msra.mxu0 0.0
    %74 = vmatprep.subr.mxu0 0.0
    %75 = vmatpush1.msra.mxu0 0.0
    %76 = vmatprep.subr.mxu0 0.0
    %77 = vmatpush1.msra.mxu0 0.0
    %78 = vmatprep.subr.mxu0 0.0
    %79 = vmatpush1.msra.mxu0 0.0
    %80 = vmatprep.subr.mxu0 0.0
    %81 = vmatpush1.msra.mxu0 0.0
    %82 = vmatprep.subr.mxu0 0.0
    %83 = vmatpush1.msra.mxu0 0.0
    %84 = vmatprep.subr.mxu0 0.0
    %85 = vmatpush1.msra.mxu0 0.0
    %86 = vmatprep.subr.mxu0 0.0
    %87 = vmatpush1.msra.mxu0 0.0
    %88 = vmatprep.subr.mxu0 0.0
    %89 = vmatpush1.msra.mxu0 0.0
    %90 = vmatprep.subr.mxu0 0.0
    %91 = vmatpush1.msra.mxu0 0.0
    %92 = vmatprep.subr.mxu0 0.0
    %93 = vmatpush1.msra.mxu0 %v60
    %94 = vmatprep.subr.mxu0 0.0
    %95 = vmatpush2.msra.mxu0 0.0
    %96 = vmatprep.subr.mxu0 0.0
    %97 = vmatpush2.msra.mxu0 0.0
    %98 = vmatprep.subr.mxu0 0.0
    %99 = vmatpush2.msra.mxu0 0.0
    %100 = vmatprep.subr.mxu0 0.0
    %101 = vmatpush2.msra.mxu0 0.0
    %102 = vmatprep.subr.mxu0 0.0
    %103 = vmatpush2.msra.mxu0 0.0
    %104 = vmatprep.subr.mxu0 0.0
    %105 = vmatpush2.msra.mxu0 0.0
    %106 = vmatprep.subr.mxu0 0.0
    %107 = vmatpush2.msra.mxu0 0.0
    %108 = vmatprep.subr.mxu0 0.0
    %109 = vmatpush2.msra.mxu0 0.0
    %110 = vmatprep.subr.mxu0 0.0
    %111 = vmatpush2.msra.mxu0 0.0
    %112 = vmatprep.subr.mxu0 0.0
    %113 = vmatpush2.msra.mxu0 0.0
    %114 = vmatprep.subr.mxu0 0.0
    %115 = vmatpush2.msra.mxu0 0.0
    %116 = vmatprep.subr.mxu0 0.0
    %117 = vmatpush2.msra.mxu0 0.0
    %118 = vmatprep.subr.mxu0 0.0
    %119 = vmatpush2.msra.mxu0 0.0
    %120 = vmatprep.subr.mxu0 0.0
    %121 = vmatpush2.msra.mxu0 0.0
    %122 = vmatprep.subr.mxu0 0.0
    %123 = vmatpush2.msra.mxu0 0.0
    %124 = vmatprep.subr.mxu0 0.0
    %125 = vmatpush2.msra.mxu0 0.0
    %126 = vmatprep.mubr.f32.mxu0 0.0
    %127 = vmatmul.mubr.f32.gmra.mxu0 %v56
    %v128 = vpop.f32.mrf.mxu0
    %v129 = vadd.f32 0.0, %v128
    %v130 = vpop.f32.mrf.mxu0
    %131 = vdwg.mxu0
    %133 = vset.pattern.permute.xlu0 0
    %134 = vperm.xlu0 %133, %v52
    %v135 = vpop.permute.xlu0 %134
    %v137 = vadd.f32 %v135, %v129
    %s138 = scalar_lea.vmem %s1, 8
    %v139 = vld [vmem:[%s138] sm:$0xff]
    %140 = vrot.lane.b32.xlu0 %v51, 127
    %v141 = vpop.permute.xlu0 %140
    %v143 = vsel %vm54, %v139, 0
    %v145 = vsel %vm58, %v141, 0
    %147 = vmatprep.subr.mxu0 0.0
    %148 = vmatpush1.msra.mxu0 0.0
    %149 = vmatprep.subr.mxu0 0.0
    %150 = vmatpush1.msra.mxu0 0.0
    %151 = vmatprep.subr.mxu0 0.0
    %152 = vmatpush1.msra.mxu0 0.0
    %153 = vmatprep.subr.mxu0 0.0
    %154 = vmatpush1.msra.mxu0 0.0
    %155 = vmatprep.subr.mxu0 0.0
    %156 = vmatpush1.msra.mxu0 0.0
    %157 = vmatprep.subr.mxu0 0.0
    %158 = vmatpush1.msra.mxu0 0.0
    %159 = vmatprep.subr.mxu0 0.0
    %160 = vmatpush1.msra.mxu0 0.0
    %161 = vmatprep.subr.mxu0 0.0
    %162 = vmatpush1.msra.mxu0 0.0
    %163 = vmatprep.subr.mxu0 0.0
    %164 = vmatpush1.msra.mxu0 0.0
    %165 = vmatprep.subr.mxu0 0.0
    %166 = vmatpush1.msra.mxu0 0.0
    %167 = vmatprep.subr.mxu0 0.0
    %168 = vmatpush1.msra.mxu0 0.0
    %169 = vmatprep.subr.mxu0 0.0
    %170 = vmatpush1.msra.mxu0 0.0
    %171 = vmatprep.subr.mxu0 0.0
    %172 = vmatpush1.msra.mxu0 0.0
    %173 = vmatprep.subr.mxu0 0.0
    %174 = vmatpush1.msra.mxu0 0.0
    %175 = vmatprep.subr.mxu0 0.0
    %176 = vmatpush1.msra.mxu0 0.0
    %177 = vmatprep.subr.mxu0 0.0
    %178 = vmatpush1.msra.mxu0 %v145
    %179 = vmatprep.subr.mxu0 0.0
    %180 = vmatpush2.msra.mxu0 0.0
    %181 = vmatprep.subr.mxu0 0.0
    %182 = vmatpush2.msra.mxu0 0.0
    %183 = vmatprep.subr.mxu0 0.0
    %184 = vmatpush2.msra.mxu0 0.0
    %185 = vmatprep.subr.mxu0 0.0
    %186 = vmatpush2.msra.mxu0 0.0
    %187 = vmatprep.subr.mxu0 0.0
    %188 = vmatpush2.msra.mxu0 0.0
    %189 = vmatprep.subr.mxu0 0.0
    %190 = vmatpush2.msra.mxu0 0.0
    %191 = vmatprep.subr.mxu0 0.0
    %192 = vmatpush2.msra.mxu0 0.0
    %193 = vmatprep.subr.mxu0 0.0
    %194 = vmatpush2.msra.mxu0 0.0
    %195 = vmatprep.subr.mxu0 0.0
    %196 = vmatpush2.msra.mxu0 0.0
    %197 = vmatprep.subr.mxu0 0.0
    %198 = vmatpush2.msra.mxu0 0.0
    %199 = vmatprep.subr.mxu0 0.0
    %200 = vmatpush2.msra.mxu0 0.0
    %201 = vmatprep.subr.mxu0 0.0
    %202 = vmatpush2.msra.mxu0 0.0
    %203 = vmatprep.subr.mxu0 0.0
    %204 = vmatpush2.msra.mxu0 0.0
    %205 = vmatprep.subr.mxu0 0.0
    %206 = vmatpush2.msra.mxu0 0.0
    %207 = vmatprep.subr.mxu0 0.0
    %208 = vmatpush2.msra.mxu0 0.0
    %209 = vmatprep.subr.mxu0 0.0
    %210 = vmatpush2.msra.mxu0 0.0
    %211 = vmatprep.mubr.f32.mxu0 0.0
    %212 = vmatmul.mubr.f32.gmra.mxu0 %v143
    %v213 = vpop.f32.mrf.mxu0
    %v214 = vadd.f32 0.0, %v213
    %v215 = vpop.f32.mrf.mxu0
    %216 = vdwg.mxu0
    %v217 = vadd.f32 %v137, %v214
    %s218 = scalar_lea.vmem %s1, 16
    %v219 = vld [vmem:[%s218] sm:$0xff]
    %220 = vrot.lane.b32.xlu0 %v51, 126
    %v221 = vpop.permute.xlu0 %220
    %v223 = vsel %vm54, %v219, 0
    %v225 = vsel %vm58, %v221, 0
    %227 = vmatprep.subr.mxu0 0.0
    %228 = vmatpush1.msra.mxu0 0.0
    %229 = vmatprep.subr.mxu0 0.0
    %230 = vmatpush1.msra.mxu0 0.0
    %231 = vmatprep.subr.mxu0 0.0
    %232 = vmatpush1.msra.mxu0 0.0
    %233 = vmatprep.subr.mxu0 0.0
    %234 = vmatpush1.msra.mxu0 0.0
    %235 = vmatprep.subr.mxu0 0.0
    %236 = vmatpush1.msra.mxu0 0.0
    %237 = vmatprep.subr.mxu0 0.0
    %238 = vmatpush1.msra.mxu0 0.0
    %239 = vmatprep.subr.mxu0 0.0
    %240 = vmatpush1.msra.mxu0 0.0
    %241 = vmatprep.subr.mxu0 0.0
    %242 = vmatpush1.msra.mxu0 0.0
    %243 = vmatprep.subr.mxu0 0.0
    %244 = vmatpush1.msra.mxu0 0.0
    %245 = vmatprep.subr.mxu0 0.0
    %246 = vmatpush1.msra.mxu0 0.0
    %247 = vmatprep.subr.mxu0 0.0
    %248 = vmatpush1.msra.mxu0 0.0
    %249 = vmatprep.subr.mxu0 0.0
    %250 = vmatpush1.msra.mxu0 0.0
    %251 = vmatprep.subr.mxu0 0.0
    %252 = vmatpush1.msra.mxu0 0.0
    %253 = vmatprep.subr.mxu0 0.0
    %254 = vmatpush1.msra.mxu0 0.0
    %255 = vmatprep.subr.mxu0 0.0
    %256 = vmatpush1.msra.mxu0 0.0
    %257 = vmatprep.subr.mxu0 0.0
    %258 = vmatpush1.msra.mxu0 %v225
    %259 = vmatprep.subr.mxu0 0.0
    %260 = vmatpush2.msra.mxu0 0.0
    %261 = vmatprep.subr.mxu0 0.0
    %262 = vmatpush2.msra.mxu0 0.0
    %263 = vmatprep.subr.mxu0 0.0
    %264 = vmatpush2.msra.mxu0 0.0
    %265 = vmatprep.subr.mxu0 0.0
    %266 = vmatpush2.msra.mxu0 0.0
    %267 = vmatprep.subr.mxu0 0.0
    %268 = vmatpush2.msra.mxu0 0.0
    %269 = vmatprep.subr.mxu0 0.0
    %270 = vmatpush2.msra.mxu0 0.0
    %271 = vmatprep.subr.mxu0 0.0
    %272 = vmatpush2.msra.mxu0 0.0
    %273 = vmatprep.subr.mxu0 0.0
    %274 = vmatpush2.msra.mxu0 0.0
    %275 = vmatprep.subr.mxu0 0.0
    %276 = vmatpush2.msra.mxu0 0.0
    %277 = vmatprep.subr.mxu0 0.0
    %278 = vmatpush2.msra.mxu0 0.0
    %279 = vmatprep.subr.mxu0 0.0
    %280 = vmatpush2.msra.mxu0 0.0
    %281 = vmatprep.subr.mxu0 0.0
    %282 = vmatpush2.msra.mxu0 0.0
    %283 = vmatprep.subr.mxu0 0.0
    %284 = vmatpush2.msra.mxu0 0.0
    %285 = vmatprep.subr.mxu0 0.0
    %286 = vmatpush2.msra.mxu0 0.0
    %287 = vmatprep.subr.mxu0 0.0
    %288 = vmatpush2.msra.mxu0 0.0
    %289 = vmatprep.subr.mxu0 0.0
    %290 = vmatpush2.msra.mxu0 0.0
    %291 = vmatprep.mubr.f32.mxu0 0.0
    %292 = vmatmul.mubr.f32.gmra.mxu0 %v223
    %v293 = vpop.f32.mrf.mxu0
    %v294 = vadd.f32 0.0, %v293
    %v295 = vpop.f32.mrf.mxu0
    %296 = vdwg.mxu0
    %v297 = vadd.f32 %v217, %v294
    %v298 = vmax.f32 %v297, 0.0
    %v299 = vld [vmem:[%s4] sm:$0xff]
    %v300 = vld [vmem:[%s3] sm:$0xff]
    %vm301 = vcmask 64512
    %v303 = vsel %vm301, %v300, 0
    %305 = vmatprep.subr.mxu0 0.0
    %306 = vmatpush1.msra.mxu0 0.0
    %307 = vmatprep.subr.mxu0 0.0
    %308 = vmatpush1.msra.mxu0 0.0
    %309 = vmatprep.subr.mxu0 0.0
    %310 = vmatpush1.msra.mxu0 0.0
    %311 = vmatprep.subr.mxu0 0.0
    %312 = vmatpush1.msra.mxu0 0.0
    %313 = vmatprep.subr.mxu0 0.0
    %314 = vmatpush1.msra.mxu0 0.0
    %315 = vmatprep.subr.mxu0 0.0
    %316 = vmatpush1.msra.mxu0 0.0
    %317 = vmatprep.subr.mxu0 0.0
    %318 = vmatpush1.msra.mxu0 0.0
    %319 = vmatprep.subr.mxu0 0.0
    %320 = vmatpush1.msra.mxu0 0.0
    %321 = vmatprep.subr.mxu0 0.0
    %322 = vmatpush1.msra.mxu0 0.0
    %323 = vmatprep.subr.mxu0 0.0
    %324 = vmatpush1.msra.mxu0 0.0
    %325 = vmatprep.subr.mxu0 0.0
    %326 = vmatpush1.msra.mxu0 0.0
    %327 = vmatprep.subr.mxu0 0.0
    %328 = vmatpush1.msra.mxu0 0.0
    %329 = vmatprep.subr.mxu0 0.0
    %330 = vmatpush1.msra.mxu0 0.0
    %331 = vmatprep.subr.mxu0 0.0
    %332 = vmatpush1.msra.mxu0 0.0
    %333 = vmatprep.subr.mxu0 0.0
    %334 = vmatpush1.msra.mxu0 0.0
    %335 = vmatprep.subr.mxu0 0.0
    %336 = vmatpush1.msra.mxu0 %v298
    %337 = vmatprep.subr.mxu0 0.0
    %338 = vmatpush2.msra.mxu0 0.0
    %339 = vmatprep.subr.mxu0 0.0
    %340 = vmatpush2.msra.mxu0 0.0
    %341 = vmatprep.subr.mxu0 0.0
    %342 = vmatpush2.msra.mxu0 0.0
    %343 = vmatprep.subr.mxu0 0.0
    %344 = vmatpush2.msra.mxu0 0.0
    %345 = vmatprep.subr.mxu0 0.0
    %346 = vmatpush2.msra.mxu0 0.0
    %347 = vmatprep.subr.mxu0 0.0
    %348 = vmatpush2.msra.mxu0 0.0
    %349 = vmatprep.subr.mxu0 0.0
    %350 = vmatpush2.msra.mxu0 0.0
    %351 = vmatprep.subr.mxu0 0.0
    %352 = vmatpush2.msra.mxu0 0.0
    %353 = vmatprep.subr.mxu0 0.0
    %354 = vmatpush2.msra.mxu0 0.0
    %355 = vmatprep.subr.mxu0 0.0
    %356 = vmatpush2.msra.mxu0 0.0
    %357 = vmatprep.subr.mxu0 0.0
    %358 = vmatpush2.msra.mxu0 0.0
    %359 = vmatprep.subr.mxu0 0.0
    %360 = vmatpush2.msra.mxu0 0.0
    %361 = vmatprep.subr.mxu0 0.0
    %362 = vmatpush2.msra.mxu0 0.0
    %363 = vmatprep.subr.mxu0 0.0
    %364 = vmatpush2.msra.mxu0 0.0
    %365 = vmatprep.subr.mxu0 0.0
    %366 = vmatpush2.msra.mxu0 0.0
    %367 = vmatprep.subr.mxu0 0.0
    %368 = vmatpush2.msra.mxu0 0.0
    %369 = vmatprep.mubr.f32.mxu0 0.0
    %370 = vmatmul.mubr.f32.gmra.mxu0 %v303
    %v371 = vpop.f32.mrf.mxu0
    %v372 = vadd.f32 0.0, %v371
    %v373 = vpop.f32.mrf.mxu0
    %374 = vdwg.mxu0
    %376 = vset.pattern.permute.xlu0 0
    %377 = vperm.xlu0 %376, %v299
    %v378 = vpop.permute.xlu0 %377
    %v380 = vadd.f32 %v378, %v372
    %s381 = scalar_lea.vmem %s3, 8
    %v382 = vld [vmem:[%s381] sm:$0xff]
    %384 = vrot.lane.b32.xlu0 %v298, 127
    %v385 = vpop.permute.xlu0 %384
    %v388 = vsel %vm301, %v382, 0
    %390 = vmatprep.subr.mxu0 0.0
    %391 = vmatpush1.msra.mxu0 0.0
    %392 = vmatprep.subr.mxu0 0.0
    %393 = vmatpush1.msra.mxu0 0.0
    %394 = vmatprep.subr.mxu0 0.0
    %395 = vmatpush1.msra.mxu0 0.0
    %396 = vmatprep.subr.mxu0 0.0
    %397 = vmatpush1.msra.mxu0 0.0
    %398 = vmatprep.subr.mxu0 0.0
    %399 = vmatpush1.msra.mxu0 0.0
    %400 = vmatprep.subr.mxu0 0.0
    %401 = vmatpush1.msra.mxu0 0.0
    %402 = vmatprep.subr.mxu0 0.0
    %403 = vmatpush1.msra.mxu0 0.0
    %404 = vmatprep.subr.mxu0 0.0
    %405 = vmatpush1.msra.mxu0 0.0
    %406 = vmatprep.subr.mxu0 0.0
    %407 = vmatpush1.msra.mxu0 0.0
    %408 = vmatprep.subr.mxu0 0.0
    %409 = vmatpush1.msra.mxu0 0.0
    %410 = vmatprep.subr.mxu0 0.0
    %411 = vmatpush1.msra.mxu0 0.0
    %412 = vmatprep.subr.mxu0 0.0
    %413 = vmatpush1.msra.mxu0 0.0
    %414 = vmatprep.subr.mxu0 0.0
    %415 = vmatpush1.msra.mxu0 0.0
    %416 = vmatprep.subr.mxu0 0.0
    %417 = vmatpush1.msra.mxu0 0.0
    %418 = vmatprep.subr.mxu0 0.0
    %419 = vmatpush1.msra.mxu0 0.0
    %420 = vmatprep.subr.mxu0 0.0
    %421 = vmatpush1.msra.mxu0 %v385
    %422 = vmatprep.subr.mxu0 0.0
    %423 = vmatpush2.msra.mxu0 0.0
    %424 = vmatprep.subr.mxu0 0.0
    %425 = vmatpush2.msra.mxu0 0.0
    %426 = vmatprep.subr.mxu0 0.0
    %427 = vmatpush2.msra.mxu0 0.0
    %428 = vmatprep.subr.mxu0 0.0
    %429 = vmatpush2.msra.mxu0 0.0
    %430 = vmatprep.subr.mxu0 0.0
    %431 = vmatpush2.msra.mxu0 0.0
    %432 = vmatprep.subr.mxu0 0.0
    %433 = vmatpush2.msra.mxu0 0.0
    %434 = vmatprep.subr.mxu0 0.0
    %435 = vmatpush2.msra.mxu0 0.0
    %436 = vmatprep.subr.mxu0 0.0
    %437 = vmatpush2.msra.mxu0 0.0
    %438 = vmatprep.subr.mxu0 0.0
    %439 = vmatpush2.msra.mxu0 0.0
    %440 = vmatprep.subr.mxu0 0.0
    %441 = vmatpush2.msra.mxu0 0.0
    %442 = vmatprep.subr.mxu0 0.0
    %443 = vmatpush2.msra.mxu0 0.0
    %444 = vmatprep.subr.mxu0 0.0
    %445 = vmatpush2.msra.mxu0 0.0
    %446 = vmatprep.subr.mxu0 0.0
    %447 = vmatpush2.msra.mxu0 0.0
    %448 = vmatprep.subr.mxu0 0.0
    %449 = vmatpush2.msra.mxu0 0.0
    %450 = vmatprep.subr.mxu0 0.0
    %451 = vmatpush2.msra.mxu0 0.0
    %452 = vmatprep.subr.mxu0 0.0
    %453 = vmatpush2.msra.mxu0 0.0
    %454 = vmatprep.mubr.f32.mxu0 0.0
    %455 = vmatmul.mubr.f32.gmra.mxu0 %v388
    %v456 = vpop.f32.mrf.mxu0
    %v457 = vadd.f32 0.0, %v456
    %v458 = vpop.f32.mrf.mxu0
    %459 = vdwg.mxu0
    %v460 = vadd.f32 %v380, %v457
    %s461 = scalar_lea.vmem %s3, 16
    %v462 = vld [vmem:[%s461] sm:$0xff]
    %463 = vrot.lane.b32.xlu0 %v298, 126
    %v464 = vpop.permute.xlu0 %463
    %v467 = vsel %vm301, %v462, 0
    %469 = vmatprep.subr.mxu0 0.0
    %470 = vmatpush1.msra.mxu0 0.0
    %471 = vmatprep.subr.mxu0 0.0
    %472 = vmatpush1.msra.mxu0 0.0
    %473 = vmatprep.subr.mxu0 0.0
    %474 = vmatpush1.msra.mxu0 0.0
    %475 = vmatprep.subr.mxu0 0.0
    %476 = vmatpush1.msra.mxu0 0.0
    %477 = vmatprep.subr.mxu0 0.0
    %478 = vmatpush1.msra.mxu0 0.0
    %479 = vmatprep.subr.mxu0 0.0
    %480 = vmatpush1.msra.mxu0 0.0
    %481 = vmatprep.subr.mxu0 0.0
    %482 = vmatpush1.msra.mxu0 0.0
    %483 = vmatprep.subr.mxu0 0.0
    %484 = vmatpush1.msra.mxu0 0.0
    %485 = vmatprep.subr.mxu0 0.0
    %486 = vmatpush1.msra.mxu0 0.0
    %487 = vmatprep.subr.mxu0 0.0
    %488 = vmatpush1.msra.mxu0 0.0
    %489 = vmatprep.subr.mxu0 0.0
    %490 = vmatpush1.msra.mxu0 0.0
    %491 = vmatprep.subr.mxu0 0.0
    %492 = vmatpush1.msra.mxu0 0.0
    %493 = vmatprep.subr.mxu0 0.0
    %494 = vmatpush1.msra.mxu0 0.0
    %495 = vmatprep.subr.mxu0 0.0
    %496 = vmatpush1.msra.mxu0 0.0
    %497 = vmatprep.subr.mxu0 0.0
    %498 = vmatpush1.msra.mxu0 0.0
    %499 = vmatprep.subr.mxu0 0.0
    %500 = vmatpush1.msra.mxu0 %v464
    %501 = vmatprep.subr.mxu0 0.0
    %502 = vmatpush2.msra.mxu0 0.0
    %503 = vmatprep.subr.mxu0 0.0
    %504 = vmatpush2.msra.mxu0 0.0
    %505 = vmatprep.subr.mxu0 0.0
    %506 = vmatpush2.msra.mxu0 0.0
    %507 = vmatprep.subr.mxu0 0.0
    %508 = vmatpush2.msra.mxu0 0.0
    %509 = vmatprep.subr.mxu0 0.0
    %510 = vmatpush2.msra.mxu0 0.0
    %511 = vmatprep.subr.mxu0 0.0
    %512 = vmatpush2.msra.mxu0 0.0
    %513 = vmatprep.subr.mxu0 0.0
    %514 = vmatpush2.msra.mxu0 0.0
    %515 = vmatprep.subr.mxu0 0.0
    %516 = vmatpush2.msra.mxu0 0.0
    %517 = vmatprep.subr.mxu0 0.0
    %518 = vmatpush2.msra.mxu0 0.0
    %519 = vmatprep.subr.mxu0 0.0
    %520 = vmatpush2.msra.mxu0 0.0
    %521 = vmatprep.subr.mxu0 0.0
    %522 = vmatpush2.msra.mxu0 0.0
    %523 = vmatprep.subr.mxu0 0.0
    %524 = vmatpush2.msra.mxu0 0.0
    %525 = vmatprep.subr.mxu0 0.0
    %526 = vmatpush2.msra.mxu0 0.0
    %527 = vmatprep.subr.mxu0 0.0
    %528 = vmatpush2.msra.mxu0 0.0
    %529 = vmatprep.subr.mxu0 0.0
    %530 = vmatpush2.msra.mxu0 0.0
    %531 = vmatprep.subr.mxu0 0.0
    %532 = vmatpush2.msra.mxu0 0.0
    %533 = vmatprep.mubr.f32.mxu0 0.0
    %534 = vmatmul.mubr.f32.gmra.mxu0 %v467
    %v535 = vpop.f32.mrf.mxu0
    %v536 = vadd.f32 0.0, %v535
    %v537 = vpop.f32.mrf.mxu0
    %538 = vdwg.mxu0
    %v539 = vadd.f32 %v460, %v536
    %v540 = vmax.f32 %v539, 0.0
    %v541 = vmax.f32 %v298, %v385
    %v542 = vmax.f32 %v541, %v464
    %543 = vst.msk [vmem:[#allocation2] sm:$0xff] %vm43, 0.0
    %545 = vrot.lane.b32.xlu0 %v540, 1
    %v546 = vpop.permute.xlu0 %545
    %vm548 = vcmask 121864
    %549 = vst.msk [vmem:[#allocation2] sm:$0xff] %vm548, %v546
    %v550 = vld [vmem:[#allocation2] sm:$0xff]
    %v551 = vld [vmem:[%s7] sm:$0xff]
    %v552 = vld [vmem:[%s5] sm:$0xff]
    %v554 = vsel %vm301, %v552, 0
    %556 = vmatprep.subr.mxu0 0.0
    %557 = vmatpush1.msra.mxu0 0.0
    %558 = vmatprep.subr.mxu0 0.0
    %559 = vmatpush1.msra.mxu0 0.0
    %560 = vmatprep.subr.mxu0 0.0
    %561 = vmatpush1.msra.mxu0 0.0
    %562 = vmatprep.subr.mxu0 0.0
    %563 = vmatpush1.msra.mxu0 0.0
    %564 = vmatprep.subr.mxu0 0.0
    %565 = vmatpush1.msra.mxu0 0.0
    %566 = vmatprep.subr.mxu0 0.0
    %567 = vmatpush1.msra.mxu0 0.0
    %568 = vmatprep.subr.mxu0 0.0
    %569 = vmatpush1.msra.mxu0 0.0
    %570 = vmatprep.subr.mxu0 0.0
    %571 = vmatpush1.msra.mxu0 0.0
    %572 = vmatprep.subr.mxu0 0.0
    %573 = vmatpush1.msra.mxu0 0.0
    %574 = vmatprep.subr.mxu0 0.0
    %575 = vmatpush1.msra.mxu0 0.0
    %576 = vmatprep.subr.mxu0 0.0
    %577 = vmatpush1.msra.mxu0 0.0
    %578 = vmatprep.subr.mxu0 0.0
    %579 = vmatpush1.msra.mxu0 0.0
    %580 = vmatprep.subr.mxu0 0.0
    %581 = vmatpush1.msra.mxu0 0.0
    %582 = vmatprep.subr.mxu0 0.0
    %583 = vmatpush1.msra.mxu0 0.0
    %584 = vmatprep.subr.mxu0 0.0
    %585 = vmatpush1.msra.mxu0 0.0
    %586 = vmatprep.subr.mxu0 0.0
    %587 = vmatpush1.msra.mxu0 %v550
    %588 = vmatprep.subr.mxu0 0.0
    %589 = vmatpush2.msra.mxu0 0.0
    %590 = vmatprep.subr.mxu0 0.0
    %591 = vmatpush2.msra.mxu0 0.0
    %592 = vmatprep.subr.mxu0 0.0
    %593 = vmatpush2.msra.mxu0 0.0
    %594 = vmatprep.subr.mxu0 0.0
    %595 = vmatpush2.msra.mxu0 0.0
    %596 = vmatprep.subr.mxu0 0.0
    %597 = vmatpush2.msra.mxu0 0.0
    %598 = vmatprep.subr.mxu0 0.0
    %599 = vmatpush2.msra.mxu0 0.0
    %600 = vmatprep.subr.mxu0 0.0
    %601 = vmatpush2.msra.mxu0 0.0
    %602 = vmatprep.subr.mxu0 0.0
    %603 = vmatpush2.msra.mxu0 0.0
    %604 = vmatprep.subr.mxu0 0.0
    %605 = vmatpush2.msra.mxu0 0.0
    %606 = vmatprep.subr.mxu0 0.0
    %607 = vmatpush2.msra.mxu0 0.0
    %608 = vmatprep.subr.mxu0 0.0
    %609 = vmatpush2.msra.mxu0 0.0
    %610 = vmatprep.subr.mxu0 0.0
    %611 = vmatpush2.msra.mxu0 0.0
    %612 = vmatprep.subr.mxu0 0.0
    %613 = vmatpush2.msra.mxu0 0.0
    %614 = vmatprep.subr.mxu0 0.0
    %615 = vmatpush2.msra.mxu0 0.0
    %616 = vmatprep.subr.mxu0 0.0
    %617 = vmatpush2.msra.mxu0 0.0
    %618 = vmatprep.subr.mxu0 0.0
    %619 = vmatpush2.msra.mxu0 0.0
    %620 = vmatprep.mubr.f32.mxu0 0.0
    %621 = vmatmul.mubr.f32.gmra.mxu0 %v554
    %v622 = vpop.f32.mrf.mxu0
    %v623 = vadd.f32 0.0, %v622
    %v624 = vpop.f32.mrf.mxu0
    %625 = vdwg.mxu0
    %627 = vset.pattern.permute.xlu0 0
    %628 = vperm.xlu0 %627, %v551
    %v629 = vpop.permute.xlu0 %628
    %v631 = vadd.f32 %v629, %v623
    %s632 = scalar_lea.vmem %s5, 8
    %v633 = vld [vmem:[%s632] sm:$0xff]
    %635 = vrot.lane.b32.xlu0 %v550, 127
    %v636 = vpop.permute.xlu0 %635
    %v639 = vsel %vm301, %v633, 0
    %641 = vmatprep.subr.mxu0 0.0
    %642 = vmatpush1.msra.mxu0 0.0
    %643 = vmatprep.subr.mxu0 0.0
    %644 = vmatpush1.msra.mxu0 0.0
    %645 = vmatprep.subr.mxu0 0.0
    %646 = vmatpush1.msra.mxu0 0.0
    %647 = vmatprep.subr.mxu0 0.0
    %648 = vmatpush1.msra.mxu0 0.0
    %649 = vmatprep.subr.mxu0 0.0
    %650 = vmatpush1.msra.mxu0 0.0
    %651 = vmatprep.subr.mxu0 0.0
    %652 = vmatpush1.msra.mxu0 0.0
    %653 = vmatprep.subr.mxu0 0.0
    %654 = vmatpush1.msra.mxu0 0.0
    %655 = vmatprep.subr.mxu0 0.0
    %656 = vmatpush1.msra.mxu0 0.0
    %657 = vmatprep.subr.mxu0 0.0
    %658 = vmatpush1.msra.mxu0 0.0
    %659 = vmatprep.subr.mxu0 0.0
    %660 = vmatpush1.msra.mxu0 0.0
    %661 = vmatprep.subr.mxu0 0.0
    %662 = vmatpush1.msra.mxu0 0.0
    %663 = vmatprep.subr.mxu0 0.0
    %664 = vmatpush1.msra.mxu0 0.0
    %665 = vmatprep.subr.mxu0 0.0
    %666 = vmatpush1.msra.mxu0 0.0
    %667 = vmatprep.subr.mxu0 0.0
    %668 = vmatpush1.msra.mxu0 0.0
    %669 = vmatprep.subr.mxu0 0.0
    %670 = vmatpush1.msra.mxu0 0.0
    %671 = vmatprep.subr.mxu0 0.0
    %672 = vmatpush1.msra.mxu0 %v636
    %673 = vmatprep.subr.mxu0 0.0
    %674 = vmatpush2.msra.mxu0 0.0
    %675 = vmatprep.subr.mxu0 0.0
    %676 = vmatpush2.msra.mxu0 0.0
    %677 = vmatprep.subr.mxu0 0.0
    %678 = vmatpush2.msra.mxu0 0.0
    %679 = vmatprep.subr.mxu0 0.0
    %680 = vmatpush2.msra.mxu0 0.0
    %681 = vmatprep.subr.mxu0 0.0
    %682 = vmatpush2.msra.mxu0 0.0
    %683 = vmatprep.subr.mxu0 0.0
    %684 = vmatpush2.msra.mxu0 0.0
    %685 = vmatprep.subr.mxu0 0.0
    %686 = vmatpush2.msra.mxu0 0.0
    %687 = vmatprep.subr.mxu0 0.0
    %688 = vmatpush2.msra.mxu0 0.0
    %689 = vmatprep.subr.mxu0 0.0
    %690 = vmatpush2.msra.mxu0 0.0
    %691 = vmatprep.subr.mxu0 0.0
    %692 = vmatpush2.msra.mxu0 0.0
    %693 = vmatprep.subr.mxu0 0.0
    %694 = vmatpush2.msra.mxu0 0.0
    %695 = vmatprep.subr.mxu0 0.0
    %696 = vmatpush2.msra.mxu0 0.0
    %697 = vmatprep.subr.mxu0 0.0
    %698 = vmatpush2.msra.mxu0 0.0
    %699 = vmatprep.subr.mxu0 0.0
    %700 = vmatpush2.msra.mxu0 0.0
    %701 = vmatprep.subr.mxu0 0.0
    %702 = vmatpush2.msra.mxu0 0.0
    %703 = vmatprep.subr.mxu0 0.0
    %704 = vmatpush2.msra.mxu0 0.0
    %705 = vmatprep.mubr.f32.mxu0 0.0
    %706 = vmatmul.mubr.f32.gmra.mxu0 %v639
    %v707 = vpop.f32.mrf.mxu0
    %v708 = vadd.f32 0.0, %v707
    %v709 = vpop.f32.mrf.mxu0
    %710 = vdwg.mxu0
    %v711 = vadd.f32 %v631, %v708
    %s712 = scalar_lea.vmem %s5, 16
    %v713 = vld [vmem:[%s712] sm:$0xff]
    %714 = vrot.lane.b32.xlu0 %v550, 126
    %v715 = vpop.permute.xlu0 %714
    %v718 = vsel %vm301, %v713, 0
    %720 = vmatprep.subr.mxu0 0.0
    %721 = vmatpush1.msra.mxu0 0.0
    %722 = vmatprep.subr.mxu0 0.0
    %723 = vmatpush1.msra.mxu0 0.0
    %724 = vmatprep.subr.mxu0 0.0
    %725 = vmatpush1.msra.mxu0 0.0
    %726 = vmatprep.subr.mxu0 0.0
    %727 = vmatpush1.msra.mxu0 0.0
    %728 = vmatprep.subr.mxu0 0.0
    %729 = vmatpush1.msra.mxu0 0.0
    %730 = vmatprep.subr.mxu0 0.0
    %731 = vmatpush1.msra.mxu0 0.0
    %732 = vmatprep.subr.mxu0 0.0
    %733 = vmatpush1.msra.mxu0 0.0
    %734 = vmatprep.subr.mxu0 0.0
    %735 = vmatpush1.msra.mxu0 0.0
    %736 = vmatprep.subr.mxu0 0.0
    %737 = vmatpush1.msra.mxu0 0.0
    %738 = vmatprep.subr.mxu0 0.0
    %739 = vmatpush1.msra.mxu0 0.0
    %740 = vmatprep.subr.mxu0 0.0
    %741 = vmatpush1.msra.mxu0 0.0
    %742 = vmatprep.subr.mxu0 0.0
    %743 = vmatpush1.msra.mxu0 0.0
    %744 = vmatprep.subr.mxu0 0.0
    %745 = vmatpush1.msra.mxu0 0.0
    %746 = vmatprep.subr.mxu0 0.0
    %747 = vmatpush1.msra.mxu0 0.0
    %748 = vmatprep.subr.mxu0 0.0
    %749 = vmatpush1.msra.mxu0 0.0
    %750 = vmatprep.subr.mxu0 0.0
    %751 = vmatpush1.msra.mxu0 %v715
    %752 = vmatprep.subr.mxu0 0.0
    %753 = vmatpush2.msra.mxu0 0.0
    %754 = vmatprep.subr.mxu0 0.0
    %755 = vmatpush2.msra.mxu0 0.0
    %756 = vmatprep.subr.mxu0 0.0
    %757 = vmatpush2.msra.mxu0 0.0
    %758 = vmatprep.subr.mxu0 0.0
    %759 = vmatpush2.msra.mxu0 0.0
    %760 = vmatprep.subr.mxu0 0.0
    %761 = vmatpush2.msra.mxu0 0.0
    %762 = vmatprep.subr.mxu0 0.0
    %763 = vmatpush2.msra.mxu0 0.0
    %764 = vmatprep.subr.mxu0 0.0
    %765 = vmatpush2.msra.mxu0 0.0
    %766 = vmatprep.subr.mxu0 0.0
    %767 = vmatpush2.msra.mxu0 0.0
    %768 = vmatprep.subr.mxu0 0.0
    %769 = vmatpush2.msra.mxu0 0.0
    %770 = vmatprep.subr.mxu0 0.0
    %771 = vmatpush2.msra.mxu0 0.0
    %772 = vmatprep.subr.mxu0 0.0
    %773 = vmatpush2.msra.mxu0 0.0
    %774 = vmatprep.subr.mxu0 0.0
    %775 = vmatpush2.msra.mxu0 0.0
    %776 = vmatprep.subr.mxu0 0.0
    %777 = vmatpush2.msra.mxu0 0.0
    %778 = vmatprep.subr.mxu0 0.0
    %779 = vmatpush2.msra.mxu0 0.0
    %780 = vmatprep.subr.mxu0 0.0
    %781 = vmatpush2.msra.mxu0 0.0
    %782 = vmatprep.subr.mxu0 0.0
    %783 = vmatpush2.msra.mxu0 0.0
    %784 = vmatprep.mubr.f32.mxu0 0.0
    %785 = vmatmul.mubr.f32.gmra.mxu0 %v718
    %v786 = vpop.f32.mrf.mxu0
    %v787 = vadd.f32 0.0, %v786
    %v788 = vpop.f32.mrf.mxu0
    %789 = vdwg.mxu0
    %v790 = vadd.f32 %v711, %v787
    %791 = vst.msk [vmem:[#allocation2] sm:$0xff] %vm43, 0.0
    %793 = vrot.lane.b32.xlu0 %v542, 1
    %v794 = vpop.permute.xlu0 %793
    %796 = vst.msk [vmem:[#allocation2] sm:$0xff] %vm548, %v794
    %v797 = vld [vmem:[#allocation2] sm:$0xff]
    %v798 = vld [vmem:[%s6] sm:$0xff]
    %v800 = vsel %vm301, %v798, 0
    %802 = vmatprep.subr.mxu0 0.0
    %803 = vmatpush1.msra.mxu0 0.0
    %804 = vmatprep.subr.mxu0 0.0
    %805 = vmatpush1.msra.mxu0 0.0
    %806 = vmatprep.subr.mxu0 0.0
    %807 = vmatpush1.msra.mxu0 0.0
    %808 = vmatprep.subr.mxu0 0.0
    %809 = vmatpush1.msra.mxu0 0.0
    %810 = vmatprep.subr.mxu0 0.0
    %811 = vmatpush1.msra.mxu0 0.0
    %812 = vmatprep.subr.mxu0 0.0
    %813 = vmatpush1.msra.mxu0 0.0
    %814 = vmatprep.subr.mxu0 0.0
    %815 = vmatpush1.msra.mxu0 0.0
    %816 = vmatprep.subr.mxu0 0.0
    %817 = vmatpush1.msra.mxu0 0.0
    %818 = vmatprep.subr.mxu0 0.0
    %819 = vmatpush1.msra.mxu0 0.0
    %820 = vmatprep.subr.mxu0 0.0
    %821 = vmatpush1.msra.mxu0 0.0
    %822 = vmatprep.subr.mxu0 0.0
    %823 = vmatpush1.msra.mxu0 0.0
    %824 = vmatprep.subr.mxu0 0.0
    %825 = vmatpush1.msra.mxu0 0.0
    %826 = vmatprep.subr.mxu0 0.0
    %827 = vmatpush1.msra.mxu0 0.0
    %828 = vmatprep.subr.mxu0 0.0
    %829 = vmatpush1.msra.mxu0 0.0
    %830 = vmatprep.subr.mxu0 0.0
    %831 = vmatpush1.msra.mxu0 0.0
    %832 = vmatprep.subr.mxu0 0.0
    %833 = vmatpush1.msra.mxu0 %v797
    %834 = vmatprep.subr.mxu0 0.0
    %835 = vmatpush2.msra.mxu0 0.0
    %836 = vmatprep.subr.mxu0 0.0
    %837 = vmatpush2.msra.mxu0 0.0
    %838 = vmatprep.subr.mxu0 0.0
    %839 = vmatpush2.msra.mxu0 0.0
    %840 = vmatprep.subr.mxu0 0.0
    %841 = vmatpush2.msra.mxu0 0.0
    %842 = vmatprep.subr.mxu0 0.0
    %843 = vmatpush2.msra.mxu0 0.0
    %844 = vmatprep.subr.mxu0 0.0
    %845 = vmatpush2.msra.mxu0 0.0
    %846 = vmatprep.subr.mxu0 0.0
    %847 = vmatpush2.msra.mxu0 0.0
    %848 = vmatprep.subr.mxu0 0.0
    %849 = vmatpush2.msra.mxu0 0.0
    %850 = vmatprep.subr.mxu0 0.0
    %851 = vmatpush2.msra.mxu0 0.0
    %852 = vmatprep.subr.mxu0 0.0
    %853 = vmatpush2.msra.mxu0 0.0
    %854 = vmatprep.subr.mxu0 0.0
    %855 = vmatpush2.msra.mxu0 0.0
    %856 = vmatprep.subr.mxu0 0.0
    %857 = vmatpush2.msra.mxu0 0.0
    %858 = vmatprep.subr.mxu0 0.0
    %859 = vmatpush2.msra.mxu0 0.0
    %860 = vmatprep.subr.mxu0 0.0
    %861 = vmatpush2.msra.mxu0 0.0
    %862 = vmatprep.subr.mxu0 0.0
    %863 = vmatpush2.msra.mxu0 0.0
    %864 = vmatprep.subr.mxu0 0.0
    %865 = vmatpush2.msra.mxu0 0.0
    %866 = vmatprep.mubr.f32.mxu0 0.0
    %867 = vmatmul.mubr.f32.gmra.mxu0 %v800
    %v868 = vpop.f32.mrf.mxu0
    %v869 = vadd.f32 0.0, %v868
    %v870 = vpop.f32.mrf.mxu0
    %871 = vdwg.mxu0
    %v872 = vadd.f32 %v790, %v869
    %s873 = scalar_lea.vmem %s6, 8
    %v874 = vld [vmem:[%s873] sm:$0xff]
    %876 = vrot.lane.b32.xlu0 %v797, 127
    %v877 = vpop.permute.xlu0 %876
    %v880 = vsel %vm301, %v874, 0
    %882 = vmatprep.subr.mxu0 0.0
    %883 = vmatpush1.msra.mxu0 0.0
    %884 = vmatprep.subr.mxu0 0.0
    %885 = vmatpush1.msra.mxu0 0.0
    %886 = vmatprep.subr.mxu0 0.0
    %887 = vmatpush1.msra.mxu0 0.0
    %888 = vmatprep.subr.mxu0 0.0
    %889 = vmatpush1.msra.mxu0 0.0
    %890 = vmatprep.subr.mxu0 0.0
    %891 = vmatpush1.msra.mxu0 0.0
    %892 = vmatprep.subr.mxu0 0.0
    %893 = vmatpush1.msra.mxu0 0.0
    %894 = vmatprep.subr.mxu0 0.0
    %895 = vmatpush1.msra.mxu0 0.0
    %896 = vmatprep.subr.mxu0 0.0
    %897 = vmatpush1.msra.mxu0 0.0
    %898 = vmatprep.subr.mxu0 0.0
    %899 = vmatpush1.msra.mxu0 0.0
    %900 = vmatprep.subr.mxu0 0.0
    %901 = vmatpush1.msra.mxu0 0.0
    %902 = vmatprep.subr.mxu0 0.0
    %903 = vmatpush1.msra.mxu0 0.0
    %904 = vmatprep.subr.mxu0 0.0
    %905 = vmatpush1.msra.mxu0 0.0
    %906 = vmatprep.subr.mxu0 0.0
    %907 = vmatpush1.msra.mxu0 0.0
    %908 = vmatprep.subr.mxu0 0.0
    %909 = vmatpush1.msra.mxu0 0.0
    %910 = vmatprep.subr.mxu0 0.0
    %911 = vmatpush1.msra.mxu0 0.0
    %912 = vmatprep.subr.mxu0 0.0
    %913 = vmatpush1.msra.mxu0 %v877
    %914 = vmatprep.subr.mxu0 0.0
    %915 = vmatpush2.msra.mxu0 0.0
    %916 = vmatprep.subr.mxu0 0.0
    %917 = vmatpush2.msra.mxu0 0.0
    %918 = vmatprep.subr.mxu0 0.0
    %919 = vmatpush2.msra.mxu0 0.0
    %920 = vmatprep.subr.mxu0 0.0
    %921 = vmatpush2.msra.mxu0 0.0
    %922 = vmatprep.subr.mxu0 0.0
    %923 = vmatpush2.msra.mxu0 0.0
    %924 = vmatprep.subr.mxu0 0.0
    %925 = vmatpush2.msra.mxu0 0.0
    %926 = vmatprep.subr.mxu0 0.0
    %927 = vmatpush2.msra.mxu0 0.0
    %928 = vmatprep.subr.mxu0 0.0
    %929 = vmatpush2.msra.mxu0 0.0
    %930 = vmatprep.subr.mxu0 0.0
    %931 = vmatpush2.msra.mxu0 0.0
    %932 = vmatprep.subr.mxu0 0.0
    %933 = vmatpush2.msra.mxu0 0.0
    %934 = vmatprep.subr.mxu0 0.0
    %935 = vmatpush2.msra.mxu0 0.0
    %936 = vmatprep.subr.mxu0 0.0
    %937 = vmatpush2.msra.mxu0 0.0
    %938 = vmatprep.subr.mxu0 0.0
    %939 = vmatpush2.msra.mxu0 0.0
    %940 = vmatprep.subr.mxu0 0.0
    %941 = vmatpush2.msra.mxu0 0.0
    %942 = vmatprep.subr.mxu0 0.0
    %943 = vmatpush2.msra.mxu0 0.0
    %944 = vmatprep.subr.mxu0 0.0
    %945 = vmatpush2.msra.mxu0 0.0
    %946 = vmatprep.mubr.f32.mxu0 0.0
    %947 = vmatmul.mubr.f32.gmra.mxu0 %v880
    %v948 = vpop.f32.mrf.mxu0
    %v949 = vadd.f32 0.0, %v948
    %v950 = vpop.f32.mrf.mxu0
    %951 = vdwg.mxu0
    %v952 = vadd.f32 %v872, %v949
    %s953 = scalar_lea.vmem %s6, 16
    %v954 = vld [vmem:[%s953] sm:$0xff]
    %955 = vrot.lane.b32.xlu0 %v797, 126
    %v956 = vpop.permute.xlu0 %955
    %v959 = vsel %vm301, %v954, 0
    %961 = vmatprep.subr.mxu0 0.0
    %962 = vmatpush1.msra.mxu0 0.0
    %963 = vmatprep.subr.mxu0 0.0
    %964 = vmatpush1.msra.mxu0 0.0
    %965 = vmatprep.subr.mxu0 0.0
    %966 = vmatpush1.msra.mxu0 0.0
    %967 = vmatprep.subr.mxu0 0.0
    %968 = vmatpush1.msra.mxu0 0.0
    %969 = vmatprep.subr.mxu0 0.0
    %970 = vmatpush1.msra.mxu0 0.0
    %971 = vmatprep.subr.mxu0 0.0
    %972 = vmatpush1.msra.mxu0 0.0
    %973 = vmatprep.subr.mxu0 0.0
    %974 = vmatpush1.msra.mxu0 0.0
    %975 = vmatprep.subr.mxu0 0.0
    %976 = vmatpush1.msra.mxu0 0.0
    %977 = vmatprep.subr.mxu0 0.0
    %978 = vmatpush1.msra.mxu0 0.0
    %979 = vmatprep.subr.mxu0 0.0
    %980 = vmatpush1.msra.mxu0 0.0
    %981 = vmatprep.subr.mxu0 0.0
    %982 = vmatpush1.msra.mxu0 0.0
    %983 = vmatprep.subr.mxu0 0.0
    %984 = vmatpush1.msra.mxu0 0.0
    %985 = vmatprep.subr.mxu0 0.0
    %986 = vmatpush1.msra.mxu0 0.0
    %987 = vmatprep.subr.mxu0 0.0
    %988 = vmatpush1.msra.mxu0 0.0
    %989 = vmatprep.subr.mxu0 0.0
    %990 = vmatpush1.msra.mxu0 0.0
    %991 = vmatprep.subr.mxu0 0.0
    %992 = vmatpush1.msra.mxu0 %v956
    %993 = vmatprep.subr.mxu0 0.0
    %994 = vmatpush2.msra.mxu0 0.0
    %995 = vmatprep.subr.mxu0 0.0
    %996 = vmatpush2.msra.mxu0 0.0
    %997 = vmatprep.subr.mxu0 0.0
    %998 = vmatpush2.msra.mxu0 0.0
    %999 = vmatprep.subr.mxu0 0.0
    %1000 = vmatpush2.msra.mxu0 0.0
    %1001 = vmatprep.subr.mxu0 0.0
    %1002 = vmatpush2.msra.mxu0 0.0
    %1003 = vmatprep.subr.mxu0 0.0
    %1004 = vmatpush2.msra.mxu0 0.0
    %1005 = vmatprep.subr.mxu0 0.0
    %1006 = vmatpush2.msra.mxu0 0.0
    %1007 = vmatprep.subr.mxu0 0.0
    %1008 = vmatpush2.msra.mxu0 0.0
    %1009 = vmatprep.subr.mxu0 0.0
    %1010 = vmatpush2.msra.mxu0 0.0
    %1011 = vmatprep.subr.mxu0 0.0
    %1012 = vmatpush2.msra.mxu0 0.0
    %1013 = vmatprep.subr.mxu0 0.0
    %1014 = vmatpush2.msra.mxu0 0.0
    %1015 = vmatprep.subr.mxu0 0.0
    %1016 = vmatpush2.msra.mxu0 0.0
    %1017 = vmatprep.subr.mxu0 0.0
    %1018 = vmatpush2.msra.mxu0 0.0
    %1019 = vmatprep.subr.mxu0 0.0
    %1020 = vmatpush2.msra.mxu0 0.0
    %1021 = vmatprep.subr.mxu0 0.0
    %1022 = vmatpush2.msra.mxu0 0.0
    %1023 = vmatprep.subr.mxu0 0.0
    %1024 = vmatpush2.msra.mxu0 0.0
    %1025 = vmatprep.mubr.f32.mxu0 0.0
    %1026 = vmatmul.mubr.f32.gmra.mxu0 %v959
    %v1027 = vpop.f32.mrf.mxu0
    %v1028 = vadd.f32 0.0, %v1027
    %v1029 = vpop.f32.mrf.mxu0
    %1030 = vdwg.mxu0
    %v1031 = vadd.f32 %v952, %v1028
    %v1032 = vmax.f32 %v1031, 0.0
    %v1033 = vld [vmem:[%s9] sm:$0x1]
    %v1034 = vld [vmem:[%s8] sm:$0xff]
    %v1035 = vld [vmem:[%s8 + $0x8] sm:$0x3f]
    %vm1036 = vcmask 113664
    %v1038 = vsel %vm1036, %v1032, 0
    %vm1040 = vcmask 1045504
    %v1042 = vsel %vm1040, %v1035, 0
    %1044 = vmatprep.subr.mxu0 0.0
    %1045 = vmatpush1.msra.mxu0 0.0
    %1046 = vmatprep.subr.mxu0 0.0
    %1047 = vmatpush1.msra.mxu0 0.0
    %1048 = vmatprep.subr.mxu0 0.0
    %1049 = vmatpush1.msra.mxu0 0.0
    %1050 = vmatprep.subr.mxu0 0.0
    %1051 = vmatpush1.msra.mxu0 0.0
    %1052 = vmatprep.subr.mxu0 0.0
    %1053 = vmatpush1.msra.mxu0 0.0
    %1054 = vmatprep.subr.mxu0 0.0
    %1055 = vmatpush1.msra.mxu0 0.0
    %1056 = vmatprep.subr.mxu0 0.0
    %1057 = vmatpush1.msra.mxu0 0.0
    %1058 = vmatprep.subr.mxu0 0.0
    %1059 = vmatpush1.msra.mxu0 0.0
    %1060 = vmatprep.subr.mxu0 0.0
    %1061 = vmatpush1.msra.mxu0 0.0
    %1062 = vmatprep.subr.mxu0 0.0
    %1063 = vmatpush1.msra.mxu0 0.0
    %1064 = vmatprep.subr.mxu0 0.0
    %1065 = vmatpush1.msra.mxu0 0.0
    %1066 = vmatprep.subr.mxu0 0.0
    %1067 = vmatpush1.msra.mxu0 0.0
    %1068 = vmatprep.subr.mxu0 0.0
    %1069 = vmatpush1.msra.mxu0 0.0
    %1070 = vmatprep.subr.mxu0 0.0
    %1071 = vmatpush1.msra.mxu0 0.0
    %1072 = vmatprep.subr.mxu0 0.0
    %1073 = vmatpush1.msra.mxu0 %v1042
    %1074 = vmatprep.subr.mxu0 0.0
    %1075 = vmatpush1.msra.mxu0 %v1034
    %1076 = vmatprep.subr.mxu0 0.0
    %1077 = vmatpush2.msra.mxu0 0.0
    %1078 = vmatprep.subr.mxu0 0.0
    %1079 = vmatpush2.msra.mxu0 0.0
    %1080 = vmatprep.subr.mxu0 0.0
    %1081 = vmatpush2.msra.mxu0 0.0
    %1082 = vmatprep.subr.mxu0 0.0
    %1083 = vmatpush2.msra.mxu0 0.0
    %1084 = vmatprep.subr.mxu0 0.0
    %1085 = vmatpush2.msra.mxu0 0.0
    %1086 = vmatprep.subr.mxu0 0.0
    %1087 = vmatpush2.msra.mxu0 0.0
    %1088 = vmatprep.subr.mxu0 0.0
    %1089 = vmatpush2.msra.mxu0 0.0
    %1090 = vmatprep.subr.mxu0 0.0
    %1091 = vmatpush2.msra.mxu0 0.0
    %1092 = vmatprep.subr.mxu0 0.0
    %1093 = vmatpush2.msra.mxu0 0.0
    %1094 = vmatprep.subr.mxu0 0.0
    %1095 = vmatpush2.msra.mxu0 0.0
    %1096 = vmatprep.subr.mxu0 0.0
    %1097 = vmatpush2.msra.mxu0 0.0
    %1098 = vmatprep.subr.mxu0 0.0
    %1099 = vmatpush2.msra.mxu0 0.0
    %1100 = vmatprep.subr.mxu0 0.0
    %1101 = vmatpush2.msra.mxu0 0.0
    %1102 = vmatprep.subr.mxu0 0.0
    %1103 = vmatpush2.msra.mxu0 0.0
    %1104 = vmatprep.subr.mxu0 0.0
    %1105 = vmatpush2.msra.mxu0 0.0
    %1106 = vmatprep.subr.mxu0 0.0
    %1107 = vmatpush2.msra.mxu0 0.0
    %1108 = vmatprep.mubr.f32.mxu0 0.0
    %1109 = vmatmul.mubr.f32.gmra.mxu0 %v1038
    %v1110 = vpop.f32.mrf.mxu0
    %v1111 = vadd.f32 0.0, %v1110
    %v1112 = vpop.f32.mrf.mxu0
    %1113 = vdwg.mxu0
    %v1114 = vadd.f32 %v1033, %v1111
    %s1115 = scalar_lea.vmem %s8, 16
    %v1116 = vld [vmem:[%s1115] sm:$0xff]
    %v1117 = vld [vmem:[%s1115 + $0x8] sm:$0x3f]
    %v1118 = vrot.slane %v1032, 1
    %v1119 = vsel %vm1036, %v1118, 0
    %v1122 = vsel %vm1040, %v1117, 0
    %1124 = vmatprep.subr.mxu0 0.0
    %1125 = vmatpush1.msra.mxu0 0.0
    %1126 = vmatprep.subr.mxu0 0.0
    %1127 = vmatpush1.msra.mxu0 0.0
    %1128 = vmatprep.subr.mxu0 0.0
    %1129 = vmatpush1.msra.mxu0 0.0
    %1130 = vmatprep.subr.mxu0 0.0
    %1131 = vmatpush1.msra.mxu0 0.0
    %1132 = vmatprep.subr.mxu0 0.0
    %1133 = vmatpush1.msra.mxu0 0.0
    %1134 = vmatprep.subr.mxu0 0.0
    %1135 = vmatpush1.msra.mxu0 0.0
    %1136 = vmatprep.subr.mxu0 0.0
    %1137 = vmatpush1.msra.mxu0 0.0
    %1138 = vmatprep.subr.mxu0 0.0
    %1139 = vmatpush1.msra.mxu0 0.0
    %1140 = vmatprep.subr.mxu0 0.0
    %1141 = vmatpush1.msra.mxu0 0.0
    %1142 = vmatprep.subr.mxu0 0.0
    %1143 = vmatpush1.msra.mxu0 0.0
    %1144 = vmatprep.subr.mxu0 0.0
    %1145 = vmatpush1.msra.mxu0 0.0
    %1146 = vmatprep.subr.mxu0 0.0
    %1147 = vmatpush1.msra.mxu0 0.0
    %1148 = vmatprep.subr.mxu0 0.0
    %1149 = vmatpush1.msra.mxu0 0.0
    %1150 = vmatprep.subr.mxu0 0.0
    %1151 = vmatpush1.msra.mxu0 0.0
    %1152 = vmatprep.subr.mxu0 0.0
    %1153 = vmatpush1.msra.mxu0 %v1122
    %1154 = vmatprep.subr.mxu0 0.0
    %1155 = vmatpush1.msra.mxu0 %v1116
    %1156 = vmatprep.subr.mxu0 0.0
    %1157 = vmatpush2.msra.mxu0 0.0
    %1158 = vmatprep.subr.mxu0 0.0
    %1159 = vmatpush2.msra.mxu0 0.0
    %1160 = vmatprep.subr.mxu0 0.0
    %1161 = vmatpush2.msra.mxu0 0.0
    %1162 = vmatprep.subr.mxu0 0.0
    %1163 = vmatpush2.msra.mxu0 0.0
    %1164 = vmatprep.subr.mxu0 0.0
    %1165 = vmatpush2.msra.mxu0 0.0
    %1166 = vmatprep.subr.mxu0 0.0
    %1167 = vmatpush2.msra.mxu0 0.0
    %1168 = vmatprep.subr.mxu0 0.0
    %1169 = vmatpush2.msra.mxu0 0.0
    %1170 = vmatprep.subr.mxu0 0.0
    %1171 = vmatpush2.msra.mxu0 0.0
    %1172 = vmatprep.subr.mxu0 0.0
    %1173 = vmatpush2.msra.mxu0 0.0
    %1174 = vmatprep.subr.mxu0 0.0
    %1175 = vmatpush2.msra.mxu0 0.0
    %1176 = vmatprep.subr.mxu0 0.0
    %1177 = vmatpush2.msra.mxu0 0.0
    %1178 = vmatprep.subr.mxu0 0.0
    %1179 = vmatpush2.msra.mxu0 0.0
    %1180 = vmatprep.subr.mxu0 0.0
    %1181 = vmatpush2.msra.mxu0 0.0
    %1182 = vmatprep.subr.mxu0 0.0
    %1183 = vmatpush2.msra.mxu0 0.0
    %1184 = vmatprep.subr.mxu0 0.0
    %1185 = vmatpush2.msra.mxu0 0.0
    %1186 = vmatprep.subr.mxu0 0.0
    %1187 = vmatpush2.msra.mxu0 0.0
    %1188 = vmatprep.mubr.f32.mxu0 0.0
    %1189 = vmatmul.mubr.f32.gmra.mxu0 %v1119
    %v1190 = vpop.f32.mrf.mxu0
    %v1191 = vadd.f32 0.0, %v1190
    %v1192 = vpop.f32.mrf.mxu0
    %1193 = vdwg.mxu0
    %v1194 = vadd.f32 %v1114, %v1191
    %s1195 = scalar_lea.vmem %s8, 32
    %v1196 = vld [vmem:[%s1195] sm:$0xff]
    %v1197 = vld [vmem:[%s1195 + $0x8] sm:$0x3f]
    %v1198 = vrot.slane %v1032, 2
    %v1199 = vsel %vm1036, %v1198, 0
    %v1202 = vsel %vm1040, %v1197, 0
    %1204 = vmatprep.subr.mxu0 0.0
    %1205 = vmatpush1.msra.mxu0 0.0
    %1206 = vmatprep.subr.mxu0 0.0
    %1207 = vmatpush1.msra.mxu0 0.0
    %1208 = vmatprep.subr.mxu0 0.0
    %1209 = vmatpush1.msra.mxu0 0.0
    %1210 = vmatprep.subr.mxu0 0.0
    %1211 = vmatpush1.msra.mxu0 0.0
    %1212 = vmatprep.subr.mxu0 0.0
    %1213 = vmatpush1.msra.mxu0 0.0
    %1214 = vmatprep.subr.mxu0 0.0
    %1215 = vmatpush1.msra.mxu0 0.0
    %1216 = vmatprep.subr.mxu0 0.0
    %1217 = vmatpush1.msra.mxu0 0.0
    %1218 = vmatprep.subr.mxu0 0.0
    %1219 = vmatpush1.msra.mxu0 0.0
    %1220 = vmatprep.subr.mxu0 0.0
    %1221 = vmatpush1.msra.mxu0 0.0
    %1222 = vmatprep.subr.mxu0 0.0
    %1223 = vmatpush1.msra.mxu0 0.0
    %1224 = vmatprep.subr.mxu0 0.0
    %1225 = vmatpush1.msra.mxu0 0.0
    %1226 = vmatprep.subr.mxu0 0.0
    %1227 = vmatpush1.msra.mxu0 0.0
    %1228 = vmatprep.subr.mxu0 0.0
    %1229 = vmatpush1.msra.mxu0 0.0
    %1230 = vmatprep.subr.mxu0 0.0
    %1231 = vmatpush1.msra.mxu0 0.0
    %1232 = vmatprep.subr.mxu0 0.0
    %1233 = vmatpush1.msra.mxu0 %v1202
    %1234 = vmatprep.subr.mxu0 0.0
    %1235 = vmatpush1.msra.mxu0 %v1196
    %1236 = vmatprep.subr.mxu0 0.0
    %1237 = vmatpush2.msra.mxu0 0.0
    %1238 = vmatprep.subr.mxu0 0.0
    %1239 = vmatpush2.msra.mxu0 0.0
    %1240 = vmatprep.subr.mxu0 0.0
    %1241 = vmatpush2.msra.mxu0 0.0
    %1242 = vmatprep.subr.mxu0 0.0
    %1243 = vmatpush2.msra.mxu0 0.0
    %1244 = vmatprep.subr.mxu0 0.0
    %1245 = vmatpush2.msra.mxu0 0.0
    %1246 = vmatprep.subr.mxu0 0.0
    %1247 = vmatpush2.msra.mxu0 0.0
    %1248 = vmatprep.subr.mxu0 0.0
    %1249 = vmatpush2.msra.mxu0 0.0
    %1250 = vmatprep.subr.mxu0 0.0
    %1251 = vmatpush2.msra.mxu0 0.0
    %1252 = vmatprep.subr.mxu0 0.0
    %1253 = vmatpush2.msra.mxu0 0.0
    %1254 = vmatprep.subr.mxu0 0.0
    %1255 = vmatpush2.msra.mxu0 0.0
    %1256 = vmatprep.subr.mxu0 0.0
    %1257 = vmatpush2.msra.mxu0 0.0
    %1258 = vmatprep.subr.mxu0 0.0
    %1259 = vmatpush2.msra.mxu0 0.0
    %1260 = vmatprep.subr.mxu0 0.0
    %1261 = vmatpush2.msra.mxu0 0.0
    %1262 = vmatprep.subr.mxu0 0.0
    %1263 = vmatpush2.msra.mxu0 0.0
    %1264 = vmatprep.subr.mxu0 0.0
    %1265 = vmatpush2.msra.mxu0 0.0
    %1266 = vmatprep.subr.mxu0 0.0
    %1267 = vmatpush2.msra.mxu0 0.0
    %1268 = vmatprep.mubr.f32.mxu0 0.0
    %1269 = vmatmul.mubr.f32.gmra.mxu0 %v1199
    %v1270 = vpop.f32.mrf.mxu0
    %v1271 = vadd.f32 0.0, %v1270
    %v1272 = vpop.f32.mrf.mxu0
    %1273 = vdwg.mxu0
    %v1274 = vadd.f32 %v1194, %v1271
    %s1275 = scalar_lea.vmem %s8, 48
    %v1276 = vld [vmem:[%s1275] sm:$0xff]
    %v1277 = vld [vmem:[%s1275 + $0x8] sm:$0x3f]
    %v1278 = vrot.slane %v1032, 3
    %v1279 = vsel %vm1036, %v1278, 0
    %v1282 = vsel %vm1040, %v1277, 0
    %1284 = vmatprep.subr.mxu0 0.0
    %1285 = vmatpush1.msra.mxu0 0.0
    %1286 = vmatprep.subr.mxu0 0.0
    %1287 = vmatpush1.msra.mxu0 0.0
    %1288 = vmatprep.subr.mxu0 0.0
    %1289 = vmatpush1.msra.mxu0 0.0
    %1290 = vmatprep.subr.mxu0 0.0
    %1291 = vmatpush1.msra.mxu0 0.0
    %1292 = vmatprep.subr.mxu0 0.0
    %1293 = vmatpush1.msra.mxu0 0.0
    %1294 = vmatprep.subr.mxu0 0.0
    %1295 = vmatpush1.msra.mxu0 0.0
    %1296 = vmatprep.subr.mxu0 0.0
    %1297 = vmatpush1.msra.mxu0 0.0
    %1298 = vmatprep.subr.mxu0 0.0
    %1299 = vmatpush1.msra.mxu0 0.0
    %1300 = vmatprep.subr.mxu0 0.0
    %1301 = vmatpush1.msra.mxu0 0.0
    %1302 = vmatprep.subr.mxu0 0.0
    %1303 = vmatpush1.msra.mxu0 0.0
    %1304 = vmatprep.subr.mxu0 0.0
    %1305 = vmatpush1.msra.mxu0 0.0
    %1306 = vmatprep.subr.mxu0 0.0
    %1307 = vmatpush1.msra.mxu0 0.0
    %1308 = vmatprep.subr.mxu0 0.0
    %1309 = vmatpush1.msra.mxu0 0.0
    %1310 = vmatprep.subr.mxu0 0.0
    %1311 = vmatpush1.msra.mxu0 0.0
    %1312 = vmatprep.subr.mxu0 0.0
    %1313 = vmatpush1.msra.mxu0 %v1282
    %1314 = vmatprep.subr.mxu0 0.0
    %1315 = vmatpush1.msra.mxu0 %v1276
    %1316 = vmatprep.subr.mxu0 0.0
    %1317 = vmatpush2.msra.mxu0 0.0
    %1318 = vmatprep.subr.mxu0 0.0
    %1319 = vmatpush2.msra.mxu0 0.0
    %1320 = vmatprep.subr.mxu0 0.0
    %1321 = vmatpush2.msra.mxu0 0.0
    %1322 = vmatprep.subr.mxu0 0.0
    %1323 = vmatpush2.msra.mxu0 0.0
    %1324 = vmatprep.subr.mxu0 0.0
    %1325 = vmatpush2.msra.mxu0 0.0
    %1326 = vmatprep.subr.mxu0 0.0
    %1327 = vmatpush2.msra.mxu0 0.0
    %1328 = vmatprep.subr.mxu0 0.0
    %1329 = vmatpush2.msra.mxu0 0.0
    %1330 = vmatprep.subr.mxu0 0.0
    %1331 = vmatpush2.msra.mxu0 0.0
    %1332 = vmatprep.subr.mxu0 0.0
    %1333 = vmatpush2.msra.mxu0 0.0
    %1334 = vmatprep.subr.mxu0 0.0
    %1335 = vmatpush2.msra.mxu0 0.0
    %1336 = vmatprep.subr.mxu0 0.0
    %1337 = vmatpush2.msra.mxu0 0.0
    %1338 = vmatprep.subr.mxu0 0.0
    %1339 = vmatpush2.msra.mxu0 0.0
    %1340 = vmatprep.subr.mxu0 0.0
    %1341 = vmatpush2.msra.mxu0 0.0
    %1342 = vmatprep.subr.mxu0 0.0
    %1343 = vmatpush2.msra.mxu0 0.0
    %1344 = vmatprep.subr.mxu0 0.0
    %1345 = vmatpush2.msra.mxu0 0.0
    %1346 = vmatprep.subr.mxu0 0.0
    %1347 = vmatpush2.msra.mxu0 0.0
    %1348 = vmatprep.mubr.f32.mxu0 0.0
    %1349 = vmatmul.mubr.f32.gmra.mxu0 %v1279
    %v1350 = vpop.f32.mrf.mxu0
    %v1351 = vadd.f32 0.0, %v1350
    %v1352 = vpop.f32.mrf.mxu0
    %1353 = vdwg.mxu0
    %v1354 = vadd.f32 %v1274, %v1351
    %s1355 = scalar_lea.vmem %s8, 64
    %v1356 = vld [vmem:[%s1355] sm:$0xff]
    %v1357 = vld [vmem:[%s1355 + $0x8] sm:$0x3f]
    %v1358 = vrot.slane %v1032, 4
    %v1359 = vsel %vm1036, %v1358, 0
    %v1362 = vsel %vm1040, %v1357, 0
    %1364 = vmatprep.subr.mxu0 0.0
    %1365 = vmatpush1.msra.mxu0 0.0
    %1366 = vmatprep.subr.mxu0 0.0
    %1367 = vmatpush1.msra.mxu0 0.0
    %1368 = vmatprep.subr.mxu0 0.0
    %1369 = vmatpush1.msra.mxu0 0.0
    %1370 = vmatprep.subr.mxu0 0.0
    %1371 = vmatpush1.msra.mxu0 0.0
    %1372 = vmatprep.subr.mxu0 0.0
    %1373 = vmatpush1.msra.mxu0 0.0
    %1374 = vmatprep.subr.mxu0 0.0
    %1375 = vmatpush1.msra.mxu0 0.0
    %1376 = vmatprep.subr.mxu0 0.0
    %1377 = vmatpush1.msra.mxu0 0.0
    %1378 = vmatprep.subr.mxu0 0.0
    %1379 = vmatpush1.msra.mxu0 0.0
    %1380 = vmatprep.subr.mxu0 0.0
    %1381 = vmatpush1.msra.mxu0 0.0
    %1382 = vmatprep.subr.mxu0 0.0
    %1383 = vmatpush1.msra.mxu0 0.0
    %1384 = vmatprep.subr.mxu0 0.0
    %1385 = vmatpush1.msra.mxu0 0.0
    %1386 = vmatprep.subr.mxu0 0.0
    %1387 = vmatpush1.msra.mxu0 0.0
    %1388 = vmatprep.subr.mxu0 0.0
    %1389 = vmatpush1.msra.mxu0 0.0
    %1390 = vmatprep.subr.mxu0 0.0
    %1391 = vmatpush1.msra.mxu0 0.0
    %1392 = vmatprep.subr.mxu0 0.0
    %1393 = vmatpush1.msra.mxu0 %v1362
    %1394 = vmatprep.subr.mxu0 0.0
    %1395 = vmatpush1.msra.mxu0 %v1356
    %1396 = vmatprep.subr.mxu0 0.0
    %1397 = vmatpush2.msra.mxu0 0.0
    %1398 = vmatprep.subr.mxu0 0.0
    %1399 = vmatpush2.msra.mxu0 0.0
    %1400 = vmatprep.subr.mxu0 0.0
    %1401 = vmatpush2.msra.mxu0 0.0
    %1402 = vmatprep.subr.mxu0 0.0
    %1403 = vmatpush2.msra.mxu0 0.0
    %1404 = vmatprep.subr.mxu0 0.0
    %1405 = vmatpush2.msra.mxu0 0.0
    %1406 = vmatprep.subr.mxu0 0.0
    %1407 = vmatpush2.msra.mxu0 0.0
    %1408 = vmatprep.subr.mxu0 0.0
    %1409 = vmatpush2.msra.mxu0 0.0
    %1410 = vmatprep.subr.mxu0 0.0
    %1411 = vmatpush2.msra.mxu0 0.0
    %1412 = vmatprep.subr.mxu0 0.0
    %1413 = vmatpush2.msra.mxu0 0.0
    %1414 = vmatprep.subr.mxu0 0.0
    %1415 = vmatpush2.msra.mxu0 0.0
    %1416 = vmatprep.subr.mxu0 0.0
    %1417 = vmatpush2.msra.mxu0 0.0
    %1418 = vmatprep.subr.mxu0 0.0
    %1419 = vmatpush2.msra.mxu0 0.0
    %1420 = vmatprep.subr.mxu0 0.0
    %1421 = vmatpush2.msra.mxu0 0.0
    %1422 = vmatprep.subr.mxu0 0.0
    %1423 = vmatpush2.msra.mxu0 0.0
    %1424 = vmatprep.subr.mxu0 0.0
    %1425 = vmatpush2.msra.mxu0 0.0
    %1426 = vmatprep.subr.mxu0 0.0
    %1427 = vmatpush2.msra.mxu0 0.0
    %1428 = vmatprep.mubr.f32.mxu0 0.0
    %1429 = vmatmul.mubr.f32.gmra.mxu0 %v1359
    %v1430 = vpop.f32.mrf.mxu0
    %v1431 = vadd.f32 0.0, %v1430
    %v1432 = vpop.f32.mrf.mxu0
    %1433 = vdwg.mxu0
    %v1434 = vadd.f32 %v1354, %v1431
    %s1435 = scalar_lea.vmem %s8, 80
    %v1436 = vld [vmem:[%s1435] sm:$0xff]
    %v1437 = vld [vmem:[%s1435 + $0x8] sm:$0x3f]
    %v1438 = vrot.slane %v1032, 5
    %v1439 = vsel %vm1036, %v1438, 0
    %v1442 = vsel %vm1040, %v1437, 0
    %1444 = vmatprep.subr.mxu0 0.0
    %1445 = vmatpush1.msra.mxu0 0.0
    %1446 = vmatprep.subr.mxu0 0.0
    %1447 = vmatpush1.msra.mxu0 0.0
    %1448 = vmatprep.subr.mxu0 0.0
    %1449 = vmatpush1.msra.mxu0 0.0
    %1450 = vmatprep.subr.mxu0 0.0
    %1451 = vmatpush1.msra.mxu0 0.0
    %1452 = vmatprep.subr.mxu0 0.0
    %1453 = vmatpush1.msra.mxu0 0.0
    %1454 = vmatprep.subr.mxu0 0.0
    %1455 = vmatpush1.msra.mxu0 0.0
    %1456 = vmatprep.subr.mxu0 0.0
    %1457 = vmatpush1.msra.mxu0 0.0
    %1458 = vmatprep.subr.mxu0 0.0
    %1459 = vmatpush1.msra.mxu0 0.0
    %1460 = vmatprep.subr.mxu0 0.0
    %1461 = vmatpush1.msra.mxu0 0.0
    %1462 = vmatprep.subr.mxu0 0.0
    %1463 = vmatpush1.msra.mxu0 0.0
    %1464 = vmatprep.subr.mxu0 0.0
    %1465 = vmatpush1.msra.mxu0 0.0
    %1466 = vmatprep.subr.mxu0 0.0
    %1467 = vmatpush1.msra.mxu0 0.0
    %1468 = vmatprep.subr.mxu0 0.0
    %1469 = vmatpush1.msra.mxu0 0.0
    %1470 = vmatprep.subr.mxu0 0.0
    %1471 = vmatpush1.msra.mxu0 0.0
    %1472 = vmatprep.subr.mxu0 0.0
    %1473 = vmatpush1.msra.mxu0 %v1442
    %1474 = vmatprep.subr.mxu0 0.0
    %1475 = vmatpush1.msra.mxu0 %v1436
    %1476 = vmatprep.subr.mxu0 0.0
    %1477 = vmatpush2.msra.mxu0 0.0
    %1478 = vmatprep.subr.mxu0 0.0
    %1479 = vmatpush2.msra.mxu0 0.0
    %1480 = vmatprep.subr.mxu0 0.0
    %1481 = vmatpush2.msra.mxu0 0.0
    %1482 = vmatprep.subr.mxu0 0.0
    %1483 = vmatpush2.msra.mxu0 0.0
    %1484 = vmatprep.subr.mxu0 0.0
    %1485 = vmatpush2.msra.mxu0 0.0
    %1486 = vmatprep.subr.mxu0 0.0
    %1487 = vmatpush2.msra.mxu0 0.0
    %1488 = vmatprep.subr.mxu0 0.0
    %1489 = vmatpush2.msra.mxu0 0.0
    %1490 = vmatprep.subr.mxu0 0.0
    %1491 = vmatpush2.msra.mxu0 0.0
    %1492 = vmatprep.subr.mxu0 0.0
    %1493 = vmatpush2.msra.mxu0 0.0
    %1494 = vmatprep.subr.mxu0 0.0
    %1495 = vmatpush2.msra.mxu0 0.0
    %1496 = vmatprep.subr.mxu0 0.0
    %1497 = vmatpush2.msra.mxu0 0.0
    %1498 = vmatprep.subr.mxu0 0.0
    %1499 = vmatpush2.msra.mxu0 0.0
    %1500 = vmatprep.subr.mxu0 0.0
    %1501 = vmatpush2.msra.mxu0 0.0
    %1502 = vmatprep.subr.mxu0 0.0
    %1503 = vmatpush2.msra.mxu0 0.0
    %1504 = vmatprep.subr.mxu0 0.0
    %1505 = vmatpush2.msra.mxu0 0.0
    %1506 = vmatprep.subr.mxu0 0.0
    %1507 = vmatpush2.msra.mxu0 0.0
    %1508 = vmatprep.mubr.f32.mxu0 0.0
    %1509 = vmatmul.mubr.f32.gmra.mxu0 %v1439
    %v1510 = vpop.f32.mrf.mxu0
    %v1511 = vadd.f32 0.0, %v1510
    %v1512 = vpop.f32.mrf.mxu0
    %1513 = vdwg.mxu0
    %v1514 = vadd.f32 %v1434, %v1511
    %s1515 = scalar_lea.vmem %s8, 96
    %v1516 = vld [vmem:[%s1515] sm:$0xff]
    %v1517 = vld [vmem:[%s1515 + $0x8] sm:$0x3f]
    %v1518 = vrot.slane %v1032, 6
    %v1519 = vsel %vm1036, %v1518, 0
    %v1522 = vsel %vm1040, %v1517, 0
    %1524 = vmatprep.subr.mxu0 0.0
    %1525 = vmatpush1.msra.mxu0 0.0
    %1526 = vmatprep.subr.mxu0 0.0
    %1527 = vmatpush1.msra.mxu0 0.0
    %1528 = vmatprep.subr.mxu0 0.0
    %1529 = vmatpush1.msra.mxu0 0.0
    %1530 = vmatprep.subr.mxu0 0.0
    %1531 = vmatpush1.msra.mxu0 0.0
    %1532 = vmatprep.subr.mxu0 0.0
    %1533 = vmatpush1.msra.mxu0 0.0
    %1534 = vmatprep.subr.mxu0 0.0
    %1535 = vmatpush1.msra.mxu0 0.0
    %1536 = vmatprep.subr.mxu0 0.0
    %1537 = vmatpush1.msra.mxu0 0.0
    %1538 = vmatprep.subr.mxu0 0.0
    %1539 = vmatpush1.msra.mxu0 0.0
    %1540 = vmatprep.subr.mxu0 0.0
    %1541 = vmatpush1.msra.mxu0 0.0
    %1542 = vmatprep.subr.mxu0 0.0
    %1543 = vmatpush1.msra.mxu0 0.0
    %1544 = vmatprep.subr.mxu0 0.0
    %1545 = vmatpush1.msra.mxu0 0.0
    %1546 = vmatprep.subr.mxu0 0.0
    %1547 = vmatpush1.msra.mxu0 0.0
    %1548 = vmatprep.subr.mxu0 0.0
    %1549 = vmatpush1.msra.mxu0 0.0
    %1550 = vmatprep.subr.mxu0 0.0
    %1551 = vmatpush1.msra.mxu0 0.0
    %1552 = vmatprep.subr.mxu0 0.0
    %1553 = vmatpush1.msra.mxu0 %v1522
    %1554 = vmatprep.subr.mxu0 0.0
    %1555 = vmatpush1.msra.mxu0 %v1516
    %1556 = vmatprep.subr.mxu0 0.0
    %1557 = vmatpush2.msra.mxu0 0.0
    %1558 = vmatprep.subr.mxu0 0.0
    %1559 = vmatpush2.msra.mxu0 0.0
    %1560 = vmatprep.subr.mxu0 0.0
    %1561 = vmatpush2.msra.mxu0 0.0
    %1562 = vmatprep.subr.mxu0 0.0
    %1563 = vmatpush2.msra.mxu0 0.0
    %1564 = vmatprep.subr.mxu0 0.0
    %1565 = vmatpush2.msra.mxu0 0.0
    %1566 = vmatprep.subr.mxu0 0.0
    %1567 = vmatpush2.msra.mxu0 0.0
    %1568 = vmatprep.subr.mxu0 0.0
    %1569 = vmatpush2.msra.mxu0 0.0
    %1570 = vmatprep.subr.mxu0 0.0
    %1571 = vmatpush2.msra.mxu0 0.0
    %1572 = vmatprep.subr.mxu0 0.0
    %1573 = vmatpush2.msra.mxu0 0.0
    %1574 = vmatprep.subr.mxu0 0.0
    %1575 = vmatpush2.msra.mxu0 0.0
    %1576 = vmatprep.subr.mxu0 0.0
    %1577 = vmatpush2.msra.mxu0 0.0
    %1578 = vmatprep.subr.mxu0 0.0
    %1579 = vmatpush2.msra.mxu0 0.0
    %1580 = vmatprep.subr.mxu0 0.0
    %1581 = vmatpush2.msra.mxu0 0.0
    %1582 = vmatprep.subr.mxu0 0.0
    %1583 = vmatpush2.msra.mxu0 0.0
    %1584 = vmatprep.subr.mxu0 0.0
    %1585 = vmatpush2.msra.mxu0 0.0
    %1586 = vmatprep.subr.mxu0 0.0
    %1587 = vmatpush2.msra.mxu0 0.0
    %1588 = vmatprep.mubr.f32.mxu0 0.0
    %1589 = vmatmul.mubr.f32.gmra.mxu0 %v1519
    %v1590 = vpop.f32.mrf.mxu0
    %v1591 = vadd.f32 0.0, %v1590
    %v1592 = vpop.f32.mrf.mxu0
    %1593 = vdwg.mxu0
    %v1594 = vadd.f32 %v1514, %v1591
    %s1595 = scalar_lea.vmem %s8, 112
    %v1596 = vld [vmem:[%s1595] sm:$0xff]
    %v1597 = vld [vmem:[%s1595 + $0x8] sm:$0x3f]
    %v1598 = vrot.slane %v1032, 7
    %v1599 = vsel %vm1036, %v1598, 0
    %v1602 = vsel %vm1040, %v1597, 0
    %1604 = vmatprep.subr.mxu0 0.0
    %1605 = vmatpush1.msra.mxu0 0.0
    %1606 = vmatprep.subr.mxu0 0.0
    %1607 = vmatpush1.msra.mxu0 0.0
    %1608 = vmatprep.subr.mxu0 0.0
    %1609 = vmatpush1.msra.mxu0 0.0
    %1610 = vmatprep.subr.mxu0 0.0
    %1611 = vmatpush1.msra.mxu0 0.0
    %1612 = vmatprep.subr.mxu0 0.0
    %1613 = vmatpush1.msra.mxu0 0.0
    %1614 = vmatprep.subr.mxu0 0.0
    %1615 = vmatpush1.msra.mxu0 0.0
    %1616 = vmatprep.subr.mxu0 0.0
    %1617 = vmatpush1.msra.mxu0 0.0
    %1618 = vmatprep.subr.mxu0 0.0
    %1619 = vmatpush1.msra.mxu0 0.0
    %1620 = vmatprep.subr.mxu0 0.0
    %1621 = vmatpush1.msra.mxu0 0.0
    %1622 = vmatprep.subr.mxu0 0.0
    %1623 = vmatpush1.msra.mxu0 0.0
    %1624 = vmatprep.subr.mxu0 0.0
    %1625 = vmatpush1.msra.mxu0 0.0
    %1626 = vmatprep.subr.mxu0 0.0
    %1627 = vmatpush1.msra.mxu0 0.0
    %1628 = vmatprep.subr.mxu0 0.0
    %1629 = vmatpush1.msra.mxu0 0.0
    %1630 = vmatprep.subr.mxu0 0.0
    %1631 = vmatpush1.msra.mxu0 0.0
    %1632 = vmatprep.subr.mxu0 0.0
    %1633 = vmatpush1.msra.mxu0 %v1602
    %1634 = vmatprep.subr.mxu0 0.0
    %1635 = vmatpush1.msra.mxu0 %v1596
    %1636 = vmatprep.subr.mxu0 0.0
    %1637 = vmatpush2.msra.mxu0 0.0
    %1638 = vmatprep.subr.mxu0 0.0
    %1639 = vmatpush2.msra.mxu0 0.0
    %1640 = vmatprep.subr.mxu0 0.0
    %1641 = vmatpush2.msra.mxu0 0.0
    %1642 = vmatprep.subr.mxu0 0.0
    %1643 = vmatpush2.msra.mxu0 0.0
    %1644 = vmatprep.subr.mxu0 0.0
    %1645 = vmatpush2.msra.mxu0 0.0
    %1646 = vmatprep.subr.mxu0 0.0
    %1647 = vmatpush2.msra.mxu0 0.0
    %1648 = vmatprep.subr.mxu0 0.0
    %1649 = vmatpush2.msra.mxu0 0.0
    %1650 = vmatprep.subr.mxu0 0.0
    %1651 = vmatpush2.msra.mxu0 0.0
    %1652 = vmatprep.subr.mxu0 0.0
    %1653 = vmatpush2.msra.mxu0 0.0
    %1654 = vmatprep.subr.mxu0 0.0
    %1655 = vmatpush2.msra.mxu0 0.0
    %1656 = vmatprep.subr.mxu0 0.0
    %1657 = vmatpush2.msra.mxu0 0.0
    %1658 = vmatprep.subr.mxu0 0.0
    %1659 = vmatpush2.msra.mxu0 0.0
    %1660 = vmatprep.subr.mxu0 0.0
    %1661 = vmatpush2.msra.mxu0 0.0
    %1662 = vmatprep.subr.mxu0 0.0
    %1663 = vmatpush2.msra.mxu0 0.0
    %1664 = vmatprep.subr.mxu0 0.0
    %1665 = vmatpush2.msra.mxu0 0.0
    %1666 = vmatprep.subr.mxu0 0.0
    %1667 = vmatpush2.msra.mxu0 0.0
    %1668 = vmatprep.mubr.f32.mxu0 0.0
    %1669 = vmatmul.mubr.f32.gmra.mxu0 %v1599
    %v1670 = vpop.f32.mrf.mxu0
    %v1671 = vadd.f32 0.0, %v1670
    %v1672 = vpop.f32.mrf.mxu0
    %1673 = vdwg.mxu0
    %v1674 = vadd.f32 %v1594, %v1671
    %v1675 = vmax.f32 %v1674, 0.0
    %v1676 = vld [vmem:[%s10] sm:$0xff]
    %v1677 = vld [vmem:[%s10 + $0x8] sm:$0xff]
    %v1678 = vld [vmem:[%s10 + $0x10] sm:$0xff]
    %v1679 = vld [vmem:[%s10 + $0x18] sm:$0xff]
    %v1680 = vld [vmem:[%s11] sm:$0x1]
    %vm1681 = vcmask 261120
    %v1683 = vsel %vm1681, %v1675, 0
    %1685 = vmatprep.subr.mxu0 0.0
    %1686 = vmatpush1.msra.mxu0 0.0
    %1687 = vmatprep.subr.mxu0 0.0
    %1688 = vmatpush1.msra.mxu0 0.0
    %1689 = vmatprep.subr.mxu0 0.0
    %1690 = vmatpush1.msra.mxu0 0.0
    %1691 = vmatprep.subr.mxu0 0.0
    %1692 = vmatpush1.msra.mxu0 0.0
    %1693 = vmatprep.subr.mxu0 0.0
    %1694 = vmatpush1.msra.mxu0 0.0
    %1695 = vmatprep.subr.mxu0 0.0
    %1696 = vmatpush1.msra.mxu0 0.0
    %1697 = vmatprep.subr.mxu0 0.0
    %1698 = vmatpush1.msra.mxu0 0.0
    %1699 = vmatprep.subr.mxu0 0.0
    %1700 = vmatpush1.msra.mxu0 0.0
    %1701 = vmatprep.subr.mxu0 0.0
    %1702 = vmatpush1.msra.mxu0 0.0
    %1703 = vmatprep.subr.mxu0 0.0
    %1704 = vmatpush1.msra.mxu0 0.0
    %1705 = vmatprep.subr.mxu0 0.0
    %1706 = vmatpush1.msra.mxu0 0.0
    %1707 = vmatprep.subr.mxu0 0.0
    %1708 = vmatpush1.msra.mxu0 0.0
    %1709 = vmatprep.subr.mxu0 0.0
    %1710 = vmatpush1.msra.mxu0 %v1679
    %1711 = vmatprep.subr.mxu0 0.0
    %1712 = vmatpush1.msra.mxu0 %v1678
    %1713 = vmatprep.subr.mxu0 0.0
    %1714 = vmatpush1.msra.mxu0 %v1677
    %1715 = vmatprep.subr.mxu0 0.0
    %1716 = vmatpush1.msra.mxu0 %v1676
    %1717 = vmatprep.subr.mxu0 0.0
    %1718 = vmatpush2.msra.mxu0 0.0
    %1719 = vmatprep.subr.mxu0 0.0
    %1720 = vmatpush2.msra.mxu0 0.0
    %1721 = vmatprep.subr.mxu0 0.0
    %1722 = vmatpush2.msra.mxu0 0.0
    %1723 = vmatprep.subr.mxu0 0.0
    %1724 = vmatpush2.msra.mxu0 0.0
    %1725 = vmatprep.subr.mxu0 0.0
    %1726 = vmatpush2.msra.mxu0 0.0
    %1727 = vmatprep.subr.mxu0 0.0
    %1728 = vmatpush2.msra.mxu0 0.0
    %1729 = vmatprep.subr.mxu0 0.0
    %1730 = vmatpush2.msra.mxu0 0.0
    %1731 = vmatprep.subr.mxu0 0.0
    %1732 = vmatpush2.msra.mxu0 0.0
    %1733 = vmatprep.subr.mxu0 0.0
    %1734 = vmatpush2.msra.mxu0 0.0
    %1735 = vmatprep.subr.mxu0 0.0
    %1736 = vmatpush2.msra.mxu0 0.0
    %1737 = vmatprep.subr.mxu0 0.0
    %1738 = vmatpush2.msra.mxu0 0.0
    %1739 = vmatprep.subr.mxu0 0.0
    %1740 = vmatpush2.msra.mxu0 0.0
    %1741 = vmatprep.subr.mxu0 0.0
    %1742 = vmatpush2.msra.mxu0 0.0
    %1743 = vmatprep.subr.mxu0 0.0
    %1744 = vmatpush2.msra.mxu0 0.0
    %1745 = vmatprep.subr.mxu0 0.0
    %1746 = vmatpush2.msra.mxu0 0.0
    %1747 = vmatprep.subr.mxu0 0.0
    %1748 = vmatpush2.msra.mxu0 0.0
    %1749 = vmatprep.mubr.f32.mxu0 0.0
    %1750 = vmatmul.mubr.f32.gmra.mxu0 %v1683
    %v1751 = vpop.f32.mrf.mxu0
    %v1752 = vadd.f32 %v1680, %v1751
    %v1753 = vpop.f32.mrf.mxu0
    %1754 = vdwg.mxu0
    %vm1755 = vcmask 32768
    %v1756 = vsel %vm1755, %v1752, -inf
    %1757 = vmax.xlane.f32.xlu0 %v1756
    %v1758 = vpop.xlane.xlu0 %1757
    %v1759 = vsub.f32 %v1752, %v1758
    %v1760 = vmul.f32 %v1759, 1.442695
    %v1761 = vpow.pop %v1760
    %v1762 = vsel %vm1755, %v1761, 0.0
    %1763 = vadd.xlane.f32.xlu0 %v1762
    %v1764 = vpop.xlane.xlu0 %1763
    %v1765 = vlog2.pop %v1764
    %v1766 = vmul.f32 %v1765, 0.6931472
    %v1767 = vsub.f32 %v1759, %v1766
    %1768 = vst.msk [vmem:[#allocation3] sm:$0x1] %vm1755, %v1767
    %s1769 = scalar_lea.vmem %s0, 4
    %v1770 = vld [vmem:[%s1769] sm:$0xf]
    %1771 = vst.msk [vmem:[#allocation2] sm:$0xff] %vm43, 0.0
    %1773 = vrot.lane.b32.xlu0 %v1770, 1
    %v1774 = vpop.permute.xlu0 %1773
    %1776 = vst.msk [vmem:[#allocation2] sm:$0xf] %vm49, %v1774
    %v1777 = vld [vmem:[#allocation2] sm:$0xf]
    %v1778 = vld [vmem:[%s2] sm:$0xff]
    %v1779 = vld [vmem:[%s1] sm:$0xff]
    %v1781 = vsel %vm54, %v1779, 0
    %v1784 = vsel %vm58, %v1777, 0
    %1786 = vmatprep.subr.mxu0 0.0
    %1787 = vmatpush1.msra.mxu0 0.0
    %1788 = vmatprep.subr.mxu0 0.0
    %1789 = vmatpush1.msra.mxu0 0.0
    %1790 = vmatprep.subr.mxu0 0.0
    %1791 = vmatpush1.msra.mxu0 0.0
    %1792 = vmatprep.subr.mxu0 0.0
    %1793 = vmatpush1.msra.mxu0 0.0
    %1794 = vmatprep.subr.mxu0 0.0
    %1795 = vmatpush1.msra.mxu0 0.0
    %1796 = vmatprep.subr.mxu0 0.0
    %1797 = vmatpush1.msra.mxu0 0.0
    %1798 = vmatprep.subr.mxu0 0.0
    %1799 = vmatpush1.msra.mxu0 0.0
    %1800 = vmatprep.subr.mxu0 0.0
    %1801 = vmatpush1.msra.mxu0 0.0
    %1802 = vmatprep.subr.mxu0 0.0
    %1803 = vmatpush1.msra.mxu0 0.0
    %1804 = vmatprep.subr.mxu0 0.0
    %1805 = vmatpush1.msra.mxu0 0.0
    %1806 = vmatprep.subr.mxu0 0.0
    %1807 = vmatpush1.msra.mxu0 0.0
    %1808 = vmatprep.subr.mxu0 0.0
    %1809 = vmatpush1.msra.mxu0 0.0
    %1810 = vmatprep.subr.mxu0 0.0
    %1811 = vmatpush1.msra.mxu0 0.0
    %1812 = vmatprep.subr.mxu0 0.0
    %1813 = vmatpush1.msra.mxu0 0.0
    %1814 = vmatprep.subr.mxu0 0.0
    %1815 = vmatpush1.msra.mxu0 0.0
    %1816 = vmatprep.subr.mxu0 0.0
    %1817 = vmatpush1.msra.mxu0 %v1784
    %1818 = vmatprep.subr.mxu0 0.0
    %1819 = vmatpush2.msra.mxu0 0.0
    %1820 = vmatprep.subr.mxu0 0.0
    %1821 = vmatpush2.msra.mxu0 0.0
    %1822 = vmatprep.subr.mxu0 0.0
    %1823 = vmatpush2.msra.mxu0 0.0
    %1824 = vmatprep.subr.mxu0 0.0
    %1825 = vmatpush2.msra.mxu0 0.0
    %1826 = vmatprep.subr.mxu0 0.0
    %1827 = vmatpush2.msra.mxu0 0.0
    %1828 = vmatprep.subr.mxu0 0.0
    %1829 = vmatpush2.msra.mxu0 0.0
    %1830 = vmatprep.subr.mxu0 0.0
    %1831 = vmatpush2.msra.mxu0 0.0
    %1832 = vmatprep.subr.mxu0 0.0
    %1833 = vmatpush2.msra.mxu0 0.0
    %1834 = vmatprep.subr.mxu0 0.0
    %1835 = vmatpush2.msra.mxu0 0.0
    %1836 = vmatprep.subr.mxu0 0.0
    %1837 = vmatpush2.msra.mxu0 0.0
    %1838 = vmatprep.subr.mxu0 0.0
    %1839 = vmatpush2.msra.mxu0 0.0
    %1840 = vmatprep.subr.mxu0 0.0
    %1841 = vmatpush2.msra.mxu0 0.0
    %1842 = vmatprep.subr.mxu0 0.0
    %1843 = vmatpush2.msra.mxu0 0.0
    %1844 = vmatprep.subr.mxu0 0.0
    %1845 = vmatpush2.msra.mxu0 0.0
    %1846 = vmatprep.subr.mxu0 0.0
    %1847 = vmatpush2.msra.mxu0 0.0
    %1848 = vmatprep.subr.mxu0 0.0
    %1849 = vmatpush2.msra.mxu0 0.0
    %1850 = vmatprep.mubr.f32.mxu0 0.0
    %1851 = vmatmul.mubr.f32.gmra.mxu0 %v1781
    %v1852 = vpop.f32.mrf.mxu0
    %v1853 = vadd.f32 0.0, %v1852
    %v1854 = vpop.f32.mrf.mxu0
    %1855 = vdwg.mxu0
    %1857 = vset.pattern.permute.xlu0 0
    %1858 = vperm.xlu0 %1857, %v1778
    %v1859 = vpop.permute.xlu0 %1858
    %v1861 = vadd.f32 %v1859, %v1853
    %v1862 = vld [vmem:[%s138] sm:$0xff]
    %1863 = vrot.lane.b32.xlu0 %v1777, 127
    %v1864 = vpop.permute.xlu0 %1863
    %v1866 = vsel %vm54, %v1862, 0
    %v1868 = vsel %vm58, %v1864, 0
    %1870 = vmatprep.subr.mxu0 0.0
    %1871 = vmatpush1.msra.mxu0 0.0
    %1872 = vmatprep.subr.mxu0 0.0
    %1873 = vmatpush1.msra.mxu0 0.0
    %1874 = vmatprep.subr.mxu0 0.0
    %1875 = vmatpush1.msra.mxu0 0.0
    %1876 = vmatprep.subr.mxu0 0.0
    %1877 = vmatpush1.msra.mxu0 0.0
    %1878 = vmatprep.subr.mxu0 0.0
    %1879 = vmatpush1.msra.mxu0 0.0
    %1880 = vmatprep.subr.mxu0 0.0
    %1881 = vmatpush1.msra.mxu0 0.0
    %1882 = vmatprep.subr.mxu0 0.0
    %1883 = vmatpush1.msra.mxu0 0.0
    %1884 = vmatprep.subr.mxu0 0.0
    %1885 = vmatpush1.msra.mxu0 0.0
    %1886 = vmatprep.subr.mxu0 0.0
    %1887 = vmatpush1.msra.mxu0 0.0
    %1888 = vmatprep.subr.mxu0 0.0
    %1889 = vmatpush1.msra.mxu0 0.0
    %1890 = vmatprep.subr.mxu0 0.0
    %1891 = vmatpush1.msra.mxu0 0.0
    %1892 = vmatprep.subr.mxu0 0.0
    %1893 = vmatpush1.msra.mxu0 0.0
    %1894 = vmatprep.subr.mxu0 0.0
    %1895 = vmatpush1.msra.mxu0 0.0
    %1896 = vmatprep.subr.mxu0 0.0
    %1897 = vmatpush1.msra.mxu0 0.0
    %1898 = vmatprep.subr.mxu0 0.0
    %1899 = vmatpush1.msra.mxu0 0.0
    %1900 = vmatprep.subr.mxu0 0.0
    %1901 = vmatpush1.msra.mxu0 %v1868
    %1902 = vmatprep.subr.mxu0 0.0
    %1903 = vmatpush2.msra.mxu0 0.0
    %1904 = vmatprep.subr.mxu0 0.0
    %1905 = vmatpush2.msra.mxu0 0.0
    %1906 = vmatprep.subr.mxu0 0.0
    %1907 = vmatpush2.msra.mxu0 0.0
    %1908 = vmatprep.subr.mxu0 0.0
    %1909 = vmatpush2.msra.mxu0 0.0
    %1910 = vmatprep.subr.mxu0 0.0
    %1911 = vmatpush2.msra.mxu0 0.0
    %1912 = vmatprep.subr.mxu0 0.0
    %1913 = vmatpush2.msra.mxu0 0.0
    %1914 = vmatprep.subr.mxu0 0.0
    %1915 = vmatpush2.msra.mxu0 0.0
    %1916 = vmatprep.subr.mxu0 0.0
    %1917 = vmatpush2.msra.mxu0 0.0
    %1918 = vmatprep.subr.mxu0 0.0
    %1919 = vmatpush2.msra.mxu0 0.0
    %1920 = vmatprep.subr.mxu0 0.0
    %1921 = vmatpush2.msra.mxu0 0.0
    %1922 = vmatprep.subr.mxu0 0.0
    %1923 = vmatpush2.msra.mxu0 0.0
    %1924 = vmatprep.subr.mxu0 0.0
    %1925 = vmatpush2.msra.mxu0 0.0
    %1926 = vmatprep.subr.mxu0 0.0
    %1927 = vmatpush2.msra.mxu0 0.0
    %1928 = vmatprep.subr.mxu0 0.0
    %1929 = vmatpush2.msra.mxu0 0.0
    %1930 = vmatprep.subr.mxu0 0.0
    %1931 = vmatpush2.msra.mxu0 0.0
    %1932 = vmatprep.subr.mxu0 0.0
    %1933 = vmatpush2.msra.mxu0 0.0
    %1934 = vmatprep.mubr.f32.mxu0 0.0
    %1935 = vmatmul.mubr.f32.gmra.mxu0 %v1866
    %v1936 = vpop.f32.mrf.mxu0
    %v1937 = vadd.f32 0.0, %v1936
    %v1938 = vpop.f32.mrf.mxu0
    %1939 = vdwg.mxu0
    %v1940 = vadd.f32 %v1861, %v1937
    %v1941 = vld [vmem:[%s218] sm:$0xff]
    %1942 = vrot.lane.b32.xlu0 %v1777, 126
    %v1943 = vpop.permute.xlu0 %1942
    %v1945 = vsel %vm54, %v1941, 0
    %v1947 = vsel %vm58, %v1943, 0
    %1949 = vmatprep.subr.mxu0 0.0
    %1950 = vmatpush1.msra.mxu0 0.0
    %1951 = vmatprep.subr.mxu0 0.0
    %1952 = vmatpush1.msra.mxu0 0.0
    %1953 = vmatprep.subr.mxu0 0.0
    %1954 = vmatpush1.msra.mxu0 0.0
    %1955 = vmatprep.subr.mxu0 0.0
    %1956 = vmatpush1.msra.mxu0 0.0
    %1957 = vmatprep.subr.mxu0 0.0
    %1958 = vmatpush1.msra.mxu0 0.0
    %1959 = vmatprep.subr.mxu0 0.0
    %1960 = vmatpush1.msra.mxu0 0.0
    %1961 = vmatprep.subr.mxu0 0.0
    %1962 = vmatpush1.msra.mxu0 0.0
    %1963 = vmatprep.subr.mxu0 0.0
    %1964 = vmatpush1.msra.mxu0 0.0
    %1965 = vmatprep.subr.mxu0 0.0
    %1966 = vmatpush1.msra.mxu0 0.0
    %1967 = vmatprep.subr.mxu0 0.0
    %1968 = vmatpush1.msra.mxu0 0.0
    %1969 = vmatprep.subr.mxu0 0.0
    %1970 = vmatpush1.msra.mxu0 0.0
    %1971 = vmatprep.subr.mxu0 0.0
    %1972 = vmatpush1.msra.mxu0 0.0
    %1973 = vmatprep.subr.mxu0 0.0
    %1974 = vmatpush1.msra.mxu0 0.0
    %1975 = vmatprep.subr.mxu0 0.0
    %1976 = vmatpush1.msra.mxu0 0.0
    %1977 = vmatprep.subr.mxu0 0.0
    %1978 = vmatpush1.msra.mxu0 0.0
    %1979 = vmatprep.subr.mxu0 0.0
    %1980 = vmatpush1.msra.mxu0 %v1947
    %1981 = vmatprep.subr.mxu0 0.0
    %1982 = vmatpush2.msra.mxu0 0.0
    %1983 = vmatprep.subr.mxu0 0.0
    %1984 = vmatpush2.msra.mxu0 0.0
    %1985 = vmatprep.subr.mxu0 0.0
    %1986 = vmatpush2.msra.mxu0 0.0
    %1987 = vmatprep.subr.mxu0 0.0
    %1988 = vmatpush2.msra.mxu0 0.0
    %1989 = vmatprep.subr.mxu0 0.0
    %1990 = vmatpush2.msra.mxu0 0.0
    %1991 = vmatprep.subr.mxu0 0.0
    %1992 = vmatpush2.msra.mxu0 0.0
    %1993 = vmatprep.subr.mxu0 0.0
    %1994 = vmatpush2.msra.mxu0 0.0
    %1995 = vmatprep.subr.mxu0 0.0
    %1996 = vmatpush2.msra.mxu0 0.0
    %1997 = vmatprep.subr.mxu0 0.0
    %1998 = vmatpush2.msra.mxu0 0.0
    %1999 = vmatprep.subr.mxu0 0.0
    %2000 = vmatpush2.msra.mxu0 0.0
    %2001 = vmatprep.subr.mxu0 0.0
    %2002 = vmatpush2.msra.mxu0 0.0
    %2003 = vmatprep.subr.mxu0 0.0
    %2004 = vmatpush2.msra.mxu0 0.0
    %2005 = vmatprep.subr.mxu0 0.0
    %2006 = vmatpush2.msra.mxu0 0.0
    %2007 = vmatprep.subr.mxu0 0.0
    %2008 = vmatpush2.msra.mxu0 0.0
    %2009 = vmatprep.subr.mxu0 0.0
    %2010 = vmatpush2.msra.mxu0 0.0
    %2011 = vmatprep.subr.mxu0 0.0
    %2012 = vmatpush2.msra.mxu0 0.0
    %2013 = vmatprep.mubr.f32.mxu0 0.0
    %2014 = vmatmul.mubr.f32.gmra.mxu0 %v1945
    %v2015 = vpop.f32.mrf.mxu0
    %v2016 = vadd.f32 0.0, %v2015
    %v2017 = vpop.f32.mrf.mxu0
    %2018 = vdwg.mxu0
    %v2019 = vadd.f32 %v1940, %v2016
    %v2020 = vmax.f32 %v2019, 0.0
    %v2021 = vld [vmem:[%s4] sm:$0xff]
    %v2022 = vld [vmem:[%s3] sm:$0xff]
    %v2024 = vsel %vm301, %v2022, 0
    %2026 = vmatprep.subr.mxu0 0.0
    %2027 = vmatpush1.msra.mxu0 0.0
    %2028 = vmatprep.subr.mxu0 0.0
    %2029 = vmatpush1.msra.mxu0 0.0
    %2030 = vmatprep.subr.mxu0 0.0
    %2031 = vmatpush1.msra.mxu0 0.0
    %2032 = vmatprep.subr.mxu0 0.0
    %2033 = vmatpush1.msra.mxu0 0.0
    %2034 = vmatprep.subr.mxu0 0.0
    %2035 = vmatpush1.msra.mxu0 0.0
    %2036 = vmatprep.subr.mxu0 0.0
    %2037 = vmatpush1.msra.mxu0 0.0
    %2038 = vmatprep.subr.mxu0 0.0
    %2039 = vmatpush1.msra.mxu0 0.0
    %2040 = vmatprep.subr.mxu0 0.0
    %2041 = vmatpush1.msra.mxu0 0.0
    %2042 = vmatprep.subr.mxu0 0.0
    %2043 = vmatpush1.msra.mxu0 0.0
    %2044 = vmatprep.subr.mxu0 0.0
    %2045 = vmatpush1.msra.mxu0 0.0
    %2046 = vmatprep.subr.mxu0 0.0
    %2047 = vmatpush1.msra.mxu0 0.0
    %2048 = vmatprep.subr.mxu0 0.0
    %2049 = vmatpush1.msra.mxu0 0.0
    %2050 = vmatprep.subr.mxu0 0.0
    %2051 = vmatpush1.msra.mxu0 0.0
    %2052 = vmatprep.subr.mxu0 0.0
    %2053 = vmatpush1.msra.mxu0 0.0
    %2054 = vmatprep.subr.mxu0 0.0
    %2055 = vmatpush1.msra.mxu0 0.0
    %2056 = vmatprep.subr.mxu0 0.0
    %2057 = vmatpush1.msra.mxu0 %v2020
    %2058 = vmatprep.subr.mxu0 0.0
    %2059 = vmatpush2.msra.mxu0 0.0
    %2060 = vmatprep.subr.mxu0 0.0
    %2061 = vmatpush2.msra.mxu0 0.0
    %2062 = vmatprep.subr.mxu0 0.0
    %2063 = vmatpush2.msra.mxu0 0.0
    %2064 = vmatprep.subr.mxu0 0.0
    %2065 = vmatpush2.msra.mxu0 0.0
    %2066 = vmatprep.subr.mxu0 0.0
    %2067 = vmatpush2.msra.mxu0 0.0
    %2068 = vmatprep.subr.mxu0 0.0
    %2069 = vmatpush2.msra.mxu0 0.0
    %2070 = vmatprep.subr.mxu0 0.0
    %2071 = vmatpush2.msra.mxu0 0.0
    %2072 = vmatprep.subr.mxu0 0.0
    %2073 = vmatpush2.msra.mxu0 0.0
    %2074 = vmatprep.subr.mxu0 0.0
    %2075 = vmatpush2.msra.mxu0 0.0
    %2076 = vmatprep.subr.mxu0 0.0
    %2077 = vmatpush2.msra.mxu0 0.0
    %2078 = vmatprep.subr.mxu0 0.0
    %2079 = vmatpush2.msra.mxu0 0.0
    %2080 = vmatprep.subr.mxu0 0.0
    %2081 = vmatpush2.msra.mxu0 0.0
    %2082 = vmatprep.subr.mxu0 0.0
    %2083 = vmatpush2.msra.mxu0 0.0
    %2084 = vmatprep.subr.mxu0 0.0
    %2085 = vmatpush2.msra.mxu0 0.0
    %2086 = vmatprep.subr.mxu0 0.0
    %2087 = vmatpush2.msra.mxu0 0.0
    %2088 = vmatprep.subr.mxu0 0.0
    %2089 = vmatpush2.msra.mxu0 0.0
    %2090 = vmatprep.mubr.f32.mxu0 0.0
    %2091 = vmatmul.mubr.f32.gmra.mxu0 %v2024
    %v2092 = vpop.f32.mrf.mxu0
    %v2093 = vadd.f32 0.0, %v2092
    %v2094 = vpop.f32.mrf.mxu0
    %2095 = vdwg.mxu0
    %2097 = vset.pattern.permute.xlu0 0
    %2098 = vperm.xlu0 %2097, %v2021
    %v2099 = vpop.permute.xlu0 %2098
    %v2101 = vadd.f32 %v2099, %v2093
    %v2102 = vld [vmem:[%s381] sm:$0xff]
    %2104 = vrot.lane.b32.xlu0 %v2020, 127
    %v2105 = vpop.permute.xlu0 %2104
    %v2108 = vsel %vm301, %v2102, 0
    %2110 = vmatprep.subr.mxu0 0.0
    %2111 = vmatpush1.msra.mxu0 0.0
    %2112 = vmatprep.subr.mxu0 0.0
    %2113 = vmatpush1.msra.mxu0 0.0
    %2114 = vmatprep.subr.mxu0 0.0
    %2115 = vmatpush1.msra.mxu0 0.0
    %2116 = vmatprep.subr.mxu0 0.0
    %2117 = vmatpush1.msra.mxu0 0.0
    %2118 = vmatprep.subr.mxu0 0.0
    %2119 = vmatpush1.msra.mxu0 0.0
    %2120 = vmatprep.subr.mxu0 0.0
    %2121 = vmatpush1.msra.mxu0 0.0
    %2122 = vmatprep.subr.mxu0 0.0
    %2123 = vmatpush1.msra.mxu0 0.0
    %2124 = vmatprep.subr.mxu0 0.0
    %2125 = vmatpush1.msra.mxu0 0.0
    %2126 = vmatprep.subr.mxu0 0.0
    %2127 = vmatpush1.msra.mxu0 0.0
    %2128 = vmatprep.subr.mxu0 0.0
    %2129 = vmatpush1.msra.mxu0 0.0
    %2130 = vmatprep.subr.mxu0 0.0
    %2131 = vmatpush1.msra.mxu0 0.0
    %2132 = vmatprep.subr.mxu0 0.0
    %2133 = vmatpush1.msra.mxu0 0.0
    %2134 = vmatprep.subr.mxu0 0.0
    %2135 = vmatpush1.msra.mxu0 0.0
    %2136 = vmatprep.subr.mxu0 0.0
    %2137 = vmatpush1.msra.mxu0 0.0
    %2138 = vmatprep.subr.mxu0 0.0
    %2139 = vmatpush1.msra.mxu0 0.0
    %2140 = vmatprep.subr.mxu0 0.0
    %2141 = vmatpush1.msra.mxu0 %v2105
    %2142 = vmatprep.subr.mxu0 0.0
    %2143 = vmatpush2.msra.mxu0 0.0
    %2144 = vmatprep.subr.mxu0 0.0
    %2145 = vmatpush2.msra.mxu0 0.0
    %2146 = vmatprep.subr.mxu0 0.0
    %2147 = vmatpush2.msra.mxu0 0.0
    %2148 = vmatprep.subr.mxu0 0.0
    %2149 = vmatpush2.msra.mxu0 0.0
    %2150 = vmatprep.subr.mxu0 0.0
    %2151 = vmatpush2.msra.mxu0 0.0
    %2152 = vmatprep.subr.mxu0 0.0
    %2153 = vmatpush2.msra.mxu0 0.0
    %2154 = vmatprep.subr.mxu0 0.0
    %2155 = vmatpush2.msra.mxu0 0.0
    %2156 = vmatprep.subr.mxu0 0.0
    %2157 = vmatpush2.msra.mxu0 0.0
    %2158 = vmatprep.subr.mxu0 0.0
    %2159 = vmatpush2.msra.mxu0 0.0
    %2160 = vmatprep.subr.mxu0 0.0
    %2161 = vmatpush2.msra.mxu0 0.0
    %2162 = vmatprep.subr.mxu0 0.0
    %2163 = vmatpush2.msra.mxu0 0.0
    %2164 = vmatprep.subr.mxu0 0.0
    %2165 = vmatpush2.msra.mxu0 0.0
    %2166 = vmatprep.subr.mxu0 0.0
    %2167 = vmatpush2.msra.mxu0 0.0
    %2168 = vmatprep.subr.mxu0 0.0
    %2169 = vmatpush2.msra.mxu0 0.0
    %2170 = vmatprep.subr.mxu0 0.0
    %2171 = vmatpush2.msra.mxu0 0.0
    %2172 = vmatprep.subr.mxu0 0.0
    %2173 = vmatpush2.msra.mxu0 0.0
    %2174 = vmatprep.mubr.f32.mxu0 0.0
    %2175 = vmatmul.mubr.f32.gmra.mxu0 %v2108
    %v2176 = vpop.f32.mrf.mxu0
    %v2177 = vadd.f32 0.0, %v2176
    %v2178 = vpop.f32.mrf.mxu0
    %2179 = vdwg.mxu0
    %v2180 = vadd.f32 %v2101, %v2177
    %v2181 = vld [vmem:[%s461] sm:$0xff]
    %2182 = vrot.lane.b32.xlu0 %v2020, 126
    %v2183 = vpop.permute.xlu0 %2182
    %v2186 = vsel %vm301, %v2181, 0
    %2188 = vmatprep.subr.mxu0 0.0
    %2189 = vmatpush1.msra.mxu0 0.0
    %2190 = vmatprep.subr.mxu0 0.0
    %2191 = vmatpush1.msra.mxu0 0.0
    %2192 = vmatprep.subr.mxu0 0.0
    %2193 = vmatpush1.msra.mxu0 0.0
    %2194 = vmatprep.subr.mxu0 0.0
    %2195 = vmatpush1.msra.mxu0 0.0
    %2196 = vmatprep.subr.mxu0 0.0
    %2197 = vmatpush1.msra.mxu0 0.0
    %2198 = vmatprep.subr.mxu0 0.0
    %2199 = vmatpush1.msra.mxu0 0.0
    %2200 = vmatprep.subr.mxu0 0.0
    %2201 = vmatpush1.msra.mxu0 0.0
    %2202 = vmatprep.subr.mxu0 0.0
    %2203 = vmatpush1.msra.mxu0 0.0
    %2204 = vmatprep.subr.mxu0 0.0
    %2205 = vmatpush1.msra.mxu0 0.0
    %2206 = vmatprep.subr.mxu0 0.0
    %2207 = vmatpush1.msra.mxu0 0.0
    %2208 = vmatprep.subr.mxu0 0.0
    %2209 = vmatpush1.msra.mxu0 0.0
    %2210 = vmatprep.subr.mxu0 0.0
    %2211 = vmatpush1.msra.mxu0 0.0
    %2212 = vmatprep.subr.mxu0 0.0
    %2213 = vmatpush1.msra.mxu0 0.0
    %2214 = vmatprep.subr.mxu0 0.0
    %2215 = vmatpush1.msra.mxu0 0.0
    %2216 = vmatprep.subr.mxu0 0.0
    %2217 = vmatpush1.msra.mxu0 0.0
    %2218 = vmatprep.subr.mxu0 0.0
    %2219 = vmatpush1.msra.mxu0 %v2183
    %2220 = vmatprep.subr.mxu0 0.0
    %2221 = vmatpush2.msra.mxu0 0.0
    %2222 = vmatprep.subr.mxu0 0.0
    %2223 = vmatpush2.msra.mxu0 0.0
    %2224 = vmatprep.subr.mxu0 0.0
    %2225 = vmatpush2.msra.mxu0 0.0
    %2226 = vmatprep.subr.mxu0 0.0
    %2227 = vmatpush2.msra.mxu0 0.0
    %2228 = vmatprep.subr.mxu0 0.0
    %2229 = vmatpush2.msra.mxu0 0.0
    %2230 = vmatprep.subr.mxu0 0.0
    %2231 = vmatpush2.msra.mxu0 0.0
    %2232 = vmatprep.subr.mxu0 0.0
    %2233 = vmatpush2.msra.mxu0 0.0
    %2234 = vmatprep.subr.mxu0 0.0
    %2235 = vmatpush2.msra.mxu0 0.0
    %2236 = vmatprep.subr.mxu0 0.0
    %2237 = vmatpush2.msra.mxu0 0.0
    %2238 = vmatprep.subr.mxu0 0.0
    %2239 = vmatpush2.msra.mxu0 0.0
    %2240 = vmatprep.subr.mxu0 0.0
    %2241 = vmatpush2.msra.mxu0 0.0
    %2242 = vmatprep.subr.mxu0 0.0
    %2243 = vmatpush2.msra.mxu0 0.0
    %2244 = vmatprep.subr.mxu0 0.0
    %2245 = vmatpush2.msra.mxu0 0.0
    %2246 = vmatprep.subr.mxu0 0.0
    %2247 = vmatpush2.msra.mxu0 0.0
    %2248 = vmatprep.subr.mxu0 0.0
    %2249 = vmatpush2.msra.mxu0 0.0
    %2250 = vmatprep.subr.mxu0 0.0
    %2251 = vmatpush2.msra.mxu0 0.0
    %2252 = vmatprep.mubr.f32.mxu0 0.0
    %2253 = vmatmul.mubr.f32.gmra.mxu0 %v2186
    %v2254 = vpop.f32.mrf.mxu0
    %v2255 = vadd.f32 0.0, %v2254
    %v2256 = vpop.f32.mrf.mxu0
    %2257 = vdwg.mxu0
    %v2258 = vadd.f32 %v2180, %v2255
    %v2259 = vmax.f32 %v2258, 0.0
    %v2260 = vmax.f32 %v2020, %v2105
    %v2261 = vmax.f32 %v2260, %v2183
    %2262 = vst.msk [vmem:[#allocation2] sm:$0xff] %vm43, 0.0
    %2264 = vrot.lane.b32.xlu0 %v2259, 1
    %v2265 = vpop.permute.xlu0 %2264
    %2267 = vst.msk [vmem:[#allocation2] sm:$0xff] %vm548, %v2265
    %v2268 = vld [vmem:[#allocation2] sm:$0xff]
    %v2269 = vld [vmem:[%s7] sm:$0xff]
    %v2270 = vld [vmem:[%s5] sm:$0xff]
    %v2272 = vsel %vm301, %v2270, 0
    %2274 = vmatprep.subr.mxu0 0.0
    %2275 = vmatpush1.msra.mxu0 0.0
    %2276 = vmatprep.subr.mxu0 0.0
    %2277 = vmatpush1.msra.mxu0 0.0
    %2278 = vmatprep.subr.mxu0 0.0
    %2279 = vmatpush1.msra.mxu0 0.0
    %2280 = vmatprep.subr.mxu0 0.0
    %2281 = vmatpush1.msra.mxu0 0.0
    %2282 = vmatprep.subr.mxu0 0.0
    %2283 = vmatpush1.msra.mxu0 0.0
    %2284 = vmatprep.subr.mxu0 0.0
    %2285 = vmatpush1.msra.mxu0 0.0
    %2286 = vmatprep.subr.mxu0 0.0
    %2287 = vmatpush1.msra.mxu0 0.0
    %2288 = vmatprep.subr.mxu0 0.0
    %2289 = vmatpush1.msra.mxu0 0.0
    %2290 = vmatprep.subr.mxu0 0.0
    %2291 = vmatpush1.msra.mxu0 0.0
    %2292 = vmatprep.subr.mxu0 0.0
    %2293 = vmatpush1.msra.mxu0 0.0
    %2294 = vmatprep.subr.mxu0 0.0
    %2295 = vmatpush1.msra.mxu0 0.0
    %2296 = vmatprep.subr.mxu0 0.0
    %2297 = vmatpush1.msra.mxu0 0.0
    %2298 = vmatprep.subr.mxu0 0.0
    %2299 = vmatpush1.msra.mxu0 0.0
    %2300 = vmatprep.subr.mxu0 0.0
    %2301 = vmatpush1.msra.mxu0 0.0
    %2302 = vmatprep.subr.mxu0 0.0
    %2303 = vmatpush1.msra.mxu0 0.0
    %2304 = vmatprep.subr.mxu0 0.0
    %2305 = vmatpush1.msra.mxu0 %v2268
    %2306 = vmatprep.subr.mxu0 0.0
    %2307 = vmatpush2.msra.mxu0 0.0
    %2308 = vmatprep.subr.mxu0 0.0
    %2309 = vmatpush2.msra.mxu0 0.0
    %2310 = vmatprep.subr.mxu0 0.0
    %2311 = vmatpush2.msra.mxu0 0.0
    %2312 = vmatprep.subr.mxu0 0.0
    %2313 = vmatpush2.msra.mxu0 0.0
    %2314 = vmatprep.subr.mxu0 0.0
    %2315 = vmatpush2.msra.mxu0 0.0
    %2316 = vmatprep.subr.mxu0 0.0
    %2317 = vmatpush2.msra.mxu0 0.0
    %2318 = vmatprep.subr.mxu0 0.0
    %2319 = vmatpush2.msra.mxu0 0.0
    %2320 = vmatprep.subr.mxu0 0.0
    %2321 = vmatpush2.msra.mxu0 0.0
    %2322 = vmatprep.subr.mxu0 0.0
    %2323 = vmatpush2.msra.mxu0 0.0
    %2324 = vmatprep.subr.mxu0 0.0
    %2325 = vmatpush2.msra.mxu0 0.0
    %2326 = vmatprep.subr.mxu0 0.0
    %2327 = vmatpush2.msra.mxu0 0.0
    %2328 = vmatprep.subr.mxu0 0.0
    %2329 = vmatpush2.msra.mxu0 0.0
    %2330 = vmatprep.subr.mxu0 0.0
    %2331 = vmatpush2.msra.mxu0 0.0
    %2332 = vmatprep.subr.mxu0 0.0
    %2333 = vmatpush2.msra.mxu0 0.0
    %2334 = vmatprep.subr.mxu0 0.0
    %2335 = vmatpush2.msra.mxu0 0.0
    %2336 = vmatprep.subr.mxu0 0.0
    %2337 = vmatpush2.msra.mxu0 0.0
    %2338 = vmatprep.mubr.f32.mxu0 0.0
    %2339 = vmatmul.mubr.f32.gmra.mxu0 %v2272
    %v2340 = vpop.f32.mrf.mxu0
    %v2341 = vadd.f32 0.0, %v2340
    %v2342 = vpop.f32.mrf.mxu0
    %2343 = vdwg.mxu0
    %2345 = vset.pattern.permute.xlu0 0
    %2346 = vperm.xlu0 %2345, %v2269
    %v2347 = vpop.permute.xlu0 %2346
    %v2349 = vadd.f32 %v2347, %v2341
    %v2350 = vld [vmem:[%s632] sm:$0xff]
    %2352 = vrot.lane.b32.xlu0 %v2268, 127
    %v2353 = vpop.permute.xlu0 %2352
    %v2356 = vsel %vm301, %v2350, 0
    %2358 = vmatprep.subr.mxu0 0.0
    %2359 = vmatpush1.msra.mxu0 0.0
    %2360 = vmatprep.subr.mxu0 0.0
    %2361 = vmatpush1.msra.mxu0 0.0
    %2362 = vmatprep.subr.mxu0 0.0
    %2363 = vmatpush1.msra.mxu0 0.0
    %2364 = vmatprep.subr.mxu0 0.0
    %2365 = vmatpush1.msra.mxu0 0.0
    %2366 = vmatprep.subr.mxu0 0.0
    %2367 = vmatpush1.msra.mxu0 0.0
    %2368 = vmatprep.subr.mxu0 0.0
    %2369 = vmatpush1.msra.mxu0 0.0
    %2370 = vmatprep.subr.mxu0 0.0
    %2371 = vmatpush1.msra.mxu0 0.0
    %2372 = vmatprep.subr.mxu0 0.0
    %2373 = vmatpush1.msra.mxu0 0.0
    %2374 = vmatprep.subr.mxu0 0.0
    %2375 = vmatpush1.msra.mxu0 0.0
    %2376 = vmatprep.subr.mxu0 0.0
    %2377 = vmatpush1.msra.mxu0 0.0
    %2378 = vmatprep.subr.mxu0 0.0
    %2379 = vmatpush1.msra.mxu0 0.0
    %2380 = vmatprep.subr.mxu0 0.0
    %2381 = vmatpush1.msra.mxu0 0.0
    %2382 = vmatprep.subr.mxu0 0.0
    %2383 = vmatpush1.msra.mxu0 0.0
    %2384 = vmatprep.subr.mxu0 0.0
    %2385 = vmatpush1.msra.mxu0 0.0
    %2386 = vmatprep.subr.mxu0 0.0
    %2387 = vmatpush1.msra.mxu0 0.0
    %2388 = vmatprep.subr.mxu0 0.0
    %2389 = vmatpush1.msra.mxu0 %v2353
    %2390 = vmatprep.subr.mxu0 0.0
    %2391 = vmatpush2.msra.mxu0 0.0
    %2392 = vmatprep.subr.mxu0 0.0
    %2393 = vmatpush2.msra.mxu0 0.0
    %2394 = vmatprep.subr.mxu0 0.0
    %2395 = vmatpush2.msra.mxu0 0.0
    %2396 = vmatprep.subr.mxu0 0.0
    %2397 = vmatpush2.msra.mxu0 0.0
    %2398 = vmatprep.subr.mxu0 0.0
    %2399 = vmatpush2.msra.mxu0 0.0
    %2400 = vmatprep.subr.mxu0 0.0
    %2401 = vmatpush2.msra.mxu0 0.0
    %2402 = vmatprep.subr.mxu0 0.0
    %2403 = vmatpush2.msra.mxu0 0.0
    %2404 = vmatprep.subr.mxu0 0.0
    %2405 = vmatpush2.msra.mxu0 0.0
    %2406 = vmatprep.subr.mxu0 0.0
    %2407 = vmatpush2.msra.mxu0 0.0
    %2408 = vmatprep.subr.mxu0 0.0
    %2409 = vmatpush2.msra.mxu0 0.0
    %2410 = vmatprep.subr.mxu0 0.0
    %2411 = vmatpush2.msra.mxu0 0.0
    %2412 = vmatprep.subr.mxu0 0.0
    %2413 = vmatpush2.msra.mxu0 0.0
    %2414 = vmatprep.subr.mxu0 0.0
    %2415 = vmatpush2.msra.mxu0 0.0
    %2416 = vmatprep.subr.mxu0 0.0
    %2417 = vmatpush2.msra.mxu0 0.0
    %2418 = vmatprep.subr.mxu0 0.0
    %2419 = vmatpush2.msra.mxu0 0.0
    %2420 = vmatprep.subr.mxu0 0.0
    %2421 = vmatpush2.msra.mxu0 0.0
    %2422 = vmatprep.mubr.f32.mxu0 0.0
    %2423 = vmatmul.mubr.f32.gmra.mxu0 %v2356
    %v2424 = vpop.f32.mrf.mxu0
    %v2425 = vadd.f32 0.0, %v2424
    %v2426 = vpop.f32.mrf.mxu0
    %2427 = vdwg.mxu0
    %v2428 = vadd.f32 %v2349, %v2425
    %v2429 = vld [vmem:[%s712] sm:$0xff]
    %2430 = vrot.lane.b32.xlu0 %v2268, 126
    %v2431 = vpop.permute.xlu0 %2430
    %v2434 = vsel %vm301, %v2429, 0
    %2436 = vmatprep.subr.mxu0 0.0
    %2437 = vmatpush1.msra.mxu0 0.0
    %2438 = vmatprep.subr.mxu0 0.0
    %2439 = vmatpush1.msra.mxu0 0.0
    %2440 = vmatprep.subr.mxu0 0.0
    %2441 = vmatpush1.msra.mxu0 0.0
    %2442 = vmatprep.subr.mxu0 0.0
    %2443 = vmatpush1.msra.mxu0 0.0
    %2444 = vmatprep.subr.mxu0 0.0
    %2445 = vmatpush1.msra.mxu0 0.0
    %2446 = vmatprep.subr.mxu0 0.0
    %2447 = vmatpush1.msra.mxu0 0.0
    %2448 = vmatprep.subr.mxu0 0.0
    %2449 = vmatpush1.msra.mxu0 0.0
    %2450 = vmatprep.subr.mxu0 0.0
    %2451 = vmatpush1.msra.mxu0 0.0
    %2452 = vmatprep.subr.mxu0 0.0
    %2453 = vmatpush1.msra.mxu0 0.0
    %2454 = vmatprep.subr.mxu0 0.0
    %2455 = vmatpush1.msra.mxu0 0.0
    %2456 = vmatprep.subr.mxu0 0.0
    %2457 = vmatpush1.msra.mxu0 0.0
    %2458 = vmatprep.subr.mxu0 0.0
    %2459 = vmatpush1.msra.mxu0 0.0
    %2460 = vmatprep.subr.mxu0 0.0
    %2461 = vmatpush1.msra.mxu0 0.0
    %2462 = vmatprep.subr.mxu0 0.0
    %2463 = vmatpush1.msra.mxu0 0.0
    %2464 = vmatprep.subr.mxu0 0.0
    %2465 = vmatpush1.msra.mxu0 0.0
    %2466 = vmatprep.subr.mxu0 0.0
    %2467 = vmatpush1.msra.mxu0 %v2431
    %2468 = vmatprep.subr.mxu0 0.0
    %2469 = vmatpush2.msra.mxu0 0.0
    %2470 = vmatprep.subr.mxu0 0.0
    %2471 = vmatpush2.msra.mxu0 0.0
    %2472 = vmatprep.subr.mxu0 0.0
    %2473 = vmatpush2.msra.mxu0 0.0
    %2474 = vmatprep.subr.mxu0 0.0
    %2475 = vmatpush2.msra.mxu0 0.0
    %2476 = vmatprep.subr.mxu0 0.0
    %2477 = vmatpush2.msra.mxu0 0.0
    %2478 = vmatprep.subr.mxu0 0.0
    %2479 = vmatpush2.msra.mxu0 0.0
    %2480 = vmatprep.subr.mxu0 0.0
    %2481 = vmatpush2.msra.mxu0 0.0
    %2482 = vmatprep.subr.mxu0 0.0
    %2483 = vmatpush2.msra.mxu0 0.0
    %2484 = vmatprep.subr.mxu0 0.0
    %2485 = vmatpush2.msra.mxu0 0.0
    %2486 = vmatprep.subr.mxu0 0.0
    %2487 = vmatpush2.msra.mxu0 0.0
    %2488 = vmatprep.subr.mxu0 0.0
    %2489 = vmatpush2.msra.mxu0 0.0
    %2490 = vmatprep.subr.mxu0 0.0
    %2491 = vmatpush2.msra.mxu0 0.0
    %2492 = vmatprep.subr.mxu0 0.0
    %2493 = vmatpush2.msra.mxu0 0.0
    %2494 = vmatprep.subr.mxu0 0.0
    %2495 = vmatpush2.msra.mxu0 0.0
    %2496 = vmatprep.subr.mxu0 0.0
    %2497 = vmatpush2.msra.mxu0 0.0
    %2498 = vmatprep.subr.mxu0 0.0
    %2499 = vmatpush2.msra.mxu0 0.0
    %2500 = vmatprep.mubr.f32.mxu0 0.0
    %2501 = vmatmul.mubr.f32.gmra.mxu0 %v2434
    %v2502 = vpop.f32.mrf.mxu0
    %v2503 = vadd.f32 0.0, %v2502
    %v2504 = vpop.f32.mrf.mxu0
    %2505 = vdwg.mxu0
    %v2506 = vadd.f32 %v2428, %v2503
    %2507 = vst.msk [vmem:[#allocation2] sm:$0xff] %vm43, 0.0
    %2509 = vrot.lane.b32.xlu0 %v2261, 1
    %v2510 = vpop.permute.xlu0 %2509
    %2512 = vst.msk [vmem:[#allocation2] sm:$0xff] %vm548, %v2510
    %v2513 = vld [vmem:[#allocation2] sm:$0xff]
    %v2514 = vld [vmem:[%s6] sm:$0xff]
    %v2516 = vsel %vm301, %v2514, 0
    %2518 = vmatprep.subr.mxu0 0.0
    %2519 = vmatpush1.msra.mxu0 0.0
    %2520 = vmatprep.subr.mxu0 0.0
    %2521 = vmatpush1.msra.mxu0 0.0
    %2522 = vmatprep.subr.mxu0 0.0
    %2523 = vmatpush1.msra.mxu0 0.0
    %2524 = vmatprep.subr.mxu0 0.0
    %2525 = vmatpush1.msra.mxu0 0.0
    %2526 = vmatprep.subr.mxu0 0.0
    %2527 = vmatpush1.msra.mxu0 0.0
    %2528 = vmatprep.subr.mxu0 0.0
    %2529 = vmatpush1.msra.mxu0 0.0
    %2530 = vmatprep.subr.mxu0 0.0
    %2531 = vmatpush1.msra.mxu0 0.0
    %2532 = vmatprep.subr.mxu0 0.0
    %2533 = vmatpush1.msra.mxu0 0.0
    %2534 = vmatprep.subr.mxu0 0.0
    %2535 = vmatpush1.msra.mxu0 0.0
    %2536 = vmatprep.subr.mxu0 0.0
    %2537 = vmatpush1.msra.mxu0 0.0
    %2538 = vmatprep.subr.mxu0 0.0
    %2539 = vmatpush1.msra.mxu0 0.0
    %2540 = vmatprep.subr.mxu0 0.0
    %2541 = vmatpush1.msra.mxu0 0.0
    %2542 = vmatprep.subr.mxu0 0.0
    %2543 = vmatpush1.msra.mxu0 0.0
    %2544 = vmatprep.subr.mxu0 0.0
    %2545 = vmatpush1.msra.mxu0 0.0
    %2546 = vmatprep.subr.mxu0 0.0
    %2547 = vmatpush1.msra.mxu0 0.0
    %2548 = vmatprep.subr.mxu0 0.0
    %2549 = vmatpush1.msra.mxu0 %v2513
    %2550 = vmatprep.subr.mxu0 0.0
    %2551 = vmatpush2.msra.mxu0 0.0
    %2552 = vmatprep.subr.mxu0 0.0
    %2553 = vmatpush2.msra.mxu0 0.0
    %2554 = vmatprep.subr.mxu0 0.0
    %2555 = vmatpush2.msra.mxu0 0.0
    %2556 = vmatprep.subr.mxu0 0.0
    %2557 = vmatpush2.msra.mxu0 0.0
    %2558 = vmatprep.subr.mxu0 0.0
    %2559 = vmatpush2.msra.mxu0 0.0
    %2560 = vmatprep.subr.mxu0 0.0
    %2561 = vmatpush2.msra.mxu0 0.0
    %2562 = vmatprep.subr.mxu0 0.0
    %2563 = vmatpush2.msra.mxu0 0.0
    %2564 = vmatprep.subr.mxu0 0.0
    %2565 = vmatpush2.msra.mxu0 0.0
    %2566 = vmatprep.subr.mxu0 0.0
    %2567 = vmatpush2.msra.mxu0 0.0
    %2568 = vmatprep.subr.mxu0 0.0
    %2569 = vmatpush2.msra.mxu0 0.0
    %2570 = vmatprep.subr.mxu0 0.0
    %2571 = vmatpush2.msra.mxu0 0.0
    %2572 = vmatprep.subr.mxu0 0.0
    %2573 = vmatpush2.msra.mxu0 0.0
    %2574 = vmatprep.subr.mxu0 0.0
    %2575 = vmatpush2.msra.mxu0 0.0
    %2576 = vmatprep.subr.mxu0 0.0
    %2577 = vmatpush2.msra.mxu0 0.0
    %2578 = vmatprep.subr.mxu0 0.0
    %2579 = vmatpush2.msra.mxu0 0.0
    %2580 = vmatprep.subr.mxu0 0.0
    %2581 = vmatpush2.msra.mxu0 0.0
    %2582 = vmatprep.mubr.f32.mxu0 0.0
    %2583 = vmatmul.mubr.f32.gmra.mxu0 %v2516
    %v2584 = vpop.f32.mrf.mxu0
    %v2585 = vadd.f32 0.0, %v2584
    %v2586 = vpop.f32.mrf.mxu0
    %2587 = vdwg.mxu0
    %v2588 = vadd.f32 %v2506, %v2585
    %v2589 = vld [vmem:[%s873] sm:$0xff]
    %2591 = vrot.lane.b32.xlu0 %v2513, 127
    %v2592 = vpop.permute.xlu0 %2591
    %v2595 = vsel %vm301, %v2589, 0
    %2597 = vmatprep.subr.mxu0 0.0
    %2598 = vmatpush1.msra.mxu0 0.0
    %2599 = vmatprep.subr.mxu0 0.0
    %2600 = vmatpush1.msra.mxu0 0.0
    %2601 = vmatprep.subr.mxu0 0.0
    %2602 = vmatpush1.msra.mxu0 0.0
    %2603 = vmatprep.subr.mxu0 0.0
    %2604 = vmatpush1.msra.mxu0 0.0
    %2605 = vmatprep.subr.mxu0 0.0
    %2606 = vmatpush1.msra.mxu0 0.0
    %2607 = vmatprep.subr.mxu0 0.0
    %2608 = vmatpush1.msra.mxu0 0.0
    %2609 = vmatprep.subr.mxu0 0.0
    %2610 = vmatpush1.msra.mxu0 0.0
    %2611 = vmatprep.subr.mxu0 0.0
    %2612 = vmatpush1.msra.mxu0 0.0
    %2613 = vmatprep.subr.mxu0 0.0
    %2614 = vmatpush1.msra.mxu0 0.0
    %2615 = vmatprep.subr.mxu0 0.0
    %2616 = vmatpush1.msra.mxu0 0.0
    %2617 = vmatprep.subr.mxu0 0.0
    %2618 = vmatpush1.msra.mxu0 0.0
    %2619 = vmatprep.subr.mxu0 0.0
    %2620 = vmatpush1.msra.mxu0 0.0
    %2621 = vmatprep.subr.mxu0 0.0
    %2622 = vmatpush1.msra.mxu0 0.0
    %2623 = vmatprep.subr.mxu0 0.0
    %2624 = vmatpush1.msra.mxu0 0.0
    %2625 = vmatprep.subr.mxu0 0.0
    %2626 = vmatpush1.msra.mxu0 0.0
    %2627 = vmatprep.subr.mxu0 0.0
    %2628 = vmatpush1.msra.mxu0 %v2592
    %2629 = vmatprep.subr.mxu0 0.0
    %2630 = vmatpush2.msra.mxu0 0.0
    %2631 = vmatprep.subr.mxu0 0.0
    %2632 = vmatpush2.msra.mxu0 0.0
    %2633 = vmatprep.subr.mxu0 0.0
    %2634 = vmatpush2.msra.mxu0 0.0
    %2635 = vmatprep.subr.mxu0 0.0
    %2636 = vmatpush2.msra.mxu0 0.0
    %2637 = vmatprep.subr.mxu0 0.0
    %2638 = vmatpush2.msra.mxu0 0.0
    %2639 = vmatprep.subr.mxu0 0.0
    %2640 = vmatpush2.msra.mxu0 0.0
    %2641 = vmatprep.subr.mxu0 0.0
    %2642 = vmatpush2.msra.mxu0 0.0
    %2643 = vmatprep.subr.mxu0 0.0
    %2644 = vmatpush2.msra.mxu0 0.0
    %2645 = vmatprep.subr.mxu0 0.0
    %2646 = vmatpush2.msra.mxu0 0.0
    %2647 = vmatprep.subr.mxu0 0.0
    %2648 = vmatpush2.msra.mxu0 0.0
    %2649 = vmatprep.subr.mxu0 0.0
    %2650 = vmatpush2.msra.mxu0 0.0
    %2651 = vmatprep.subr.mxu0 0.0
    %2652 = vmatpush2.msra.mxu0 0.0
    %2653 = vmatprep.subr.mxu0 0.0
    %2654 = vmatpush2.msra.mxu0 0.0
    %2655 = vmatprep.subr.mxu0 0.0
    %2656 = vmatpush2.msra.mxu0 0.0
    %2657 = vmatprep.subr.mxu0 0.0
    %2658 = vmatpush2.msra.mxu0 0.0
    %2659 = vmatprep.subr.mxu0 0.0
    %2660 = vmatpush2.msra.mxu0 0.0
    %2661 = vmatprep.mubr.f32.mxu0 0.0
    %2662 = vmatmul.mubr.f32.gmra.mxu0 %v2595
    %v2663 = vpop.f32.mrf.mxu0
    %v2664 = vadd.f32 0.0, %v2663
    %v2665 = vpop.f32.mrf.mxu0
    %2666 = vdwg.mxu0
    %v2667 = vadd.f32 %v2588, %v2664
    %v2668 = vld [vmem:[%s953] sm:$0xff]
    %2669 = vrot.lane.b32.xlu0 %v2513, 126
    %v2670 = vpop.permute.xlu0 %2669
    %v2673 = vsel %vm301, %v2668, 0
    %2675 = vmatprep.subr.mxu0 0.0
    %2676 = vmatpush1.msra.mxu0 0.0
    %2677 = vmatprep.subr.mxu0 0.0
    %2678 = vmatpush1.msra.mxu0 0.0
    %2679 = vmatprep.subr.mxu0 0.0
    %2680 = vmatpush1.msra.mxu0 0.0
    %2681 = vmatprep.subr.mxu0 0.0
    %2682 = vmatpush1.msra.mxu0 0.0
    %2683 = vmatprep.subr.mxu0 0.0
    %2684 = vmatpush1.msra.mxu0 0.0
    %2685 = vmatprep.subr.mxu0 0.0
    %2686 = vmatpush1.msra.mxu0 0.0
    %2687 = vmatprep.subr.mxu0 0.0
    %2688 = vmatpush1.msra.mxu0 0.0
    %2689 = vmatprep.subr.mxu0 0.0
    %2690 = vmatpush1.msra.mxu0 0.0
    %2691 = vmatprep.subr.mxu0 0.0
    %2692 = vmatpush1.msra.mxu0 0.0
    %2693 = vmatprep.subr.mxu0 0.0
    %2694 = vmatpush1.msra.mxu0 0.0
    %2695 = vmatprep.subr.mxu0 0.0
    %2696 = vmatpush1.msra.mxu0 0.0
    %2697 = vmatprep.subr.mxu0 0.0
    %2698 = vmatpush1.msra.mxu0 0.0
    %2699 = vmatprep.subr.mxu0 0.0
    %2700 = vmatpush1.msra.mxu0 0.0
    %2701 = vmatprep.subr.mxu0 0.0
    %2702 = vmatpush1.msra.mxu0 0.0
    %2703 = vmatprep.subr.mxu0 0.0
    %2704 = vmatpush1.msra.mxu0 0.0
    %2705 = vmatprep.subr.mxu0 0.0
    %2706 = vmatpush1.msra.mxu0 %v2670
    %2707 = vmatprep.subr.mxu0 0.0
    %2708 = vmatpush2.msra.mxu0 0.0
    %2709 = vmatprep.subr.mxu0 0.0
    %2710 = vmatpush2.msra.mxu0 0.0
    %2711 = vmatprep.subr.mxu0 0.0
    %2712 = vmatpush2.msra.mxu0 0.0
    %2713 = vmatprep.subr.mxu0 0.0
    %2714 = vmatpush2.msra.mxu0 0.0
    %2715 = vmatprep.subr.mxu0 0.0
    %2716 = vmatpush2.msra.mxu0 0.0
    %2717 = vmatprep.subr.mxu0 0.0
    %2718 = vmatpush2.msra.mxu0 0.0
    %2719 = vmatprep.subr.mxu0 0.0
    %2720 = vmatpush2.msra.mxu0 0.0
    %2721 = vmatprep.subr.mxu0 0.0
    %2722 = vmatpush2.msra.mxu0 0.0
    %2723 = vmatprep.subr.mxu0 0.0
    %2724 = vmatpush2.msra.mxu0 0.0
    %2725 = vmatprep.subr.mxu0 0.0
    %2726 = vmatpush2.msra.mxu0 0.0
    %2727 = vmatprep.subr.mxu0 0.0
    %2728 = vmatpush2.msra.mxu0 0.0
    %2729 = vmatprep.subr.mxu0 0.0
    %2730 = vmatpush2.msra.mxu0 0.0
    %2731 = vmatprep.subr.mxu0 0.0
    %2732 = vmatpush2.msra.mxu0 0.0
    %2733 = vmatprep.subr.mxu0 0.0
    %2734 = vmatpush2.msra.mxu0 0.0
    %2735 = vmatprep.subr.mxu0 0.0
    %2736 = vmatpush2.msra.mxu0 0.0
    %2737 = vmatprep.subr.mxu0 0.0
    %2738 = vmatpush2.msra.mxu0 0.0
    %2739 = vmatprep.mubr.f32.mxu0 0.0
    %2740 = vmatmul.mubr.f32.gmra.mxu0 %v2673
    %v2741 = vpop.f32.mrf.mxu0
    %v2742 = vadd.f32 0.0, %v2741
    %v2743 = vpop.f32.mrf.mxu0
    %2744 = vdwg.mxu0
    %v2745 = vadd.f32 %v2667, %v2742
    %v2746 = vmax.f32 %v2745, 0.0
    %v2747 = vld [vmem:[%s9] sm:$0x1]
    %v2748 = vld [vmem:[%s8] sm:$0xff]
    %v2749 = vld [vmem:[%s8 + $0x8] sm:$0x3f]
    %v2751 = vsel %vm1036, %v2746, 0
    %v2754 = vsel %vm1040, %v2749, 0
    %2756 = vmatprep.subr.mxu0 0.0
    %2757 = vmatpush1.msra.mxu0 0.0
    %2758 = vmatprep.subr.mxu0 0.0
    %2759 = vmatpush1.msra.mxu0 0.0
    %2760 = vmatprep.subr.mxu0 0.0
    %2761 = vmatpush1.msra.mxu0 0.0
    %2762 = vmatprep.subr.mxu0 0.0
    %2763 = vmatpush1.msra.mxu0 0.0
    %2764 = vmatprep.subr.mxu0 0.0
    %2765 = vmatpush1.msra.mxu0 0.0
    %2766 = vmatprep.subr.mxu0 0.0
    %2767 = vmatpush1.msra.mxu0 0.0
    %2768 = vmatprep.subr.mxu0 0.0
    %2769 = vmatpush1.msra.mxu0 0.0
    %2770 = vmatprep.subr.mxu0 0.0
    %2771 = vmatpush1.msra.mxu0 0.0
    %2772 = vmatprep.subr.mxu0 0.0
    %2773 = vmatpush1.msra.mxu0 0.0
    %2774 = vmatprep.subr.mxu0 0.0
    %2775 = vmatpush1.msra.mxu0 0.0
    %2776 = vmatprep.subr.mxu0 0.0
    %2777 = vmatpush1.msra.mxu0 0.0
    %2778 = vmatprep.subr.mxu0 0.0
    %2779 = vmatpush1.msra.mxu0 0.0
    %2780 = vmatprep.subr.mxu0 0.0
    %2781 = vmatpush1.msra.mxu0 0.0
    %2782 = vmatprep.subr.mxu0 0.0
    %2783 = vmatpush1.msra.mxu0 0.0
    %2784 = vmatprep.subr.mxu0 0.0
    %2785 = vmatpush1.msra.mxu0 %v2754
    %2786 = vmatprep.subr.mxu0 0.0
    %2787 = vmatpush1.msra.mxu0 %v2748
    %2788 = vmatprep.subr.mxu0 0.0
    %2789 = vmatpush2.msra.mxu0 0.0
    %2790 = vmatprep.subr.mxu0 0.0
    %2791 = vmatpush2.msra.mxu0 0.0
    %2792 = vmatprep.subr.mxu0 0.0
    %2793 = vmatpush2.msra.mxu0 0.0
    %2794 = vmatprep.subr.mxu0 0.0
    %2795 = vmatpush2.msra.mxu0 0.0
    %2796 = vmatprep.subr.mxu0 0.0
    %2797 = vmatpush2.msra.mxu0 0.0
    %2798 = vmatprep.subr.mxu0 0.0
    %2799 = vmatpush2.msra.mxu0 0.0
    %2800 = vmatprep.subr.mxu0 0.0
    %2801 = vmatpush2.msra.mxu0 0.0
    %2802 = vmatprep.subr.mxu0 0.0
    %2803 = vmatpush2.msra.mxu0 0.0
    %2804 = vmatprep.subr.mxu0 0.0
    %2805 = vmatpush2.msra.mxu0 0.0
    %2806 = vmatprep.subr.mxu0 0.0
    %2807 = vmatpush2.msra.mxu0 0.0
    %2808 = vmatprep.subr.mxu0 0.0
    %2809 = vmatpush2.msra.mxu0 0.0
    %2810 = vmatprep.subr.mxu0 0.0
    %2811 = vmatpush2.msra.mxu0 0.0
    %2812 = vmatprep.subr.mxu0 0.0
    %2813 = vmatpush2.msra.mxu0 0.0
    %2814 = vmatprep.subr.mxu0 0.0
    %2815 = vmatpush2.msra.mxu0 0.0
    %2816 = vmatprep.subr.mxu0 0.0
    %2817 = vmatpush2.msra.mxu0 0.0
    %2818 = vmatprep.subr.mxu0 0.0
    %2819 = vmatpush2.msra.mxu0 0.0
    %2820 = vmatprep.mubr.f32.mxu0 0.0
    %2821 = vmatmul.mubr.f32.gmra.mxu0 %v2751
    %v2822 = vpop.f32.mrf.mxu0
    %v2823 = vadd.f32 0.0, %v2822
    %v2824 = vpop.f32.mrf.mxu0
    %2825 = vdwg.mxu0
    %v2826 = vadd.f32 %v2747, %v2823
    %v2827 = vld [vmem:[%s1115] sm:$0xff]
    %v2828 = vld [vmem:[%s1115 + $0x8] sm:$0x3f]
    %v2829 = vrot.slane %v2746, 1
    %v2830 = vsel %vm1036, %v2829, 0
    %v2833 = vsel %vm1040, %v2828, 0
    %2835 = vmatprep.subr.mxu0 0.0
    %2836 = vmatpush1.msra.mxu0 0.0
    %2837 = vmatprep.subr.mxu0 0.0
    %2838 = vmatpush1.msra.mxu0 0.0
    %2839 = vmatprep.subr.mxu0 0.0
    %2840 = vmatpush1.msra.mxu0 0.0
    %2841 = vmatprep.subr.mxu0 0.0
    %2842 = vmatpush1.msra.mxu0 0.0
    %2843 = vmatprep.subr.mxu0 0.0
    %2844 = vmatpush1.msra.mxu0 0.0
    %2845 = vmatprep.subr.mxu0 0.0
    %2846 = vmatpush1.msra.mxu0 0.0
    %2847 = vmatprep.subr.mxu0 0.0
    %2848 = vmatpush1.msra.mxu0 0.0
    %2849 = vmatprep.subr.mxu0 0.0
    %2850 = vmatpush1.msra.mxu0 0.0
    %2851 = vmatprep.subr.mxu0 0.0
    %2852 = vmatpush1.msra.mxu0 0.0
    %2853 = vmatprep.subr.mxu0 0.0
    %2854 = vmatpush1.msra.mxu0 0.0
    %2855 = vmatprep.subr.mxu0 0.0
    %2856 = vmatpush1.msra.mxu0 0.0
    %2857 = vmatprep.subr.mxu0 0.0
    %2858 = vmatpush1.msra.mxu0 0.0
    %2859 = vmatprep.subr.mxu0 0.0
    %2860 = vmatpush1.msra.mxu0 0.0
    %2861 = vmatprep.subr.mxu0 0.0
    %2862 = vmatpush1.msra.mxu0 0.0
    %2863 = vmatprep.subr.mxu0 0.0
    %2864 = vmatpush1.msra.mxu0 %v2833
    %2865 = vmatprep.subr.mxu0 0.0
    %2866 = vmatpush1.msra.mxu0 %v2827
    %2867 = vmatprep.subr.mxu0 0.0
    %2868 = vmatpush2.msra.mxu0 0.0
    %2869 = vmatprep.subr.mxu0 0.0
    %2870 = vmatpush2.msra.mxu0 0.0
    %2871 = vmatprep.subr.mxu0 0.0
    %2872 = vmatpush2.msra.mxu0 0.0
    %2873 = vmatprep.subr.mxu0 0.0
    %2874 = vmatpush2.msra.mxu0 0.0
    %2875 = vmatprep.subr.mxu0 0.0
    %2876 = vmatpush2.msra.mxu0 0.0
    %2877 = vmatprep.subr.mxu0 0.0
    %2878 = vmatpush2.msra.mxu0 0.0
    %2879 = vmatprep.subr.mxu0 0.0
    %2880 = vmatpush2.msra.mxu0 0.0
    %2881 = vmatprep.subr.mxu0 0.0
    %2882 = vmatpush2.msra.mxu0 0.0
    %2883 = vmatprep.subr.mxu0 0.0
    %2884 = vmatpush2.msra.mxu0 0.0
    %2885 = vmatprep.subr.mxu0 0.0
    %2886 = vmatpush2.msra.mxu0 0.0
    %2887 = vmatprep.subr.mxu0 0.0
    %2888 = vmatpush2.msra.mxu0 0.0
    %2889 = vmatprep.subr.mxu0 0.0
    %2890 = vmatpush2.msra.mxu0 0.0
    %2891 = vmatprep.subr.mxu0 0.0
    %2892 = vmatpush2.msra.mxu0 0.0
    %2893 = vmatprep.subr.mxu0 0.0
    %2894 = vmatpush2.msra.mxu0 0.0
    %2895 = vmatprep.subr.mxu0 0.0
    %2896 = vmatpush2.msra.mxu0 0.0
    %2897 = vmatprep.subr.mxu0 0.0
    %2898 = vmatpush2.msra.mxu0 0.0
    %2899 = vmatprep.mubr.f32.mxu0 0.0
    %2900 = vmatmul.mubr.f32.gmra.mxu0 %v2830
    %v2901 = vpop.f32.mrf.mxu0
    %v2902 = vadd.f32 0.0, %v2901
    %v2903 = vpop.f32.mrf.mxu0
    %2904 = vdwg.mxu0
    %v2905 = vadd.f32 %v2826, %v2902
    %v2906 = vld [vmem:[%s1195] sm:$0xff]
    %v2907 = vld [vmem:[%s1195 + $0x8] sm:$0x3f]
    %v2908 = vrot.slane %v2746, 2
    %v2909 = vsel %vm1036, %v2908, 0
    %v2912 = vsel %vm1040, %v2907, 0
    %2914 = vmatprep.subr.mxu0 0.0
    %2915 = vmatpush1.msra.mxu0 0.0
    %2916 = vmatprep.subr.mxu0 0.0
    %2917 = vmatpush1.msra.mxu0 0.0
    %2918 = vmatprep.subr.mxu0 0.0
    %2919 = vmatpush1.msra.mxu0 0.0
    %2920 = vmatprep.subr.mxu0 0.0
    %2921 = vmatpush1.msra.mxu0 0.0
    %2922 = vmatprep.subr.mxu0 0.0
    %2923 = vmatpush1.msra.mxu0 0.0
    %2924 = vmatprep.subr.mxu0 0.0
    %2925 = vmatpush1.msra.mxu0 0.0
    %2926 = vmatprep.subr.mxu0 0.0
    %2927 = vmatpush1.msra.mxu0 0.0
    %2928 = vmatprep.subr.mxu0 0.0
    %2929 = vmatpush1.msra.mxu0 0.0
    %2930 = vmatprep.subr.mxu0 0.0
    %2931 = vmatpush1.msra.mxu0 0.0
    %2932 = vmatprep.subr.mxu0 0.0
    %2933 = vmatpush1.msra.mxu0 0.0
    %2934 = vmatprep.subr.mxu0 0.0
    %2935 = vmatpush1.msra.mxu0 0.0
    %2936 = vmatprep.subr.mxu0 0.0
    %2937 = vmatpush1.msra.mxu0 0.0
    %2938 = vmatprep.subr.mxu0 0.0
    %2939 = vmatpush1.msra.mxu0 0.0
    %2940 = vmatprep.subr.mxu0 0.0
    %2941 = vmatpush1.msra.mxu0 0.0
    %2942 = vmatprep.subr.mxu0 0.0
    %2943 = vmatpush1.msra.mxu0 %v2912
    %2944 = vmatprep.subr.mxu0 0.0
    %2945 = vmatpush1.msra.mxu0 %v2906
    %2946 = vmatprep.subr.mxu0 0.0
    %2947 = vmatpush2.msra.mxu0 0.0
    %2948 = vmatprep.subr.mxu0 0.0
    %2949 = vmatpush2.msra.mxu0 0.0
    %2950 = vmatprep.subr.mxu0 0.0
    %2951 = vmatpush2.msra.mxu0 0.0
    %2952 = vmatprep.subr.mxu0 0.0
    %2953 = vmatpush2.msra.mxu0 0.0
    %2954 = vmatprep.subr.mxu0 0.0
    %2955 = vmatpush2.msra.mxu0 0.0
    %2956 = vmatprep.subr.mxu0 0.0
    %2957 = vmatpush2.msra.mxu0 0.0
    %2958 = vmatprep.subr.mxu0 0.0
    %2959 = vmatpush2.msra.mxu0 0.0
    %2960 = vmatprep.subr.mxu0 0.0
    %2961 = vmatpush2.msra.mxu0 0.0
    %2962 = vmatprep.subr.mxu0 0.0
    %2963 = vmatpush2.msra.mxu0 0.0
    %2964 = vmatprep.subr.mxu0 0.0
    %2965 = vmatpush2.msra.mxu0 0.0
    %2966 = vmatprep.subr.mxu0 0.0
    %2967 = vmatpush2.msra.mxu0 0.0
    %2968 = vmatprep.subr.mxu0 0.0
    %2969 = vmatpush2.msra.mxu0 0.0
    %2970 = vmatprep.subr.mxu0 0.0
    %2971 = vmatpush2.msra.mxu0 0.0
    %2972 = vmatprep.subr.mxu0 0.0
    %2973 = vmatpush2.msra.mxu0 0.0
    %2974 = vmatprep.subr.mxu0 0.0
    %2975 = vmatpush2.msra.mxu0 0.0
    %2976 = vmatprep.subr.mxu0 0.0
    %2977 = vmatpush2.msra.mxu0 0.0
    %2978 = vmatprep.mubr.f32.mxu0 0.0
    %2979 = vmatmul.mubr.f32.gmra.mxu0 %v2909
    %v2980 = vpop.f32.mrf.mxu0
    %v2981 = vadd.f32 0.0, %v2980
    %v2982 = vpop.f32.mrf.mxu0
    %2983 = vdwg.mxu0
    %v2984 = vadd.f32 %v2905, %v2981
    %v2985 = vld [vmem:[%s1275] sm:$0xff]
    %v2986 = vld [vmem:[%s1275 + $0x8] sm:$0x3f]
    %v2987 = vrot.slane %v2746, 3
    %v2988 = vsel %vm1036, %v2987, 0
    %v2991 = vsel %vm1040, %v2986, 0
    %2993 = vmatprep.subr.mxu0 0.0
    %2994 = vmatpush1.msra.mxu0 0.0
    %2995 = vmatprep.subr.mxu0 0.0
    %2996 = vmatpush1.msra.mxu0 0.0
    %2997 = vmatprep.subr.mxu0 0.0
    %2998 = vmatpush1.msra.mxu0 0.0
    %2999 = vmatprep.subr.mxu0 0.0
    %3000 = vmatpush1.msra.mxu0 0.0
    %3001 = vmatprep.subr.mxu0 0.0
    %3002 = vmatpush1.msra.mxu0 0.0
    %3003 = vmatprep.subr.mxu0 0.0
    %3004 = vmatpush1.msra.mxu0 0.0
    %3005 = vmatprep.subr.mxu0 0.0
    %3006 = vmatpush1.msra.mxu0 0.0
    %3007 = vmatprep.subr.mxu0 0.0
    %3008 = vmatpush1.msra.mxu0 0.0
    %3009 = vmatprep.subr.mxu0 0.0
    %3010 = vmatpush1.msra.mxu0 0.0
    %3011 = vmatprep.subr.mxu0 0.0
    %3012 = vmatpush1.msra.mxu0 0.0
    %3013 = vmatprep.subr.mxu0 0.0
    %3014 = vmatpush1.msra.mxu0 0.0
    %3015 = vmatprep.subr.mxu0 0.0
    %3016 = vmatpush1.msra.mxu0 0.0
    %3017 = vmatprep.subr.mxu0 0.0
    %3018 = vmatpush1.msra.mxu0 0.0
    %3019 = vmatprep.subr.mxu0 0.0
    %3020 = vmatpush1.msra.mxu0 0.0
    %3021 = vmatprep.subr.mxu0 0.0
    %3022 = vmatpush1.msra.mxu0 %v2991
    %3023 = vmatprep.subr.mxu0 0.0
    %3024 = vmatpush1.msra.mxu0 %v2985
    %3025 = vmatprep.subr.mxu0 0.0
    %3026 = vmatpush2.msra.mxu0 0.0
    %3027 = vmatprep.subr.mxu0 0.0
    %3028 = vmatpush2.msra.mxu0 0.0
    %3029 = vmatprep.subr.mxu0 0.0
    %3030 = vmatpush2.msra.mxu0 0.0
    %3031 = vmatprep.subr.mxu0 0.0
    %3032 = vmatpush2.msra.mxu0 0.0
    %3033 = vmatprep.subr.mxu0 0.0
    %3034 = vmatpush2.msra.mxu0 0.0
    %3035 = vmatprep.subr.mxu0 0.0
    %3036 = vmatpush2.msra.mxu0 0.0
    %3037 = vmatprep.subr.mxu0 0.0
    %3038 = vmatpush2.msra.mxu0 0.0
    %3039 = vmatprep.subr.mxu0 0.0
    %3040 = vmatpush2.msra.mxu0 0.0
    %3041 = vmatprep.subr.mxu0 0.0
    %3042 = vmatpush2.msra.mxu0 0.0
    %3043 = vmatprep.subr.mxu0 0.0
    %3044 = vmatpush2.msra.mxu0 0.0
    %3045 = vmatprep.subr.mxu0 0.0
    %3046 = vmatpush2.msra.mxu0 0.0
    %3047 = vmatprep.subr.mxu0 0.0
    %3048 = vmatpush2.msra.mxu0 0.0
    %3049 = vmatprep.subr.mxu0 0.0
    %3050 = vmatpush2.msra.mxu0 0.0
    %3051 = vmatprep.subr.mxu0 0.0
    %3052 = vmatpush2.msra.mxu0 0.0
    %3053 = vmatprep.subr.mxu0 0.0
    %3054 = vmatpush2.msra.mxu0 0.0
    %3055 = vmatprep.subr.mxu0 0.0
    %3056 = vmatpush2.msra.mxu0 0.0
    %3057 = vmatprep.mubr.f32.mxu0 0.0
    %3058 = vmatmul.mubr.f32.gmra.mxu0 %v2988
    %v3059 = vpop.f32.mrf.mxu0
    %v3060 = vadd.f32 0.0, %v3059
    %v3061 = vpop.f32.mrf.mxu0
    %3062 = vdwg.mxu0
    %v3063 = vadd.f32 %v2984, %v3060
    %v3064 = vld [vmem:[%s1355] sm:$0xff]
    %v3065 = vld [vmem:[%s1355 + $0x8] sm:$0x3f]
    %v3066 = vrot.slane %v2746, 4
    %v3067 = vsel %vm1036, %v3066, 0
    %v3070 = vsel %vm1040, %v3065, 0
    %3072 = vmatprep.subr.mxu0 0.0
    %3073 = vmatpush1.msra.mxu0 0.0
    %3074 = vmatprep.subr.mxu0 0.0
    %3075 = vmatpush1.msra.mxu0 0.0
    %3076 = vmatprep.subr.mxu0 0.0
    %3077 = vmatpush1.msra.mxu0 0.0
    %3078 = vmatprep.subr.mxu0 0.0
    %3079 = vmatpush1.msra.mxu0 0.0
    %3080 = vmatprep.subr.mxu0 0.0
    %3081 = vmatpush1.msra.mxu0 0.0
    %3082 = vmatprep.subr.mxu0 0.0
    %3083 = vmatpush1.msra.mxu0 0.0
    %3084 = vmatprep.subr.mxu0 0.0
    %3085 = vmatpush1.msra.mxu0 0.0
    %3086 = vmatprep.subr.mxu0 0.0
    %3087 = vmatpush1.msra.mxu0 0.0
    %3088 = vmatprep.subr.mxu0 0.0
    %3089 = vmatpush1.msra.mxu0 0.0
    %3090 = vmatprep.subr.mxu0 0.0
    %3091 = vmatpush1.msra.mxu0 0.0
    %3092 = vmatprep.subr.mxu0 0.0
    %3093 = vmatpush1.msra.mxu0 0.0
    %3094 = vmatprep.subr.mxu0 0.0
    %3095 = vmatpush1.msra.mxu0 0.0
    %3096 = vmatprep.subr.mxu0 0.0
    %3097 = vmatpush1.msra.mxu0 0.0
    %3098 = vmatprep.subr.mxu0 0.0
    %3099 = vmatpush1.msra.mxu0 0.0
    %3100 = vmatprep.subr.mxu0 0.0
    %3101 = vmatpush1.msra.mxu0 %v3070
    %3102 = vmatprep.subr.mxu0 0.0
    %3103 = vmatpush1.msra.mxu0 %v3064
    %3104 = vmatprep.subr.mxu0 0.0
    %3105 = vmatpush2.msra.mxu0 0.0
    %3106 = vmatprep.subr.mxu0 0.0
    %3107 = vmatpush2.msra.mxu0 0.0
    %3108 = vmatprep.subr.mxu0 0.0
    %3109 = vmatpush2.msra.mxu0 0.0
    %3110 = vmatprep.subr.mxu0 0.0
    %3111 = vmatpush2.msra.mxu0 0.0
    %3112 = vmatprep.subr.mxu0 0.0
    %3113 = vmatpush2.msra.mxu0 0.0
    %3114 = vmatprep.subr.mxu0 0.0
    %3115 = vmatpush2.msra.mxu0 0.0
    %3116 = vmatprep.subr.mxu0 0.0
    %3117 = vmatpush2.msra.mxu0 0.0
    %3118 = vmatprep.subr.mxu0 0.0
    %3119 = vmatpush2.msra.mxu0 0.0
    %3120 = vmatprep.subr.mxu0 0.0
    %3121 = vmatpush2.msra.mxu0 0.0
    %3122 = vmatprep.subr.mxu0 0.0
    %3123 = vmatpush2.msra.mxu0 0.0
    %3124 = vmatprep.subr.mxu0 0.0
    %3125 = vmatpush2.msra.mxu0 0.0
    %3126 = vmatprep.subr.mxu0 0.0
    %3127 = vmatpush2.msra.mxu0 0.0
    %3128 = vmatprep.subr.mxu0 0.0
    %3129 = vmatpush2.msra.mxu0 0.0
    %3130 = vmatprep.subr.mxu0 0.0
    %3131 = vmatpush2.msra.mxu0 0.0
    %3132 = vmatprep.subr.mxu0 0.0
    %3133 = vmatpush2.msra.mxu0 0.0
    %3134 = vmatprep.subr.mxu0 0.0
    %3135 = vmatpush2.msra.mxu0 0.0
    %3136 = vmatprep.mubr.f32.mxu0 0.0
    %3137 = vmatmul.mubr.f32.gmra.mxu0 %v3067
    %v3138 = vpop.f32.mrf.mxu0
    %v3139 = vadd.f32 0.0, %v3138
    %v3140 = vpop.f32.mrf.mxu0
    %3141 = vdwg.mxu0
    %v3142 = vadd.f32 %v3063, %v3139
    %v3143 = vld [vmem:[%s1435] sm:$0xff]
    %v3144 = vld [vmem:[%s1435 + $0x8] sm:$0x3f]
    %v3145 = vrot.slane %v2746, 5
    %v3146 = vsel %vm1036, %v3145, 0
    %v3149 = vsel %vm1040, %v3144, 0
    %3151 = vmatprep.subr.mxu0 0.0
    %3152 = vmatpush1.msra.mxu0 0.0
    %3153 = vmatprep.subr.mxu0 0.0
    %3154 = vmatpush1.msra.mxu0 0.0
    %3155 = vmatprep.subr.mxu0 0.0
    %3156 = vmatpush1.msra.mxu0 0.0
    %3157 = vmatprep.subr.mxu0 0.0
    %3158 = vmatpush1.msra.mxu0 0.0
    %3159 = vmatprep.subr.mxu0 0.0
    %3160 = vmatpush1.msra.mxu0 0.0
    %3161 = vmatprep.subr.mxu0 0.0
    %3162 = vmatpush1.msra.mxu0 0.0
    %3163 = vmatprep.subr.mxu0 0.0
    %3164 = vmatpush1.msra.mxu0 0.0
    %3165 = vmatprep.subr.mxu0 0.0
    %3166 = vmatpush1.msra.mxu0 0.0
    %3167 = vmatprep.subr.mxu0 0.0
    %3168 = vmatpush1.msra.mxu0 0.0
    %3169 = vmatprep.subr.mxu0 0.0
    %3170 = vmatpush1.msra.mxu0 0.0
    %3171 = vmatprep.subr.mxu0 0.0
    %3172 = vmatpush1.msra.mxu0 0.0
    %3173 = vmatprep.subr.mxu0 0.0
    %3174 = vmatpush1.msra.mxu0 0.0
    %3175 = vmatprep.subr.mxu0 0.0
    %3176 = vmatpush1.msra.mxu0 0.0
    %3177 = vmatprep.subr.mxu0 0.0
    %3178 = vmatpush1.msra.mxu0 0.0
    %3179 = vmatprep.subr.mxu0 0.0
    %3180 = vmatpush1.msra.mxu0 %v3149
    %3181 = vmatprep.subr.mxu0 0.0
    %3182 = vmatpush1.msra.mxu0 %v3143
    %3183 = vmatprep.subr.mxu0 0.0
    %3184 = vmatpush2.msra.mxu0 0.0
    %3185 = vmatprep.subr.mxu0 0.0
    %3186 = vmatpush2.msra.mxu0 0.0
    %3187 = vmatprep.subr.mxu0 0.0
    %3188 = vmatpush2.msra.mxu0 0.0
    %3189 = vmatprep.subr.mxu0 0.0
    %3190 = vmatpush2.msra.mxu0 0.0
    %3191 = vmatprep.subr.mxu0 0.0
    %3192 = vmatpush2.msra.mxu0 0.0
    %3193 = vmatprep.subr.mxu0 0.0
    %3194 = vmatpush2.msra.mxu0 0.0
    %3195 = vmatprep.subr.mxu0 0.0
    %3196 = vmatpush2.msra.mxu0 0.0
    %3197 = vmatprep.subr.mxu0 0.0
    %3198 = vmatpush2.msra.mxu0 0.0
    %3199 = vmatprep.subr.mxu0 0.0
    %3200 = vmatpush2.msra.mxu0 0.0
    %3201 = vmatprep.subr.mxu0 0.0
    %3202 = vmatpush2.msra.mxu0 0.0
    %3203 = vmatprep.subr.mxu0 0.0
    %3204 = vmatpush2.msra.mxu0 0.0
    %3205 = vmatprep.subr.mxu0 0.0
    %3206 = vmatpush2.msra.mxu0 0.0
    %3207 = vmatprep.subr.mxu0 0.0
    %3208 = vmatpush2.msra.mxu0 0.0
    %3209 = vmatprep.subr.mxu0 0.0
    %3210 = vmatpush2.msra.mxu0 0.0
    %3211 = vmatprep.subr.mxu0 0.0
    %3212 = vmatpush2.msra.mxu0 0.0
    %3213 = vmatprep.subr.mxu0 0.0
    %3214 = vmatpush2.msra.mxu0 0.0
    %3215 = vmatprep.mubr.f32.mxu0 0.0
    %3216 = vmatmul.mubr.f32.gmra.mxu0 %v3146
    %v3217 = vpop.f32.mrf.mxu0
    %v3218 = vadd.f32 0.0, %v3217
    %v3219 = vpop.f32.mrf.mxu0
    %3220 = vdwg.mxu0
    %v3221 = vadd.f32 %v3142, %v3218
    %v3222 = vld [vmem:[%s1515] sm:$0xff]
    %v3223 = vld [vmem:[%s1515 + $0x8] sm:$0x3f]
    %v3224 = vrot.slane %v2746, 6
    %v3225 = vsel %vm1036, %v3224, 0
    %v3228 = vsel %vm1040, %v3223, 0
    %3230 = vmatprep.subr.mxu0 0.0
    %3231 = vmatpush1.msra.mxu0 0.0
    %3232 = vmatprep.subr.mxu0 0.0
    %3233 = vmatpush1.msra.mxu0 0.0
    %3234 = vmatprep.subr.mxu0 0.0
    %3235 = vmatpush1.msra.mxu0 0.0
    %3236 = vmatprep.subr.mxu0 0.0
    %3237 = vmatpush1.msra.mxu0 0.0
    %3238 = vmatprep.subr.mxu0 0.0
    %3239 = vmatpush1.msra.mxu0 0.0
    %3240 = vmatprep.subr.mxu0 0.0
    %3241 = vmatpush1.msra.mxu0 0.0
    %3242 = vmatprep.subr.mxu0 0.0
    %3243 = vmatpush1.msra.mxu0 0.0
    %3244 = vmatprep.subr.mxu0 0.0
    %3245 = vmatpush1.msra.mxu0 0.0
    %3246 = vmatprep.subr.mxu0 0.0
    %3247 = vmatpush1.msra.mxu0 0.0
    %3248 = vmatprep.subr.mxu0 0.0
    %3249 = vmatpush1.msra.mxu0 0.0
    %3250 = vmatprep.subr.mxu0 0.0
    %3251 = vmatpush1.msra.mxu0 0.0
    %3252 = vmatprep.subr.mxu0 0.0
    %3253 = vmatpush1.msra.mxu0 0.0
    %3254 = vmatprep.subr.mxu0 0.0
    %3255 = vmatpush1.msra.mxu0 0.0
    %3256 = vmatprep.subr.mxu0 0.0
    %3257 = vmatpush1.msra.mxu0 0.0
    %3258 = vmatprep.subr.mxu0 0.0
    %3259 = vmatpush1.msra.mxu0 %v3228
    %3260 = vmatprep.subr.mxu0 0.0
    %3261 = vmatpush1.msra.mxu0 %v3222
    %3262 = vmatprep.subr.mxu0 0.0
    %3263 = vmatpush2.msra.mxu0 0.0
    %3264 = vmatprep.subr.mxu0 0.0
    %3265 = vmatpush2.msra.mxu0 0.0
    %3266 = vmatprep.subr.mxu0 0.0
    %3267 = vmatpush2.msra.mxu0 0.0
    %3268 = vmatprep.subr.mxu0 0.0
    %3269 = vmatpush2.msra.mxu0 0.0
    %3270 = vmatprep.subr.mxu0 0.0
    %3271 = vmatpush2.msra.mxu0 0.0
    %3272 = vmatprep.subr.mxu0 0.0
    %3273 = vmatpush2.msra.mxu0 0.0
    %3274 = vmatprep.subr.mxu0 0.0
    %3275 = vmatpush2.msra.mxu0 0.0
    %3276 = vmatprep.subr.mxu0 0.0
    %3277 = vmatpush2.msra.mxu0 0.0
    %3278 = vmatprep.subr.mxu0 0.0
    %3279 = vmatpush2.msra.mxu0 0.0
    %3280 = vmatprep.subr.mxu0 0.0
    %3281 = vmatpush2.msra.mxu0 0.0
    %3282 = vmatprep.subr.mxu0 0.0
    %3283 = vmatpush2.msra.mxu0 0.0
    %3284 = vmatprep.subr.mxu0 0.0
    %3285 = vmatpush2.msra.mxu0 0.0
    %3286 = vmatprep.subr.mxu0 0.0
    %3287 = vmatpush2.msra.mxu0 0.0
    %3288 = vmatprep.subr.mxu0 0.0
    %3289 = vmatpush2.msra.mxu0 0.0
    %3290 = vmatprep.subr.mxu0 0.0
    %3291 = vmatpush2.msra.mxu0 0.0
    %3292 = vmatprep.subr.mxu0 0.0
    %3293 = vmatpush2.msra.mxu0 0.0
    %3294 = vmatprep.mubr.f32.mxu0 0.0
    %3295 = vmatmul.mubr.f32.gmra.mxu0 %v3225
    %v3296 = vpop.f32.mrf.mxu0
    %v3297 = vadd.f32 0.0, %v3296
    %v3298 = vpop.f32.mrf.mxu0
    %3299 = vdwg.mxu0
    %v3300 = vadd.f32 %v3221, %v3297
    %v3301 = vld [vmem:[%s1595] sm:$0xff]
    %v3302 = vld [vmem:[%s1595 + $0x8] sm:$0x3f]
    %v3303 = vrot.slane %v2746, 7
    %v3304 = vsel %vm1036, %v3303, 0
    %v3307 = vsel %vm1040, %v3302, 0
    %3309 = vmatprep.subr.mxu0 0.0
    %3310 = vmatpush1.msra.mxu0 0.0
    %3311 = vmatprep.subr.mxu0 0.0
    %3312 = vmatpush1.msra.mxu0 0.0
    %3313 = vmatprep.subr.mxu0 0.0
    %3314 = vmatpush1.msra.mxu0 0.0
    %3315 = vmatprep.subr.mxu0 0.0
    %3316 = vmatpush1.msra.mxu0 0.0
    %3317 = vmatprep.subr.mxu0 0.0
    %3318 = vmatpush1.msra.mxu0 0.0
    %3319 = vmatprep.subr.mxu0 0.0
    %3320 = vmatpush1.msra.mxu0 0.0
    %3321 = vmatprep.subr.mxu0 0.0
    %3322 = vmatpush1.msra.mxu0 0.0
    %3323 = vmatprep.subr.mxu0 0.0
    %3324 = vmatpush1.msra.mxu0 0.0
    %3325 = vmatprep.subr.mxu0 0.0
    %3326 = vmatpush1.msra.mxu0 0.0
    %3327 = vmatprep.subr.mxu0 0.0
    %3328 = vmatpush1.msra.mxu0 0.0
    %3329 = vmatprep.subr.mxu0 0.0
    %3330 = vmatpush1.msra.mxu0 0.0
    %3331 = vmatprep.subr.mxu0 0.0
    %3332 = vmatpush1.msra.mxu0 0.0
    %3333 = vmatprep.subr.mxu0 0.0
    %3334 = vmatpush1.msra.mxu0 0.0
    %3335 = vmatprep.subr.mxu0 0.0
    %3336 = vmatpush1.msra.mxu0 0.0
    %3337 = vmatprep.subr.mxu0 0.0
    %3338 = vmatpush1.msra.mxu0 %v3307
    %3339 = vmatprep.subr.mxu0 0.0
    %3340 = vmatpush1.msra.mxu0 %v3301
    %3341 = vmatprep.subr.mxu0 0.0
    %3342 = vmatpush2.msra.mxu0 0.0
    %3343 = vmatprep.subr.mxu0 0.0
    %3344 = vmatpush2.msra.mxu0 0.0
    %3345 = vmatprep.subr.mxu0 0.0
    %3346 = vmatpush2.msra.mxu0 0.0
    %3347 = vmatprep.subr.mxu0 0.0
    %3348 = vmatpush2.msra.mxu0 0.0
    %3349 = vmatprep.subr.mxu0 0.0
    %3350 = vmatpush2.msra.mxu0 0.0
    %3351 = vmatprep.subr.mxu0 0.0
    %3352 = vmatpush2.msra.mxu0 0.0
    %3353 = vmatprep.subr.mxu0 0.0
    %3354 = vmatpush2.msra.mxu0 0.0
    %3355 = vmatprep.subr.mxu0 0.0
    %3356 = vmatpush2.msra.mxu0 0.0
    %3357 = vmatprep.subr.mxu0 0.0
    %3358 = vmatpush2.msra.mxu0 0.0
    %3359 = vmatprep.subr.mxu0 0.0
    %3360 = vmatpush2.msra.mxu0 0.0
    %3361 = vmatprep.subr.mxu0 0.0
    %3362 = vmatpush2.msra.mxu0 0.0
    %3363 = vmatprep.subr.mxu0 0.0
    %3364 = vmatpush2.msra.mxu0 0.0
    %3365 = vmatprep.subr.mxu0 0.0
    %3366 = vmatpush2.msra.mxu0 0.0
    %3367 = vmatprep.subr.mxu0 0.0
    %3368 = vmatpush2.msra.mxu0 0.0
    %3369 = vmatprep.subr.mxu0 0.0
    %3370 = vmatpush2.msra.mxu0 0.0
    %3371 = vmatprep.subr.mxu0 0.0
    %3372 = vmatpush2.msra.mxu0 0.0
    %3373 = vmatprep.mubr.f32.mxu0 0.0
    %3374 = vmatmul.mubr.f32.gmra.mxu0 %v3304
    %v3375 = vpop.f32.mrf.mxu0
    %v3376 = vadd.f32 0.0, %v3375
    %v3377 = vpop.f32.mrf.mxu0
    %3378 = vdwg.mxu0
    %v3379 = vadd.f32 %v3300, %v3376
    %v3380 = vmax.f32 %v3379, 0.0
    %v3381 = vld [vmem:[%s10] sm:$0xff]
    %v3382 = vld [vmem:[%s10 + $0x8] sm:$0xff]
    %v3383 = vld [vmem:[%s10 + $0x10] sm:$0xff]
    %v3384 = vld [vmem:[%s10 + $0x18] sm:$0xff]
    %v3385 = vld [vmem:[%s11] sm:$0x1]
    %v3387 = vsel %vm1681, %v3380, 0
    %3389 = vmatprep.subr.mxu0 0.0
    %3390 = vmatpush1.msra.mxu0 0.0
    %3391 = vmatprep.subr.mxu0 0.0
    %3392 = vmatpush1.msra.mxu0 0.0
    %3393 = vmatprep.subr.mxu0 0.0
    %3394 = vmatpush1.msra.mxu0 0.0
    %3395 = vmatprep.subr.mxu0 0.0
    %3396 = vmatpush1.msra.mxu0 0.0
    %3397 = vmatprep.subr.mxu0 0.0
    %3398 = vmatpush1.msra.mxu0 0.0
    %3399 = vmatprep.subr.mxu0 0.0
    %3400 = vmatpush1.msra.mxu0 0.0
    %3401 = vmatprep.subr.mxu0 0.0
    %3402 = vmatpush1.msra.mxu0 0.0
    %3403 = vmatprep.subr.mxu0 0.0
    %3404 = vmatpush1.msra.mxu0 0.0
    %3405 = vmatprep.subr.mxu0 0.0
    %3406 = vmatpush1.msra.mxu0 0.0
    %3407 = vmatprep.subr.mxu0 0.0
    %3408 = vmatpush1.msra.mxu0 0.0
    %3409 = vmatprep.subr.mxu0 0.0
    %3410 = vmatpush1.msra.mxu0 0.0
    %3411 = vmatprep.subr.mxu0 0.0
    %3412 = vmatpush1.msra.mxu0 0.0
    %3413 = vmatprep.subr.mxu0 0.0
    %3414 = vmatpush1.msra.mxu0 %v3384
    %3415 = vmatprep.subr.mxu0 0.0
    %3416 = vmatpush1.msra.mxu0 %v3383
    %3417 = vmatprep.subr.mxu0 0.0
    %3418 = vmatpush1.msra.mxu0 %v3382
    %3419 = vmatprep.subr.mxu0 0.0
    %3420 = vmatpush1.msra.mxu0 %v3381
    %3421 = vmatprep.subr.mxu0 0.0
    %3422 = vmatpush2.msra.mxu0 0.0
    %3423 = vmatprep.subr.mxu0 0.0
    %3424 = vmatpush2.msra.mxu0 0.0
    %3425 = vmatprep.subr.mxu0 0.0
    %3426 = vmatpush2.msra.mxu0 0.0
    %3427 = vmatprep.subr.mxu0 0.0
    %3428 = vmatpush2.msra.mxu0 0.0
    %3429 = vmatprep.subr.mxu0 0.0
    %3430 = vmatpush2.msra.mxu0 0.0
    %3431 = vmatprep.subr.mxu0 0.0
    %3432 = vmatpush2.msra.mxu0 0.0
    %3433 = vmatprep.subr.mxu0 0.0
    %3434 = vmatpush2.msra.mxu0 0.0
    %3435 = vmatprep.subr.mxu0 0.0
    %3436 = vmatpush2.msra.mxu0 0.0
    %3437 = vmatprep.subr.mxu0 0.0
    %3438 = vmatpush2.msra.mxu0 0.0
    %3439 = vmatprep.subr.mxu0 0.0
    %3440 = vmatpush2.msra.mxu0 0.0
    %3441 = vmatprep.subr.mxu0 0.0
    %3442 = vmatpush2.msra.mxu0 0.0
    %3443 = vmatprep.subr.mxu0 0.0
    %3444 = vmatpush2.msra.mxu0 0.0
    %3445 = vmatprep.subr.mxu0 0.0
    %3446 = vmatpush2.msra.mxu0 0.0
    %3447 = vmatprep.subr.mxu0 0.0
    %3448 = vmatpush2.msra.mxu0 0.0
    %3449 = vmatprep.subr.mxu0 0.0
    %3450 = vmatpush2.msra.mxu0 0.0
    %3451 = vmatprep.subr.mxu0 0.0
    %3452 = vmatpush2.msra.mxu0 0.0
    %3453 = vmatprep.mubr.f32.mxu0 0.0
    %3454 = vmatmul.mubr.f32.gmra.mxu0 %v3387
    %v3455 = vpop.f32.mrf.mxu0
    %v3456 = vadd.f32 %v3385, %v3455
    %v3457 = vpop.f32.mrf.mxu0
    %3458 = vdwg.mxu0
    %v3459 = vsel %vm1755, %v3456, -inf
    %3460 = vmax.xlane.f32.xlu0 %v3459
    %v3461 = vpop.xlane.xlu0 %3460
    %v3462 = vsub.f32 %v3456, %v3461
    %v3463 = vmul.f32 %v3462, 1.442695
    %v3464 = vpow.pop %v3463
    %v3465 = vsel %vm1755, %v3464, 0.0
    %3466 = vadd.xlane.f32.xlu0 %v3465
    %v3467 = vpop.xlane.xlu0 %3466
    %v3468 = vlog2.pop %v3467
    %v3469 = vmul.f32 %v3468, 0.6931472
    %v3470 = vsub.f32 %v3462, %v3469
    %3471 = vst.msk [vmem:[#allocation3 + $0x1] sm:$0x1] %vm1755, %v3470
    // Predicated region
    $region50: #{cnn_forward.1} parent=1 // pred_check
      _
    $region51: #{cnn_forward.1} parent=1 // pred_check_branch
      %3473 = sbr.rel (0) target = $region53
    $region52: #{cnn_forward.1} parent=1 // pred_region
      %s3475 = ssub.s32 32, 32
      %3476 = vsyncadd [#allocation4], %s3475
      %s3478 = sshll.u32 [#allocation3], 4
      %s3479 = int_to_ptr.vmem [resolvable:$true] %s3478
      %3481 = dma.vmem_to_hbm [thread:$0]  %s3479, 32, %s12, [#allocation4]
    $region53: #{cnn_forward.1} parent=1 // pred_fallthru
      _
    // Predicated region
    $region54: #{cnn_forward.1} parent=1 // pred_check
      _
    $region55: #{cnn_forward.1} parent=1 // pred_check_branch
      %3483 = sbr.rel (0) target = $region57
    $region56: #{cnn_forward.1} parent=1 // pred_region
      %3484 = dma.done [#allocation4], 32
    $region57: #{cnn_forward.1} parent=1 // pred_fallthru
      _
    %3485 = vsyncpa [#allocation4], 1

</llo_original>
